<compile_context>
chip_gen: v5e
topology: v5e:2x2
jax: 0.10.0
libtpu: 0.0.40
codegen_flags: <defaults>
</compile_context>

<pallas_src>
import jax
import jax.numpy as jnp
from jax import lax
from jax.experimental import pallas as pl
from jax.experimental.pallas import tpu as pltpu


def bottleneck_kernel(x_ref, w1_ref, b1_ref, w2_ref, b2_ref, w3_ref, b3_ref,
                      o_ref, pad_ref, im_ref):
    # Block shapes (all static):
    #   x_ref  : (1, H, W, Cin)     f32
    #   w1_ref : (Cin, width)       bf16  (BN1 scale folded)
    #   w2_ref : (9*width, width)   bf16  (BN2 scale folded, taps row-major dy,dx)
    #   w3_ref : (width, Cout)      bf16  (BN3 scale folded)
    #   b*_ref : (1, C)             f32
    #   o_ref  : (1, H, W, Cout)    f32
    #   pad_ref: (H+2, Wp, width)   f32 scratch (zero-padded activations)
    #   im_ref : (H*W, 9*width)     bf16 scratch (lane-dense im2col buffer)
    _, H, W, Cin = x_ref.shape
    width = w1_ref.shape[1]
    Cout = w3_ref.shape[1]
    HW = H * W
    Wp = pad_ref.shape[1]

    # ---- conv1x1 (+BN1 bias) -> ReLU : one MXU matmul over channels ----
    x_bf16 = x_ref[...].reshape(HW, Cin).astype(jnp.bfloat16)
    h1 = jnp.dot(x_bf16, w1_ref[...], preferred_element_type=jnp.float32)
    h1 = jnp.maximum(h1 + b1_ref[...], 0.0)

    # ---- conv3x3 (stride=1, pad=1) as a single im2col matmul, K = 9*width ----
    # Zero only the 1-pixel halo; the interior is fully overwritten each step.
    pad_ref[0:1, :, :] = jnp.zeros((1, Wp, width), jnp.float32)
    pad_ref[H + 1:H + 2, :, :] = jnp.zeros((1, Wp, width), jnp.float32)
    pad_ref[1:H + 1, 0:1, :] = jnp.zeros((H, 1, width), jnp.float32)
    pad_ref[1:H + 1, W + 1:W + 2, :] = jnp.zeros((H, 1, width), jnp.float32)
    pad_ref[1:H + 1, 1:W + 1, :] = h1.reshape(H, W, width)

    # Build the lane-dense im2col buffer: tap (dy, dx) -> column block 3*dy+dx.
    for dy in range(3):
        for dx in range(3):
            t = 3 * dy + dx
            patch = pad_ref[dy:dy + H, dx:dx + W, :].reshape(HW, width)
            im_ref[:, t * width:(t + 1) * width] = patch.astype(jnp.bfloat16)

    h2 = jnp.dot(im_ref[...], w2_ref[...], preferred_element_type=jnp.float32)
    h2 = jnp.maximum(h2 + b2_ref[...], 0.0)

    # ---- conv1x1 (+BN3 bias) -> residual add -> ReLU ----
    h3 = jnp.dot(h2.astype(jnp.bfloat16), w3_ref[...],
                 preferred_element_type=jnp.float32)
    h3 = h3 + b3_ref[...]
    # Re-read the input ref here (identity path, Cin == Cout): keeps x's live
    # range out of the matmul stages (less vreg / VMEM-spill pressure).
    identity = x_ref[...].reshape(HW, Cout)
    out = jnp.maximum(h3 + identity, 0.0)
    o_ref[...] = out.reshape(1, H, W, Cout).astype(o_ref.dtype)


def _fold_bn(gamma, beta, mean, var, eps=1e-5):
    scale = (gamma / jnp.sqrt(var + eps)).astype(jnp.float32)
    bias = (beta - mean * scale).astype(jnp.float32)
    return scale, bias


def _prep_weights(params):
    """Fold BN scales into conv weights (bf16 matmul weights, f32 biases)."""
    w1, w2, w3 = params["w1"], params["w2"], params["w3"]
    width = w1.shape[1]
    cout = w3.shape[1]
    s1, b1 = _fold_bn(*params["bn1"])
    s2, b2 = _fold_bn(*params["bn2"])
    s3, b3 = _fold_bn(*params["bn3"])
    w1f = (w1.astype(jnp.float32) * s1[None, :]).astype(jnp.bfloat16)
    w2f = (w2.astype(jnp.float32) * s2[None, None, None, :]
           ).reshape(9 * width, width).astype(jnp.bfloat16)
    w3f = (w3.astype(jnp.float32) * s3[None, :]).astype(jnp.bfloat16)
    return (w1f, b1.reshape(1, width), w2f, b2.reshape(1, width),
            w3f, b3.reshape(1, cout))


def bottleneck_forward_nhwc(x_nhwc, params):
    """x_nhwc: (N, H, W, Cin) f32. Returns (N, H, W, Cout) with Cout == Cin."""
    x = x_nhwc.astype(jnp.float32)
    N, H, W, Cin = x.shape
    w1f, b1, w2f, b2, w3f, b3 = _prep_weights(params)
    width = w1f.shape[1]
    Cout = w3f.shape[1]
    assert Cin == Cout, "downsample=None requires inplanes == planes*expansion"

    Wp = ((W + 2 + 7) // 8) * 8          # sublane-aligned padded-row extent

    flops = 2 * N * H * W * (Cin * width + 9 * width * width + width * Cout)
    bytes_accessed = int(x.size * 4 + N * H * W * Cout * 4
                         + (w1f.size + w2f.size + w3f.size) * 2
                         + (b1.size + b2.size + b3.size) * 4)

    # Rough per-core VMEM need: double-buffered x/out blocks, weights, scratch.
    block_bytes = 2 * (H * W * Cin * 4 + H * W * Cout * 4)
    block_bytes += 2 * ((w1f.size + w2f.size + w3f.size) * 2
                        + (b1.size + b2.size + b3.size) * 4)
    block_bytes += (H + 2) * Wp * width * 4 + H * W * 9 * width * 2
    block_bytes += 4 * H * W * width * 4           # intermediates headroom
    vmem_limit = int(min(64 * 1024 * 1024,
                         max(16 * 1024 * 1024, 2 * block_bytes)))

    out = pl.pallas_call(
        bottleneck_kernel,
        out_shape=jax.ShapeDtypeStruct((N, H, W, Cout), jnp.float32),
        grid_spec=pltpu.PrefetchScalarGridSpec(
            num_scalar_prefetch=0,
            grid=(N,),
            in_specs=[
                pl.BlockSpec((1, H, W, Cin), lambda n: (n, 0, 0, 0)),
                pl.BlockSpec((Cin, width), lambda n: (0, 0)),
                pl.BlockSpec((1, width), lambda n: (0, 0)),
                pl.BlockSpec((9 * width, width), lambda n: (0, 0)),
                pl.BlockSpec((1, width), lambda n: (0, 0)),
                pl.BlockSpec((width, Cout), lambda n: (0, 0)),
                pl.BlockSpec((1, Cout), lambda n: (0, 0)),
            ],
            out_specs=pl.BlockSpec((1, H, W, Cout), lambda n: (n, 0, 0, 0)),
            scratch_shapes=[
                pltpu.VMEM((H + 2, Wp, width), jnp.float32),
                pltpu.VMEM((H * W, 9 * width), jnp.bfloat16),
            ],
        ),
        compiler_params=pltpu.CompilerParams(
            dimension_semantics=("parallel",),
            vmem_limit_bytes=vmem_limit,
        ),
        cost_estimate=pl.CostEstimate(flops=flops, transcendentals=0,
                                      bytes_accessed=bytes_accessed),
    )(x, w1f, b1, w2f, b2, w3f, b3)
    return out


def bottleneck_forward(x_nchw, params):
    """PyTorch-layout entry point: (N, Cin, H, W) -> (N, Cout, H, W)."""
    # NOTE: callers that already keep activations in NHWC should call
    # bottleneck_forward_nhwc directly and skip these two transposes — they are
    # pure HBM traffic and matter most on v5e.
    x = jnp.transpose(x_nchw, (0, 2, 3, 1))
    out = bottleneck_forward_nhwc(x, params)
    return jnp.transpose(out, (0, 3, 1, 2))


def bottleneck_reference(x_nchw, params, compute_dtype=jnp.float32):
    """Pure-JAX reference via lax.conv. With compute_dtype=bfloat16 it mirrors
    the kernel's quantization (BN scale folded into bf16 weights, bf16 conv
    inputs, f32 accumulation) for a tight check; with float32 it is the exact
    inference-BN Bottleneck forward."""
    x = jnp.transpose(x_nchw, (0, 2, 3, 1)).astype(jnp.float32)
    dn = ("NHWC", "HWIO", "NHWC")
    w1, w2, w3 = params["w1"], params["w2"], params["w3"]
    s1, b1 = _fold_bn(*params["bn1"])
    s2, b2 = _fold_bn(*params["bn2"])
    s3, b3 = _fold_bn(*params["bn3"])
    w1f = (w1 * s1[None, :]).astype(compute_dtype)[None, None]        # HWIO 1x1
    w2f = (w2 * s2[None, None, None, :]).astype(compute_dtype)        # HWIO 3x3
    w3f = (w3 * s3[None, :]).astype(compute_dtype)[None, None]        # HWIO 1x1

    def conv(h, w, pad):
        return lax.conv_general_dilated(h.astype(compute_dtype), w, (1, 1), pad,
                                        dimension_numbers=dn,
                                        preferred_element_type=jnp.float32)

    h = jnp.maximum(conv(x, w1f, "VALID") + b1, 0.0)
    h = jnp.maximum(conv(h, w2f, ((1, 1), (1, 1))) + b2, 0.0)
    h = conv(h, w3f, "VALID") + b3
    out = jnp.maximum(h + x, 0.0)
    return jnp.transpose(out, (0, 3, 1, 2))


def init_params(key, inplanes, planes, base_width=64, groups=1, expansion=4):
    width = int(planes * (base_width / 64.0)) * groups
    cout = planes * expansion
    ks = jax.random.split(key, 9)
    # conv weights stored directly in matmul / HWIO layouts
    w1 = 0.1 * jax.random.normal(ks[0], (inplanes, width), jnp.float32)
    w2 = 0.1 * jax.random.normal(ks[1], (3, 3, width, width), jnp.float32)
    w3 = 0.1 * jax.random.normal(ks[2], (width, cout), jnp.float32)

    def bn_params(k, c):
        k1, k2, k3, k4 = jax.random.split(k, 4)
        gamma = 1.0 + 0.1 * jax.random.normal(k1, (c,), jnp.float32)
        beta = 0.1 * jax.random.normal(k2, (c,), jnp.float32)
        mean = 0.1 * jax.random.normal(k3, (c,), jnp.float32)
        var = 1.0 + 0.1 * jax.random.uniform(k4, (c,), jnp.float32)
        return (gamma, beta, mean, var)

    return {
        "w1": w1, "w2": w2, "w3": w3,
        "bn1": bn_params(ks[3], width),
        "bn2": bn_params(ks[4], width),
        "bn3": bn_params(ks[5], cout),
    }


if __name__ == "__main__":
    key = jax.random.PRNGKey(0)
    k_x, k_p = jax.random.split(key)

    # Small shapes consistent with the module: inplanes = planes * expansion.
    N, inplanes, planes, H, W = 2, 16, 4, 16, 16
    x = jax.random.normal(k_x, (N, inplanes, H, W), jnp.float32)    # NCHW input
    params = init_params(k_p, inplanes, planes)

    out = jax.block_until_ready(bottleneck_forward(x, params))
    assert out.shape == (N, planes * 4, H, W)

    # Tight check vs a reference applying the same bf16 quantization as kernel.
    ref_q = bottleneck_reference(x, params, compute_dtype=jnp.bfloat16)
    assert jnp.allclose(out, ref_q, atol=1e-3, rtol=1e-3), "mismatch vs bf16 reference"
    # Sanity check vs exact f32 module semantics (bf16 rounding tolerance).
    ref = bottleneck_reference(x, params, compute_dtype=jnp.float32)
    assert jnp.allclose(out, ref, atol=5e-2, rtol=5e-2), "mismatch vs f32 reference"

    print("KERNEL_OK")
</pallas_src>

<mosaic_0001>
module attributes {stable_mosaic.version = 11 : i64} {
  func.func @bottleneck_kernel(%arg0: i32, %arg1: memref<1x16x16x16xf32, #tpu.memory_space<vmem>>, %arg2: memref<16x4xbf16, #tpu.memory_space<vmem>>, %arg3: memref<1x4xf32, #tpu.memory_space<vmem>>, %arg4: memref<36x4xbf16, #tpu.memory_space<vmem>>, %arg5: memref<1x4xf32, #tpu.memory_space<vmem>>, %arg6: memref<4x16xbf16, #tpu.memory_space<vmem>>, %arg7: memref<1x16xf32, #tpu.memory_space<vmem>>, %arg8: memref<1x16x16x16xf32, #tpu.memory_space<vmem>>, %arg9: memref<18x24x4xf32, #tpu.memory_space<vmem>>, %arg10: memref<256x36xbf16, #tpu.memory_space<vmem>>) attributes {dimension_semantics = [#tpu.dimension_semantics<parallel>], iteration_bounds = array<i64: 2>, scalar_prefetch = 0 : i64, scratch_operands = 2 : i64, tpu.core_type = #tpu.core_type<tc>, window_params = [{transform_indices = @transform_0, window_bounds = array<i64: 1, 16, 16, 16>}, {pipeline_mode = #tpu.pipeline_mode<synchronous>, transform_indices = @transform_1, window_bounds = array<i64: 16, 4>}, {pipeline_mode = #tpu.pipeline_mode<synchronous>, transform_indices = @transform_2, window_bounds = array<i64: 1, 4>}, {pipeline_mode = #tpu.pipeline_mode<synchronous>, transform_indices = @transform_3, window_bounds = array<i64: 36, 4>}, {pipeline_mode = #tpu.pipeline_mode<synchronous>, transform_indices = @transform_4, window_bounds = array<i64: 1, 4>}, {pipeline_mode = #tpu.pipeline_mode<synchronous>, transform_indices = @transform_5, window_bounds = array<i64: 4, 16>}, {pipeline_mode = #tpu.pipeline_mode<synchronous>, transform_indices = @transform_6, window_bounds = array<i64: 1, 16>}, {transform_indices = @transform_7, window_bounds = array<i64: 1, 16, 16, 16>}]} {
    %c0 = arith.constant 0 : index
    %c0_0 = arith.constant 0 : index
    %c0_1 = arith.constant 0 : index
    %c0_2 = arith.constant 0 : index
    %0 = vector.load %arg1[%c0, %c0_0, %c0_1, %c0_2] : memref<1x16x16x16xf32, #tpu.memory_space<vmem>>, vector<1x16x16x16xf32>
    %1 = vector.shape_cast %0 : vector<1x16x16x16xf32> to vector<256x16xf32>
    %2 = arith.truncf %1 : vector<256x16xf32> to vector<256x16xbf16>
    %c0_3 = arith.constant 0 : index
    %c0_4 = arith.constant 0 : index
    %3 = vector.load %arg2[%c0_3, %c0_4] : memref<16x4xbf16, #tpu.memory_space<vmem>>, vector<16x4xbf16>
    %cst = arith.constant dense<0.000000e+00> : vector<256x4xf32>
    %4 = tpu.matmul %2, %3, %cst {dimension_numbers = #tpu.dot_dimension_numbers<[1], [0], [0], [1], [0, 0, 1, 1], [], []>} : vector<256x16xbf16>, vector<16x4xbf16>, vector<256x4xf32> -> vector<256x4xf32>
    %c0_5 = arith.constant 0 : index
    %c0_6 = arith.constant 0 : index
    %5 = vector.load %arg3[%c0_5, %c0_6] : memref<1x4xf32, #tpu.memory_space<vmem>>, vector<1x4xf32>
    %6 = vector.broadcast %5 : vector<1x4xf32> to vector<256x4xf32>
    %7 = arith.addf %4, %6 : vector<256x4xf32>
    %cst_7 = arith.constant 0.000000e+00 : f32
    %8 = vector.broadcast %cst_7 : f32 to vector<256x4xf32>
    %9 = arith.maximumf %7, %8 : vector<256x4xf32>
    %cst_8 = arith.constant 0.000000e+00 : f32
    %10 = vector.broadcast %cst_8 : f32 to vector<1x24x4xf32>
    %c0_9 = arith.constant 0 : index
    %c0_10 = arith.constant 0 : index
    %c0_11 = arith.constant 0 : index
    %11 = vector.load %arg9[%c0_9, %c0_10, %c0_11] : memref<18x24x4xf32, #tpu.memory_space<vmem>>, vector<1x24x4xf32>
    tpu.vector_store %arg9[%c0_9, %c0_10, %c0_11], %10 {strides = array<i32>} : memref<18x24x4xf32, #tpu.memory_space<vmem>>, vector<1x24x4xf32>,
    %cst_12 = arith.constant 0.000000e+00 : f32
    %12 = vector.broadcast %cst_12 : f32 to vector<1x24x4xf32>
    %c17 = arith.constant 17 : index
    %c0_13 = arith.constant 0 : index
    %c0_14 = arith.constant 0 : index
    %13 = vector.load %arg9[%c17, %c0_13, %c0_14] : memref<18x24x4xf32, #tpu.memory_space<vmem>>, vector<1x24x4xf32>
    tpu.vector_store %arg9[%c17, %c0_13, %c0_14], %12 {strides = array<i32>} : memref<18x24x4xf32, #tpu.memory_space<vmem>>, vector<1x24x4xf32>,
    %cst_15 = arith.constant 0.000000e+00 : f32
    %14 = vector.broadcast %cst_15 : f32 to vector<16x1x4xf32>
    %c1 = arith.constant 1 : index
    %c0_16 = arith.constant 0 : index
    %c0_17 = arith.constant 0 : index
    %15 = vector.load %arg9[%c1, %c0_16, %c0_17] : memref<18x24x4xf32, #tpu.memory_space<vmem>>, vector<16x1x4xf32>
    tpu.vector_store %arg9[%c1, %c0_16, %c0_17], %14 {strides = array<i32>} : memref<18x24x4xf32, #tpu.memory_space<vmem>>, vector<16x1x4xf32>,
    %cst_18 = arith.constant 0.000000e+00 : f32
    %16 = vector.broadcast %cst_18 : f32 to vector<16x1x4xf32>
    %c1_19 = arith.constant 1 : index
    %c17_20 = arith.constant 17 : index
    %c0_21 = arith.constant 0 : index
    %17 = vector.load %arg9[%c1_19, %c17_20, %c0_21] : memref<18x24x4xf32, #tpu.memory_space<vmem>>, vector<16x1x4xf32>
    tpu.vector_store %arg9[%c1_19, %c17_20, %c0_21], %16 {strides = array<i32>} : memref<18x24x4xf32, #tpu.memory_space<vmem>>, vector<16x1x4xf32>,
    %18 = vector.shape_cast %9 : vector<256x4xf32> to vector<16x16x4xf32>
    %c1_22 = arith.constant 1 : index
    %c1_23 = arith.constant 1 : index
    %c0_24 = arith.constant 0 : index
    %19 = vector.load %arg9[%c1_22, %c1_23, %c0_24] : memref<18x24x4xf32, #tpu.memory_space<vmem>>, vector<16x16x4xf32>
    tpu.vector_store %arg9[%c1_22, %c1_23, %c0_24], %18 {strides = array<i32>} : memref<18x24x4xf32, #tpu.memory_space<vmem>>, vector<16x16x4xf32>,
    %c0_25 = arith.constant 0 : index
    %c0_26 = arith.constant 0 : index
    %c0_27 = arith.constant 0 : index
    %20 = vector.load %arg9[%c0_25, %c0_26, %c0_27] : memref<18x24x4xf32, #tpu.memory_space<vmem>>, vector<16x16x4xf32>
    %21 = vector.shape_cast %20 : vector<16x16x4xf32> to vector<256x4xf32>
    %22 = arith.truncf %21 : vector<256x4xf32> to vector<256x4xbf16>
    %c0_28 = arith.constant 0 : index
    %c0_29 = arith.constant 0 : index
    %23 = vector.load %arg10[%c0_28, %c0_29] : memref<256x36xbf16, #tpu.memory_space<vmem>>, vector<256x4xbf16>
    tpu.vector_store %arg10[%c0_28, %c0_29], %22 {strides = array<i32>} : memref<256x36xbf16, #tpu.memory_space<vmem>>, vector<256x4xbf16>,
    %c0_30 = arith.constant 0 : index
    %c1_31 = arith.constant 1 : index
    %c0_32 = arith.constant 0 : index
    %24 = vector.load %arg9[%c0_30, %c1_31, %c0_32] : memref<18x24x4xf32, #tpu.memory_space<vmem>>, vector<16x16x4xf32>
    %25 = vector.shape_cast %24 : vector<16x16x4xf32> to vector<256x4xf32>
    %26 = arith.truncf %25 : vector<256x4xf32> to vector<256x4xbf16>
    %c0_33 = arith.constant 0 : index
    %c4 = arith.constant 4 : index
    %27 = vector.load %arg10[%c0_33, %c4] : memref<256x36xbf16, #tpu.memory_space<vmem>>, vector<256x4xbf16>
    tpu.vector_store %arg10[%c0_33, %c4], %26 {strides = array<i32>} : memref<256x36xbf16, #tpu.memory_space<vmem>>, vector<256x4xbf16>,
    %c0_34 = arith.constant 0 : index
    %c2 = arith.constant 2 : index
    %c0_35 = arith.constant 0 : index
    %28 = vector.load %arg9[%c0_34, %c2, %c0_35] : memref<18x24x4xf32, #tpu.memory_space<vmem>>, vector<16x16x4xf32>
    %29 = vector.shape_cast %28 : vector<16x16x4xf32> to vector<256x4xf32>
    %30 = arith.truncf %29 : vector<256x4xf32> to vector<256x4xbf16>
    %c0_36 = arith.constant 0 : index
    %c8 = arith.constant 8 : index
    %31 = vector.load %arg10[%c0_36, %c8] : memref<256x36xbf16, #tpu.memory_space<vmem>>, vector<256x4xbf16>
    tpu.vector_store %arg10[%c0_36, %c8], %30 {strides = array<i32>} : memref<256x36xbf16, #tpu.memory_space<vmem>>, vector<256x4xbf16>,
    %c1_37 = arith.constant 1 : index
    %c0_38 = arith.constant 0 : index
    %c0_39 = arith.constant 0 : index
    %32 = vector.load %arg9[%c1_37, %c0_38, %c0_39] : memref<18x24x4xf32, #tpu.memory_space<vmem>>, vector<16x16x4xf32>
    %33 = vector.shape_cast %32 : vector<16x16x4xf32> to vector<256x4xf32>
    %34 = arith.truncf %33 : vector<256x4xf32> to vector<256x4xbf16>
    %c0_40 = arith.constant 0 : index
    %c12 = arith.constant 12 : index
    %35 = vector.load %arg10[%c0_40, %c12] : memref<256x36xbf16, #tpu.memory_space<vmem>>, vector<256x4xbf16>
    tpu.vector_store %arg10[%c0_40, %c12], %34 {strides = array<i32>} : memref<256x36xbf16, #tpu.memory_space<vmem>>, vector<256x4xbf16>,
    %c1_41 = arith.constant 1 : index
    %c1_42 = arith.constant 1 : index
    %c0_43 = arith.constant 0 : index
    %36 = vector.load %arg9[%c1_41, %c1_42, %c0_43] : memref<18x24x4xf32, #tpu.memory_space<vmem>>, vector<16x16x4xf32>
    %37 = vector.shape_cast %36 : vector<16x16x4xf32> to vector<256x4xf32>
    %38 = arith.truncf %37 : vector<256x4xf32> to vector<256x4xbf16>
    %c0_44 = arith.constant 0 : index
    %c16 = arith.constant 16 : index
    %39 = vector.load %arg10[%c0_44, %c16] : memref<256x36xbf16, #tpu.memory_space<vmem>>, vector<256x4xbf16>
    tpu.vector_store %arg10[%c0_44, %c16], %38 {strides = array<i32>} : memref<256x36xbf16, #tpu.memory_space<vmem>>, vector<256x4xbf16>,
    %c1_45 = arith.constant 1 : index
    %c2_46 = arith.constant 2 : index
    %c0_47 = arith.constant 0 : index
    %40 = vector.load %arg9[%c1_45, %c2_46, %c0_47] : memref<18x24x4xf32, #tpu.memory_space<vmem>>, vector<16x16x4xf32>
    %41 = vector.shape_cast %40 : vector<16x16x4xf32> to vector<256x4xf32>
    %42 = arith.truncf %41 : vector<256x4xf32> to vector<256x4xbf16>
    %c0_48 = arith.constant 0 : index
    %c20 = arith.constant 20 : index
    %43 = vector.load %arg10[%c0_48, %c20] : memref<256x36xbf16, #tpu.memory_space<vmem>>, vector<256x4xbf16>
    tpu.vector_store %arg10[%c0_48, %c20], %42 {strides = array<i32>} : memref<256x36xbf16, #tpu.memory_space<vmem>>, vector<256x4xbf16>,
    %c2_49 = arith.constant 2 : index
    %c0_50 = arith.constant 0 : index
    %c0_51 = arith.constant 0 : index
    %44 = vector.load %arg9[%c2_49, %c0_50, %c0_51] : memref<18x24x4xf32, #tpu.memory_space<vmem>>, vector<16x16x4xf32>
    %45 = vector.shape_cast %44 : vector<16x16x4xf32> to vector<256x4xf32>
    %46 = arith.truncf %45 : vector<256x4xf32> to vector<256x4xbf16>
    %c0_52 = arith.constant 0 : index
    %c24 = arith.constant 24 : index
    %47 = vector.load %arg10[%c0_52, %c24] : memref<256x36xbf16, #tpu.memory_space<vmem>>, vector<256x4xbf16>
    tpu.vector_store %arg10[%c0_52, %c24], %46 {strides = array<i32>} : memref<256x36xbf16, #tpu.memory_space<vmem>>, vector<256x4xbf16>,
    %c2_53 = arith.constant 2 : index
    %c1_54 = arith.constant 1 : index
    %c0_55 = arith.constant 0 : index
    %48 = vector.load %arg9[%c2_53, %c1_54, %c0_55] : memref<18x24x4xf32, #tpu.memory_space<vmem>>, vector<16x16x4xf32>
    %49 = vector.shape_cast %48 : vector<16x16x4xf32> to vector<256x4xf32>
    %50 = arith.truncf %49 : vector<256x4xf32> to vector<256x4xbf16>
    %c0_56 = arith.constant 0 : index
    %c28 = arith.constant 28 : index
    %51 = vector.load %arg10[%c0_56, %c28] : memref<256x36xbf16, #tpu.memory_space<vmem>>, vector<256x4xbf16>
    tpu.vector_store %arg10[%c0_56, %c28], %50 {strides = array<i32>} : memref<256x36xbf16, #tpu.memory_space<vmem>>, vector<256x4xbf16>,
    %c2_57 = arith.constant 2 : index
    %c2_58 = arith.constant 2 : index
    %c0_59 = arith.constant 0 : index
    %52 = vector.load %arg9[%c2_57, %c2_58, %c0_59] : memref<18x24x4xf32, #tpu.memory_space<vmem>>, vector<16x16x4xf32>
    %53 = vector.shape_cast %52 : vector<16x16x4xf32> to vector<256x4xf32>
    %54 = arith.truncf %53 : vector<256x4xf32> to vector<256x4xbf16>
    %c0_60 = arith.constant 0 : index
    %c32 = arith.constant 32 : index
    %55 = vector.load %arg10[%c0_60, %c32] : memref<256x36xbf16, #tpu.memory_space<vmem>>, vector<256x4xbf16>
    tpu.vector_store %arg10[%c0_60, %c32], %54 {strides = array<i32>} : memref<256x36xbf16, #tpu.memory_space<vmem>>, vector<256x4xbf16>,
    %c0_61 = arith.constant 0 : index
    %c0_62 = arith.constant 0 : index
    %56 = vector.load %arg10[%c0_61, %c0_62] : memref<256x36xbf16, #tpu.memory_space<vmem>>, vector<256x36xbf16>
    %c0_63 = arith.constant 0 : index
    %c0_64 = arith.constant 0 : index
    %57 = vector.load %arg4[%c0_63, %c0_64] : memref<36x4xbf16, #tpu.memory_space<vmem>>, vector<36x4xbf16>
    %cst_65 = arith.constant dense<0.000000e+00> : vector<256x4xf32>
    %58 = tpu.matmul %56, %57, %cst_65 {dimension_numbers = #tpu.dot_dimension_numbers<[1], [0], [0], [1], [0, 0, 1, 1], [], []>} : vector<256x36xbf16>, vector<36x4xbf16>, vector<256x4xf32> -> vector<256x4xf32>
    %c0_66 = arith.constant 0 : index
    %c0_67 = arith.constant 0 : index
    %59 = vector.load %arg5[%c0_66, %c0_67] : memref<1x4xf32, #tpu.memory_space<vmem>>, vector<1x4xf32>
    %60 = vector.broadcast %59 : vector<1x4xf32> to vector<256x4xf32>
    %61 = arith.addf %58, %60 : vector<256x4xf32>
    %cst_68 = arith.constant 0.000000e+00 : f32
    %62 = vector.broadcast %cst_68 : f32 to vector<256x4xf32>
    %63 = arith.maximumf %61, %62 : vector<256x4xf32>
    %64 = arith.truncf %63 : vector<256x4xf32> to vector<256x4xbf16>
    %c0_69 = arith.constant 0 : index
    %c0_70 = arith.constant 0 : index
    %65 = vector.load %arg6[%c0_69, %c0_70] : memref<4x16xbf16, #tpu.memory_space<vmem>>, vector<4x16xbf16>
    %cst_71 = arith.constant dense<0.000000e+00> : vector<256x16xf32>
    %66 = tpu.matmul %64, %65, %cst_71 {dimension_numbers = #tpu.dot_dimension_numbers<[1], [0], [0], [1], [0, 0, 1, 1], [], []>} : vector<256x4xbf16>, vector<4x16xbf16>, vector<256x16xf32> -> vector<256x16xf32>
    %c0_72 = arith.constant 0 : index
    %c0_73 = arith.constant 0 : index
    %67 = vector.load %arg7[%c0_72, %c0_73] : memref<1x16xf32, #tpu.memory_space<vmem>>, vector<1x16xf32>
    %68 = vector.broadcast %67 : vector<1x16xf32> to vector<256x16xf32>
    %69 = arith.addf %66, %68 : vector<256x16xf32>
    %c0_74 = arith.constant 0 : index
    %c0_75 = arith.constant 0 : index
    %c0_76 = arith.constant 0 : index
    %c0_77 = arith.constant 0 : index
    %70 = vector.load %arg1[%c0_74, %c0_75, %c0_76, %c0_77] : memref<1x16x16x16xf32, #tpu.memory_space<vmem>>, vector<1x16x16x16xf32>
    %71 = vector.shape_cast %70 : vector<1x16x16x16xf32> to vector<256x16xf32>
    %72 = arith.addf %69, %71 : vector<256x16xf32>
    %cst_78 = arith.constant 0.000000e+00 : f32
    %73 = vector.broadcast %cst_78 : f32 to vector<256x16xf32>
    %74 = arith.maximumf %72, %73 : vector<256x16xf32>
    %75 = vector.shape_cast %74 : vector<256x16xf32> to vector<1x16x16x16xf32>
    %c0_79 = arith.constant 0 : index
    %c0_80 = arith.constant 0 : index
    %c0_81 = arith.constant 0 : index
    %c0_82 = arith.constant 0 : index
    %76 = vector.load %arg8[%c0_79, %c0_80, %c0_81, %c0_82] : memref<1x16x16x16xf32, #tpu.memory_space<vmem>>, vector<1x16x16x16xf32>
    tpu.vector_store %arg8[%c0_79, %c0_80, %c0_81, %c0_82], %75 {strides = array<i32>} : memref<1x16x16x16xf32, #tpu.memory_space<vmem>>, vector<1x16x16x16xf32>,
    return
  }
  func.func @transform_0(%arg0: i32) -> (i32, i32, i32, i32) {
    %c0_i32 = arith.constant 0 : i32
    %c0_i32_0 = arith.constant 0 : i32
    %c0_i32_1 = arith.constant 0 : i32
    %c0_i32_2 = arith.constant 0 : i32
    return %arg0, %c0_i32, %c0_i32_0, %c0_i32_1 : i32, i32, i32, i32
  }
  func.func @transform_1(%arg0: i32) -> (i32, i32) {
    %c0_i32 = arith.constant 0 : i32
    %c0_i32_0 = arith.constant 0 : i32
    %c0_i32_1 = arith.constant 0 : i32
    return %c0_i32, %c0_i32_0 : i32, i32
  }
  func.func @transform_2(%arg0: i32) -> (i32, i32) {
    %c0_i32 = arith.constant 0 : i32
    %c0_i32_0 = arith.constant 0 : i32
    %c0_i32_1 = arith.constant 0 : i32
    return %c0_i32, %c0_i32_0 : i32, i32
  }
  func.func @transform_3(%arg0: i32) -> (i32, i32) {
    %c0_i32 = arith.constant 0 : i32
    %c0_i32_0 = arith.constant 0 : i32
    %c0_i32_1 = arith.constant 0 : i32
    return %c0_i32, %c0_i32_0 : i32, i32
  }
  func.func @transform_4(%arg0: i32) -> (i32, i32) {
    %c0_i32 = arith.constant 0 : i32
    %c0_i32_0 = arith.constant 0 : i32
    %c0_i32_1 = arith.constant 0 : i32
    return %c0_i32, %c0_i32_0 : i32, i32
  }
  func.func @transform_5(%arg0: i32) -> (i32, i32) {
    %c0_i32 = arith.constant 0 : i32
    %c0_i32_0 = arith.constant 0 : i32
    %c0_i32_1 = arith.constant 0 : i32
    return %c0_i32, %c0_i32_0 : i32, i32
  }
  func.func @transform_6(%arg0: i32) -> (i32, i32) {
    %c0_i32 = arith.constant 0 : i32
    %c0_i32_0 = arith.constant 0 : i32
    %c0_i32_1 = arith.constant 0 : i32
    return %c0_i32, %c0_i32_0 : i32, i32
  }
  func.func @transform_7(%arg0: i32) -> (i32, i32, i32, i32) {
    %c0_i32 = arith.constant 0 : i32
    %c0_i32_0 = arith.constant 0 : i32
    %c0_i32_1 = arith.constant 0 : i32
    %c0_i32_2 = arith.constant 0 : i32
    return %arg0, %c0_i32, %c0_i32_0, %c0_i32_1 : i32, i32, i32, i32
  }
}

</mosaic_0001>

<llo_original>
// kernel: tpu_custom_call.1
$region0: #{tpu_custom_call.1}
  #allocation0 [shape = 'u32[]', space=smem, size = 0x4, offset = 0x4, fixed_abs, tag = 'smem constant byte address 0x4 - core index']
  #allocation1 [shape = 'u32[72,128]{1,0:T(1,128)}', space=vmem, size = 0x9000, scoped, tag = 'internal scratch']
  #allocation2 [shape = 'f32[18,24,4]{2,1,0:T(8,128)}', space=vmem, size = 0x36000, scoped, tag = 'scratch operand']
  #allocation3 [shape = 'bf16[256,36]{1,0:T(8,128)(2,1)}', space=vmem, size = 0x10000, scoped, tag = 'scratch operand']
  %s0 = inlined_call_operand.hbm [shape: f32[2,16,16,16], index: 0, kind: input, shape index: {}]
  %s1 = inlined_call_operand.vmem [shape: bf16[16,4], index: 1, kind: input, shape index: {}]
  %s2 = inlined_call_operand.vmem [shape: f32[1,4], index: 2, kind: input, shape index: {}]
  %s3 = inlined_call_operand.vmem [shape: bf16[36,4], index: 3, kind: input, shape index: {}]
  %s4 = inlined_call_operand.vmem [shape: f32[1,4], index: 4, kind: input, shape index: {}]
  %s5 = inlined_call_operand.vmem [shape: bf16[4,16], index: 5, kind: input, shape index: {}]
  %s6 = inlined_call_operand.vmem [shape: f32[1,16], index: 6, kind: input, shape index: {}]
  %s7 = inlined_call_operand.hbm [shape: f32[2,16,16,16], index: 7, kind: output, shape index: {}]
  %s8 = sld [smem:[#allocation0]]
  $region65: #{tpu_custom_call.1} parent=0
    _
  %s10 = ssub.s32 1, %s8
  %s11 = scalar_select 0, %s10, %s8
  $region1: #{tpu_custom_call.1} parent=0
    #allocation4 [shape = 'u8[262144]{0}', space=vmem, size = 0x40000, scoped, tag = 'input window, operand 0']
    #allocation5 [shape = 's32[2]{0}', space=sflag, size = 0x8, scoped, tag = 'scoped memory for tpu_custom_call.1']
    #allocation6 [shape = 's32[2]{0}', space=sflag, size = 0x8, scoped, tag = 'scoped memory for tpu_custom_call.1']
    #allocation7 [shape = 'u8[262144]{0}', space=vmem, size = 0x40000, scoped, tag = 'output window, operand 0']
    %12 = vsyncpa [#allocation5], 0
    %s13 = scalar_lea.sflag [#allocation5], 1
    %14 = vsyncpa %s13, 0
    %15 = vsyncpa [#allocation6], 0
    %s16 = scalar_lea.sflag [#allocation6], 1
    %17 = vsyncpa %s16, 0
    loop: start=0, step=1, limit=4
    $region2: #{tpu_custom_call.1} parent=1 // loop_pre_header
      _
    $region3: #{tpu_custom_call.1} parent=1 // loop_header
      %s19 = sphi 0, %s23
      %p20 = scmp.ge.s32.totalorder %s19, 4
      %s29 = sphi 0, %s31
      %s32 = sphi 0, %s29
      %s33 = sphi 0, %s32
      %s49 = sphi 0, %s33
      %s53 = sphi 0, %s53
      %s55 = sphi 0, %s53
      %s56 = sphi 0, %s55
      %s70 = sphi 0, %s56
      %s74 = sphi 0, %s74
      %s76 = sphi 0, %s74
      %s77 = sphi 0, %s76
      %s91 = sphi 0, %s77
      %s95 = sphi 0, %s95
      %s97 = sphi 0, %s95
      %s98 = sphi 0, %s97
      %s112 = sphi 0, %s98
      %s116 = sphi 0, %s116
      %s118 = sphi 0, %s116
      %s119 = sphi 0, %s118
      %s133 = sphi 0, %s119
      %s137 = sphi 0, %s137
      %s139 = sphi 0, %s137
      %s140 = sphi 0, %s139
      %s154 = sphi 0, %s140
      %s158 = sphi 0, %s158
      %s160 = sphi 0, %s158
      %s161 = sphi 0, %s160
      %s175 = sphi 0, %s161
      %s181 = sphi 0, %s183
      %s184 = sphi 0, %s181
      %s185 = sphi 0, %s184
      %s201 = sphi 0, %s185
    $region4: #{tpu_custom_call.1} parent=1 // loop_header_branch
      %22 = sbr.rel (%p20) target = $region8
    $region5: #{tpu_custom_call.1} parent=1 // loop_body
      %s24 = ssub.s32 %s19, 1
      %s25 = ssub.s32 %s19, 2
      %s26 = sadd.s32 %s19, 1
      %s27 = ssub.s32 %s19, %s26
      %p28 = scmp.eq.s32.totalorder %s27, 0
      %s30 = sadd.s32 %s29, 1
      %s31 = scalar_select %p28, %s29, %s30
      %p34 = pneg %p28
      %p35 = scmp.eq.s32.totalorder %s19, 1
      %p36 = por %p34, %p35
      %p37 = scmp.ne.s32.totalorder %s29, %s32
      %p38 = scmp.eq.s32.totalorder %s19, 0
      %p39 = por %p37, %p38
      %p40 = scmp.ne.s32.totalorder %s29, %s32
      %p41 = scmp.eq.s32.totalorder %s24, 1
      %p42 = por %p40, %p41
      %p43 = scmp.ne.s32.totalorder %s32, %s33
      %p44 = scmp.eq.s32.totalorder %s24, 0
      %p45 = por %p43, %p44
      %p46 = scmp.ne.s32.totalorder %s32, %s33
      %p47 = scmp.eq.s32.totalorder %s25, 1
      %p48 = por %p46, %p47
      %p50 = scmp.ne.s32.totalorder %s33, %s49
      %p51 = scmp.eq.s32.totalorder %s25, 0
      %p52 = por %p50, %p51
      %s54 = sadd.s32 %s53, 1
      %p57 = scmp.eq.s32.totalorder %s19, 1
      %p58 = scmp.ne.s32.totalorder %s53, %s55
      %p59 = scmp.eq.s32.totalorder %s19, 0
      %p60 = por %p58, %p59
      %p61 = scmp.ne.s32.totalorder %s53, %s55
      %p62 = scmp.eq.s32.totalorder %s24, 1
      %p63 = por %p61, %p62
      %p64 = scmp.ne.s32.totalorder %s55, %s56
      %p65 = scmp.eq.s32.totalorder %s24, 0
      %p66 = por %p64, %p65
      %p67 = scmp.ne.s32.totalorder %s55, %s56
      %p68 = scmp.eq.s32.totalorder %s25, 1
      %p69 = por %p67, %p68
      %p71 = scmp.ne.s32.totalorder %s56, %s70
      %p72 = scmp.eq.s32.totalorder %s25, 0
      %p73 = por %p71, %p72
      %s75 = sadd.s32 %s74, 1
      %p78 = scmp.eq.s32.totalorder %s19, 1
      %p79 = scmp.ne.s32.totalorder %s74, %s76
      %p80 = scmp.eq.s32.totalorder %s19, 0
      %p81 = por %p79, %p80
      %p82 = scmp.ne.s32.totalorder %s74, %s76
      %p83 = scmp.eq.s32.totalorder %s24, 1
      %p84 = por %p82, %p83
      %p85 = scmp.ne.s32.totalorder %s76, %s77
      %p86 = scmp.eq.s32.totalorder %s24, 0
      %p87 = por %p85, %p86
      %p88 = scmp.ne.s32.totalorder %s76, %s77
      %p89 = scmp.eq.s32.totalorder %s25, 1
      %p90 = por %p88, %p89
      %p92 = scmp.ne.s32.totalorder %s77, %s91
      %p93 = scmp.eq.s32.totalorder %s25, 0
      %p94 = por %p92, %p93
      %s96 = sadd.s32 %s95, 1
      %p99 = scmp.eq.s32.totalorder %s19, 1
      %p100 = scmp.ne.s32.totalorder %s95, %s97
      %p101 = scmp.eq.s32.totalorder %s19, 0
      %p102 = por %p100, %p101
      %p103 = scmp.ne.s32.totalorder %s95, %s97
      %p104 = scmp.eq.s32.totalorder %s24, 1
      %p105 = por %p103, %p104
      %p106 = scmp.ne.s32.totalorder %s97, %s98
      %p107 = scmp.eq.s32.totalorder %s24, 0
      %p108 = por %p106, %p107
      %p109 = scmp.ne.s32.totalorder %s97, %s98
      %p110 = scmp.eq.s32.totalorder %s25, 1
      %p111 = por %p109, %p110
      %p113 = scmp.ne.s32.totalorder %s98, %s112
      %p114 = scmp.eq.s32.totalorder %s25, 0
      %p115 = por %p113, %p114
      %s117 = sadd.s32 %s116, 1
      %p120 = scmp.eq.s32.totalorder %s19, 1
      %p121 = scmp.ne.s32.totalorder %s116, %s118
      %p122 = scmp.eq.s32.totalorder %s19, 0
      %p123 = por %p121, %p122
      %p124 = scmp.ne.s32.totalorder %s116, %s118
      %p125 = scmp.eq.s32.totalorder %s24, 1
      %p126 = por %p124, %p125
      %p127 = scmp.ne.s32.totalorder %s118, %s119
      %p128 = scmp.eq.s32.totalorder %s24, 0
      %p129 = por %p127, %p128
      %p130 = scmp.ne.s32.totalorder %s118, %s119
      %p131 = scmp.eq.s32.totalorder %s25, 1
      %p132 = por %p130, %p131
      %p134 = scmp.ne.s32.totalorder %s119, %s133
      %p135 = scmp.eq.s32.totalorder %s25, 0
      %p136 = por %p134, %p135
      %s138 = sadd.s32 %s137, 1
      %p141 = scmp.eq.s32.totalorder %s19, 1
      %p142 = scmp.ne.s32.totalorder %s137, %s139
      %p143 = scmp.eq.s32.totalorder %s19, 0
      %p144 = por %p142, %p143
      %p145 = scmp.ne.s32.totalorder %s137, %s139
      %p146 = scmp.eq.s32.totalorder %s24, 1
      %p147 = por %p145, %p146
      %p148 = scmp.ne.s32.totalorder %s139, %s140
      %p149 = scmp.eq.s32.totalorder %s24, 0
      %p150 = por %p148, %p149
      %p151 = scmp.ne.s32.totalorder %s139, %s140
      %p152 = scmp.eq.s32.totalorder %s25, 1
      %p153 = por %p151, %p152
      %p155 = scmp.ne.s32.totalorder %s140, %s154
      %p156 = scmp.eq.s32.totalorder %s25, 0
      %p157 = por %p155, %p156
      %s159 = sadd.s32 %s158, 1
      %p162 = scmp.eq.s32.totalorder %s19, 1
      %p163 = scmp.ne.s32.totalorder %s158, %s160
      %p164 = scmp.eq.s32.totalorder %s19, 0
      %p165 = por %p163, %p164
      %p166 = scmp.ne.s32.totalorder %s158, %s160
      %p167 = scmp.eq.s32.totalorder %s24, 1
      %p168 = por %p166, %p167
      %p169 = scmp.ne.s32.totalorder %s160, %s161
      %p170 = scmp.eq.s32.totalorder %s24, 0
      %p171 = por %p169, %p170
      %p172 = scmp.ne.s32.totalorder %s160, %s161
      %p173 = scmp.eq.s32.totalorder %s25, 1
      %p174 = por %p172, %p173
      %p176 = scmp.ne.s32.totalorder %s161, %s175
      %p177 = scmp.eq.s32.totalorder %s25, 0
      %p178 = por %p176, %p177
      %s179 = ssub.s32 %s19, %s26
      %p180 = scmp.eq.s32.totalorder %s179, 0
      %s182 = sadd.s32 %s181, 1
      %s183 = scalar_select %p180, %s181, %s182
      %p186 = pneg %p180
      %p187 = scmp.eq.s32.totalorder %s19, 1
      %p188 = por %p186, %p187
      %p189 = scmp.ne.s32.totalorder %s181, %s184
      %p190 = scmp.eq.s32.totalorder %s19, 0
      %p191 = por %p189, %p190
      %p192 = scmp.ne.s32.totalorder %s181, %s184
      %p193 = scmp.eq.s32.totalorder %s24, 1
      %p194 = por %p192, %p193
      %p195 = scmp.ne.s32.totalorder %s184, %s185
      %p196 = scmp.eq.s32.totalorder %s24, 0
      %p197 = por %p195, %p196
      %p198 = scmp.ne.s32.totalorder %s184, %s185
      %p199 = scmp.eq.s32.totalorder %s25, 1
      %p200 = por %p198, %p199
      %p202 = scmp.ne.s32.totalorder %s185, %s201
      %p203 = scmp.eq.s32.totalorder %s25, 0
      %p204 = por %p202, %p203
      %p205 = scmp.le.s32.totalorder 1, %s19
      %p206 = scmp.lt.s32.totalorder %s19, 3
      %p207 = pnand %p205, %p206
      %p208 = pneg %p207
      // Predicated region
      $region9: #{tpu_custom_call.1} parent=5 // pred_check
        _
      $region10: #{tpu_custom_call.1} parent=5 // pred_check_branch
        %210 = sbr.rel (%p207) target = $region12
      $region11: #{tpu_custom_call.1} parent=5 // pred_region
        %s211 = ssub.s32 %s19, 1
        // Predicated region
        $region13: #{tpu_custom_call.1} parent=11 // pred_check
          %p212 = pneg %p66
        $region14: #{tpu_custom_call.1} parent=11 // pred_check_branch
          %214 = sbr.rel (%p212) target = $region16
        $region15: #{tpu_custom_call.1} parent=11 // pred_region
          _
        $region16: #{tpu_custom_call.1} parent=11 // pred_fallthru
          _
        // Predicated region
        $region17: #{tpu_custom_call.1} parent=11 // pred_check
          %p215 = pneg %p87
        $region18: #{tpu_custom_call.1} parent=11 // pred_check_branch
          %217 = sbr.rel (%p215) target = $region20
        $region19: #{tpu_custom_call.1} parent=11 // pred_region
          _
        $region20: #{tpu_custom_call.1} parent=11 // pred_fallthru
          _
        // Predicated region
        $region21: #{tpu_custom_call.1} parent=11 // pred_check
          %p218 = pneg %p108
        $region22: #{tpu_custom_call.1} parent=11 // pred_check_branch
          %220 = sbr.rel (%p218) target = $region24
        $region23: #{tpu_custom_call.1} parent=11 // pred_region
          _
        $region24: #{tpu_custom_call.1} parent=11 // pred_fallthru
          _
        // Predicated region
        $region25: #{tpu_custom_call.1} parent=11 // pred_check
          %p221 = pneg %p129
        $region26: #{tpu_custom_call.1} parent=11 // pred_check_branch
          %223 = sbr.rel (%p221) target = $region28
        $region27: #{tpu_custom_call.1} parent=11 // pred_region
          _
        $region28: #{tpu_custom_call.1} parent=11 // pred_fallthru
          _
        // Predicated region
        $region29: #{tpu_custom_call.1} parent=11 // pred_check
          %p224 = pneg %p150
        $region30: #{tpu_custom_call.1} parent=11 // pred_check_branch
          %226 = sbr.rel (%p224) target = $region32
        $region31: #{tpu_custom_call.1} parent=11 // pred_region
          _
        $region32: #{tpu_custom_call.1} parent=11 // pred_fallthru
          _
        // Predicated region
        $region33: #{tpu_custom_call.1} parent=11 // pred_check
          %p227 = pneg %p171
        $region34: #{tpu_custom_call.1} parent=11 // pred_check_branch
          %229 = sbr.rel (%p227) target = $region36
        $region35: #{tpu_custom_call.1} parent=11 // pred_region
          _
        $region36: #{tpu_custom_call.1} parent=11 // pred_fallthru
          _
      $region12: #{tpu_custom_call.1} parent=5 // pred_fallthru
        _
      %p230 = scmp.lt.s32.totalorder %s19, 2
      // Predicated region
      $region37: #{tpu_custom_call.1} parent=5 // pred_check
        %p231 = pneg %p230
      $region38: #{tpu_custom_call.1} parent=5 // pred_check_branch
        %233 = sbr.rel (%p231) target = $region40
      $region39: #{tpu_custom_call.1} parent=5 // pred_region
        // Predicated region
        $region41: #{tpu_custom_call.1} parent=39 // pred_check
          %p234 = pneg %p39
        $region42: #{tpu_custom_call.1} parent=39 // pred_check_branch
          %236 = sbr.rel (%p234) target = $region44
        $region43: #{tpu_custom_call.1} parent=39 // pred_region
          %s237 = sand.u32 %s29, 1
          %s238 = scalar_lea.sflag [#allocation5], %s237
          %s239 = sand.u32 %s29, 1
          %s240 = smul.addr %s239, 256
          %s241 = scalar_lea.vmem [#allocation4], %s240
          %243 = vsyncadd %s238, 0
          %s244 = smul.addr %s19, 32
          %s245 = smul.addr %s244, 8
          %s246 = scalar_lea.hbm %s0, %s245
          %s247 = sshll.u32 %s246, 4
          %s248 = int_to_ptr.hbm [resolvable:$true] %s247
          %s249 = sshll.u32 %s241, 4
          %s250 = int_to_ptr.vmem [resolvable:$true] %s249
          %255 = dma.hbm_to_vmem [thread:$0]  %s248, 4096, %s250, %s238, 128, 128, 8
        $region44: #{tpu_custom_call.1} parent=39 // pred_fallthru
          _
      $region40: #{tpu_custom_call.1} parent=5 // pred_fallthru
        _
      %p256 = scmp.le.s32.totalorder 1, %s19
      %p257 = scmp.lt.s32.totalorder %s19, 3
      %p258 = pnand %p256, %p257
      %p259 = pneg %p258
      // Predicated region
      $region45: #{tpu_custom_call.1} parent=5 // pred_check
        _
      $region46: #{tpu_custom_call.1} parent=5 // pred_check_branch
        %261 = sbr.rel (%p258) target = $region48
      $region47: #{tpu_custom_call.1} parent=5 // pred_region
        %s262 = ssub.s32 %s19, 1
        %s263 = sand.u32 %s32, 1
        %s264 = scalar_lea.sflag [#allocation5], %s263
        %s265 = sand.u32 %s32, 1
        %s266 = smul.addr %s265, 256
        %s267 = scalar_lea.vmem [#allocation4], %s266
        // Predicated region
        $region49: #{tpu_custom_call.1} parent=47 // pred_check
          %p268 = pneg %p45
        $region50: #{tpu_custom_call.1} parent=47 // pred_check_branch
          %270 = sbr.rel (%p268) target = $region52
        $region51: #{tpu_custom_call.1} parent=47 // pred_region
          %272 = dma.done %s264, 4096
        $region52: #{tpu_custom_call.1} parent=47 // pred_fallthru
          _
        %s273 = sand.u32 %s32, 1
        %s274 = scalar_lea.sflag [#allocation5], %s273
        %s275 = sand.u32 %s32, 1
        %s276 = smul.addr %s275, 256
        %s277 = scalar_lea.vmem [#allocation4], %s276
        %p278 = pneg %p45
        %p279 = pneg %p42
        %p280 = pneg %p66
        %p281 = pneg %p63
        %p282 = pneg %p87
        %p283 = pneg %p84
        %p284 = pneg %p108
        %p285 = pneg %p105
        %p286 = pneg %p129
        %p287 = pneg %p126
        %p288 = pneg %p150
        %p289 = pneg %p147
        %p290 = pneg %p171
        %p291 = pneg %p168
        %p292 = pneg %p197
        %p293 = pneg %p194
        %s294 = sand.u32 %s184, 1
        %s295 = scalar_lea.sflag [#allocation6], %s294
        %s296 = sand.u32 %s184, 1
        %s297 = smul.addr %s296, 256
        %s298 = scalar_lea.vmem [#allocation7], %s297
        %v300 = vld [vmem:[%s267] sm:$0xff]
        %v301 = vld [vmem:[%s267 + $0x8] sm:$0xff]
        %v302 = vld [vmem:[%s267 + $0x10] sm:$0xff]
        %v303 = vld [vmem:[%s267 + $0x18] sm:$0xff]
        %v304 = vld [vmem:[%s267 + $0x20] sm:$0xff]
        %v305 = vld [vmem:[%s267 + $0x28] sm:$0xff]
        %v306 = vld [vmem:[%s267 + $0x30] sm:$0xff]
        %v307 = vld [vmem:[%s267 + $0x38] sm:$0xff]
        %v308 = vld [vmem:[%s267 + $0x40] sm:$0xff]
        %v309 = vld [vmem:[%s267 + $0x48] sm:$0xff]
        %v310 = vld [vmem:[%s267 + $0x50] sm:$0xff]
        %v311 = vld [vmem:[%s267 + $0x58] sm:$0xff]
        %v312 = vld [vmem:[%s267 + $0x60] sm:$0xff]
        %v313 = vld [vmem:[%s267 + $0x68] sm:$0xff]
        %v314 = vld [vmem:[%s267 + $0x70] sm:$0xff]
        %v315 = vld [vmem:[%s267 + $0x78] sm:$0xff]
        %v316 = vld [vmem:[%s267 + $0x80] sm:$0xff]
        %v317 = vld [vmem:[%s267 + $0x88] sm:$0xff]
        %v318 = vld [vmem:[%s267 + $0x90] sm:$0xff]
        %v319 = vld [vmem:[%s267 + $0x98] sm:$0xff]
        %v320 = vld [vmem:[%s267 + $0xa0] sm:$0xff]
        %v321 = vld [vmem:[%s267 + $0xa8] sm:$0xff]
        %v322 = vld [vmem:[%s267 + $0xb0] sm:$0xff]
        %v323 = vld [vmem:[%s267 + $0xb8] sm:$0xff]
        %v324 = vld [vmem:[%s267 + $0xc0] sm:$0xff]
        %v325 = vld [vmem:[%s267 + $0xc8] sm:$0xff]
        %v326 = vld [vmem:[%s267 + $0xd0] sm:$0xff]
        %v327 = vld [vmem:[%s267 + $0xd8] sm:$0xff]
        %v328 = vld [vmem:[%s267 + $0xe0] sm:$0xff]
        %v329 = vld [vmem:[%s267 + $0xe8] sm:$0xff]
        %v330 = vld [vmem:[%s267 + $0xf0] sm:$0xff]
        %v331 = vld [vmem:[%s267 + $0xf8] sm:$0xff]
        %v332 = vpack.c.bf16 %v301, %v300
        %v333 = vpack.c.bf16 %v303, %v302
        %v334 = vpack.c.bf16 %v305, %v304
        %v335 = vpack.c.bf16 %v307, %v306
        %v336 = vpack.c.bf16 %v309, %v308
        %v337 = vpack.c.bf16 %v311, %v310
        %v338 = vpack.c.bf16 %v313, %v312
        %v339 = vpack.c.bf16 %v315, %v314
        %v340 = vpack.c.bf16 %v317, %v316
        %v341 = vpack.c.bf16 %v319, %v318
        %v342 = vpack.c.bf16 %v321, %v320
        %v343 = vpack.c.bf16 %v323, %v322
        %v344 = vpack.c.bf16 %v325, %v324
        %v345 = vpack.c.bf16 %v327, %v326
        %v346 = vpack.c.bf16 %v329, %v328
        %v347 = vpack.c.bf16 %v331, %v330
        %v348 = vld [vmem:[%s1] sm:$0xf]
        %v349 = vld [vmem:[%s1 + $0x4] sm:$0xf]
        %v350 = vld [vmem:[%s2] sm:$0x1]
        %v352 = vperm.slane %v350, 0
        %v356 = vunpack.c.l.b16 %v348
        %v357 = vunpack.c.l.b16 %v349
        %v358 = vpack.c.b16 %v357, %v356
        %vm360 = vcmask 130048
        %v362 = vsel %vm360, %v332, 0
        %v365 = vsel %vm360, %v333, 0
        %v368 = vsel %vm360, %v334, 0
        %v371 = vsel %vm360, %v335, 0
        %v374 = vsel %vm360, %v336, 0
        %v377 = vsel %vm360, %v337, 0
        %v380 = vsel %vm360, %v338, 0
        %v383 = vsel %vm360, %v339, 0
        %v386 = vsel %vm360, %v340, 0
        %v389 = vsel %vm360, %v341, 0
        %v392 = vsel %vm360, %v342, 0
        %v395 = vsel %vm360, %v343, 0
        %v398 = vsel %vm360, %v344, 0
        %v401 = vsel %vm360, %v345, 0
        %v404 = vsel %vm360, %v346, 0
        %v407 = vsel %vm360, %v347, 0
        %409 = vmatpush.bf16.msra.mxu0 0
        %410 = vmatpush.bf16.msra.mxu0 0
        %411 = vmatpush.bf16.msra.mxu0 0
        %412 = vmatpush.bf16.msra.mxu0 0
        %413 = vmatpush.bf16.msra.mxu0 0
        %414 = vmatpush.bf16.msra.mxu0 0
        %415 = vmatpush.bf16.msra.mxu0 0
        %416 = vmatpush.bf16.msra.mxu0 %v358
        %417 = vmatmul.bf16.gmra.mxu0 %v362
        %v418 = vpop.f32.mrf.mxu0
        %v419 = vadd.f32 %v352, %v418
        %v420 = vpop.f32.mrf.mxu0
        %v421 = vadd.f32 %v352, %v420
        %422 = vmatmul.bf16.gmra.mxu0 %v365
        %v423 = vpop.f32.mrf.mxu0
        %v424 = vadd.f32 %v352, %v423
        %v425 = vpop.f32.mrf.mxu0
        %v426 = vadd.f32 %v352, %v425
        %427 = vmatmul.bf16.gmra.mxu0 %v368
        %v428 = vpop.f32.mrf.mxu0
        %v429 = vadd.f32 %v352, %v428
        %v430 = vpop.f32.mrf.mxu0
        %v431 = vadd.f32 %v352, %v430
        %432 = vmatmul.bf16.gmra.mxu0 %v371
        %v433 = vpop.f32.mrf.mxu0
        %v434 = vadd.f32 %v352, %v433
        %v435 = vpop.f32.mrf.mxu0
        %v436 = vadd.f32 %v352, %v435
        %437 = vmatmul.bf16.gmra.mxu0 %v374
        %v438 = vpop.f32.mrf.mxu0
        %v439 = vadd.f32 %v352, %v438
        %v440 = vpop.f32.mrf.mxu0
        %v441 = vadd.f32 %v352, %v440
        %442 = vmatmul.bf16.gmra.mxu0 %v377
        %v443 = vpop.f32.mrf.mxu0
        %v444 = vadd.f32 %v352, %v443
        %v445 = vpop.f32.mrf.mxu0
        %v446 = vadd.f32 %v352, %v445
        %447 = vmatmul.bf16.gmra.mxu0 %v380
        %v448 = vpop.f32.mrf.mxu0
        %v449 = vadd.f32 %v352, %v448
        %v450 = vpop.f32.mrf.mxu0
        %v451 = vadd.f32 %v352, %v450
        %452 = vmatmul.bf16.gmra.mxu0 %v383
        %v453 = vpop.f32.mrf.mxu0
        %v454 = vadd.f32 %v352, %v453
        %v455 = vpop.f32.mrf.mxu0
        %v456 = vadd.f32 %v352, %v455
        %457 = vmatmul.bf16.gmra.mxu0 %v386
        %v458 = vpop.f32.mrf.mxu0
        %v459 = vadd.f32 %v352, %v458
        %v460 = vpop.f32.mrf.mxu0
        %v461 = vadd.f32 %v352, %v460
        %462 = vmatmul.bf16.gmra.mxu0 %v389
        %v463 = vpop.f32.mrf.mxu0
        %v464 = vadd.f32 %v352, %v463
        %v465 = vpop.f32.mrf.mxu0
        %v466 = vadd.f32 %v352, %v465
        %467 = vmatmul.bf16.gmra.mxu0 %v392
        %v468 = vpop.f32.mrf.mxu0
        %v469 = vadd.f32 %v352, %v468
        %v470 = vpop.f32.mrf.mxu0
        %v471 = vadd.f32 %v352, %v470
        %472 = vmatmul.bf16.gmra.mxu0 %v395
        %v473 = vpop.f32.mrf.mxu0
        %v474 = vadd.f32 %v352, %v473
        %v475 = vpop.f32.mrf.mxu0
        %v476 = vadd.f32 %v352, %v475
        %477 = vmatmul.bf16.gmra.mxu0 %v398
        %v478 = vpop.f32.mrf.mxu0
        %v479 = vadd.f32 %v352, %v478
        %v480 = vpop.f32.mrf.mxu0
        %v481 = vadd.f32 %v352, %v480
        %482 = vmatmul.bf16.gmra.mxu0 %v401
        %v483 = vpop.f32.mrf.mxu0
        %v484 = vadd.f32 %v352, %v483
        %v485 = vpop.f32.mrf.mxu0
        %v486 = vadd.f32 %v352, %v485
        %487 = vmatmul.bf16.gmra.mxu0 %v404
        %v488 = vpop.f32.mrf.mxu0
        %v489 = vadd.f32 %v352, %v488
        %v490 = vpop.f32.mrf.mxu0
        %v491 = vadd.f32 %v352, %v490
        %492 = vmatmul.bf16.gmra.mxu0 %v407
        %v493 = vpop.f32.mrf.mxu0
        %v494 = vadd.f32 %v352, %v493
        %v495 = vpop.f32.mrf.mxu0
        %v496 = vadd.f32 %v352, %v495
        %497 = vdwg.mxu0
        %v498 = vmax.f32 %v419, 0.0
        %v499 = vmax.f32 %v421, 0.0
        %v500 = vmax.f32 %v424, 0.0
        %v501 = vmax.f32 %v426, 0.0
        %v502 = vmax.f32 %v429, 0.0
        %v503 = vmax.f32 %v431, 0.0
        %v504 = vmax.f32 %v434, 0.0
        %v505 = vmax.f32 %v436, 0.0
        %v506 = vmax.f32 %v439, 0.0
        %v507 = vmax.f32 %v441, 0.0
        %v508 = vmax.f32 %v444, 0.0
        %v509 = vmax.f32 %v446, 0.0
        %v510 = vmax.f32 %v449, 0.0
        %v511 = vmax.f32 %v451, 0.0
        %v512 = vmax.f32 %v454, 0.0
        %v513 = vmax.f32 %v456, 0.0
        %v514 = vmax.f32 %v459, 0.0
        %v515 = vmax.f32 %v461, 0.0
        %v516 = vmax.f32 %v464, 0.0
        %v517 = vmax.f32 %v466, 0.0
        %v518 = vmax.f32 %v469, 0.0
        %v519 = vmax.f32 %v471, 0.0
        %v520 = vmax.f32 %v474, 0.0
        %v521 = vmax.f32 %v476, 0.0
        %v522 = vmax.f32 %v479, 0.0
        %v523 = vmax.f32 %v481, 0.0
        %v524 = vmax.f32 %v484, 0.0
        %v525 = vmax.f32 %v486, 0.0
        %v526 = vmax.f32 %v489, 0.0
        %v527 = vmax.f32 %v491, 0.0
        %v528 = vmax.f32 %v494, 0.0
        %v529 = vmax.f32 %v496, 0.0
        %vm530 = vcmask 31744
        %531 = vst.msk [vmem:[#allocation2] sm:$0xff] %vm530, 0.0
        %532 = vst.msk [vmem:[#allocation2 + $0x8] sm:$0xff] %vm530, 0.0
        %533 = vst.msk [vmem:[#allocation2 + $0x10] sm:$0xff] %vm530, 0.0
        %s534 = scalar_lea.vmem [#allocation2], 408
        %535 = vst.msk [vmem:[%s534] sm:$0xff] %vm530, 0.0
        %536 = vst.msk [vmem:[%s534 + $0x8] sm:$0xff] %vm530, 0.0
        %537 = vst.msk [vmem:[%s534 + $0x10] sm:$0xff] %vm530, 0.0
        %s538 = scalar_lea.vmem [#allocation2], 24
        %vm539 = vcmask 24576
        %540 = vst.msk [vmem:[%s538] sm:$0x1] %vm539, 0.0
        %541 = vst.msk [vmem:[%s538 + $0x18] sm:$0x1] %vm539, 0.0
        %542 = vst.msk [vmem:[%s538 + $0x30] sm:$0x1] %vm539, 0.0
        %543 = vst.msk [vmem:[%s538 + $0x48] sm:$0x1] %vm539, 0.0
        %544 = vst.msk [vmem:[%s538 + $0x60] sm:$0x1] %vm539, 0.0
        %545 = vst.msk [vmem:[%s538 + $0x78] sm:$0x1] %vm539, 0.0
        %546 = vst.msk [vmem:[%s538 + $0x90] sm:$0x1] %vm539, 0.0
        %547 = vst.msk [vmem:[%s538 + $0xa8] sm:$0x1] %vm539, 0.0
        %548 = vst.msk [vmem:[%s538 + $0xc0] sm:$0x1] %vm539, 0.0
        %549 = vst.msk [vmem:[%s538 + $0xd8] sm:$0x1] %vm539, 0.0
        %550 = vst.msk [vmem:[%s538 + $0xf0] sm:$0x1] %vm539, 0.0
        %551 = vst.msk [vmem:[%s538 + $0x108] sm:$0x1] %vm539, 0.0
        %552 = vst.msk [vmem:[%s538 + $0x120] sm:$0x1] %vm539, 0.0
        %553 = vst.msk [vmem:[%s538 + $0x138] sm:$0x1] %vm539, 0.0
        %554 = vst.msk [vmem:[%s538 + $0x150] sm:$0x1] %vm539, 0.0
        %555 = vst.msk [vmem:[%s538 + $0x168] sm:$0x1] %vm539, 0.0
        %556 = vst.msk [vmem:[%s538 + $0x11] sm:$0x1] %vm539, 0.0
        %557 = vst.msk [vmem:[%s538 + $0x29] sm:$0x1] %vm539, 0.0
        %558 = vst.msk [vmem:[%s538 + $0x41] sm:$0x1] %vm539, 0.0
        %559 = vst.msk [vmem:[%s538 + $0x59] sm:$0x1] %vm539, 0.0
        %560 = vst.msk [vmem:[%s538 + $0x71] sm:$0x1] %vm539, 0.0
        %561 = vst.msk [vmem:[%s538 + $0x89] sm:$0x1] %vm539, 0.0
        %562 = vst.msk [vmem:[%s538 + $0xa1] sm:$0x1] %vm539, 0.0
        %563 = vst.msk [vmem:[%s538 + $0xb9] sm:$0x1] %vm539, 0.0
        %564 = vst.msk [vmem:[%s538 + $0xd1] sm:$0x1] %vm539, 0.0
        %565 = vst.msk [vmem:[%s538 + $0xe9] sm:$0x1] %vm539, 0.0
        %566 = vst.msk [vmem:[%s538 + $0x101] sm:$0x1] %vm539, 0.0
        %567 = vst.msk [vmem:[%s538 + $0x119] sm:$0x1] %vm539, 0.0
        %568 = vst.msk [vmem:[%s538 + $0x131] sm:$0x1] %vm539, 0.0
        %569 = vst.msk [vmem:[%s538 + $0x149] sm:$0x1] %vm539, 0.0
        %570 = vst.msk [vmem:[%s538 + $0x161] sm:$0x1] %vm539, 0.0
        %571 = vst.msk [vmem:[%s538 + $0x179] sm:$0x1] %vm539, 0.0
        %572 = vst.msk [vmem:[%s538 + $0x1] sm:$0xff] %vm530, %v498
        %573 = vst.msk [vmem:[%s538 + $0x9] sm:$0xff] %vm530, %v499
        %574 = vst.msk [vmem:[%s538 + $0x19] sm:$0xff] %vm530, %v500
        %575 = vst.msk [vmem:[%s538 + $0x21] sm:$0xff] %vm530, %v501
        %576 = vst.msk [vmem:[%s538 + $0x31] sm:$0xff] %vm530, %v502
        %577 = vst.msk [vmem:[%s538 + $0x39] sm:$0xff] %vm530, %v503
        %578 = vst.msk [vmem:[%s538 + $0x49] sm:$0xff] %vm530, %v504
        %579 = vst.msk [vmem:[%s538 + $0x51] sm:$0xff] %vm530, %v505
        %580 = vst.msk [vmem:[%s538 + $0x61] sm:$0xff] %vm530, %v506
        %581 = vst.msk [vmem:[%s538 + $0x69] sm:$0xff] %vm530, %v507
        %582 = vst.msk [vmem:[%s538 + $0x79] sm:$0xff] %vm530, %v508
        %583 = vst.msk [vmem:[%s538 + $0x81] sm:$0xff] %vm530, %v509
        %584 = vst.msk [vmem:[%s538 + $0x91] sm:$0xff] %vm530, %v510
        %585 = vst.msk [vmem:[%s538 + $0x99] sm:$0xff] %vm530, %v511
        %586 = vst.msk [vmem:[%s538 + $0xa9] sm:$0xff] %vm530, %v512
        %587 = vst.msk [vmem:[%s538 + $0xb1] sm:$0xff] %vm530, %v513
        %588 = vst.msk [vmem:[%s538 + $0xc1] sm:$0xff] %vm530, %v514
        %589 = vst.msk [vmem:[%s538 + $0xc9] sm:$0xff] %vm530, %v515
        %590 = vst.msk [vmem:[%s538 + $0xd9] sm:$0xff] %vm530, %v516
        %591 = vst.msk [vmem:[%s538 + $0xe1] sm:$0xff] %vm530, %v517
        %592 = vst.msk [vmem:[%s538 + $0xf1] sm:$0xff] %vm530, %v518
        %593 = vst.msk [vmem:[%s538 + $0xf9] sm:$0xff] %vm530, %v519
        %594 = vst.msk [vmem:[%s538 + $0x109] sm:$0xff] %vm530, %v520
        %595 = vst.msk [vmem:[%s538 + $0x111] sm:$0xff] %vm530, %v521
        %596 = vst.msk [vmem:[%s538 + $0x121] sm:$0xff] %vm530, %v522
        %597 = vst.msk [vmem:[%s538 + $0x129] sm:$0xff] %vm530, %v523
        %598 = vst.msk [vmem:[%s538 + $0x139] sm:$0xff] %vm530, %v524
        %599 = vst.msk [vmem:[%s538 + $0x141] sm:$0xff] %vm530, %v525
        %600 = vst.msk [vmem:[%s538 + $0x151] sm:$0xff] %vm530, %v526
        %601 = vst.msk [vmem:[%s538 + $0x159] sm:$0xff] %vm530, %v527
        %602 = vst.msk [vmem:[%s538 + $0x169] sm:$0xff] %vm530, %v528
        %603 = vst.msk [vmem:[%s538 + $0x171] sm:$0xff] %vm530, %v529
        %v604 = vld [vmem:[#allocation2] sm:$0xff]
        %v605 = vld [vmem:[#allocation2 + $0x8] sm:$0xff]
        %v606 = vld [vmem:[#allocation2 + $0x18] sm:$0xff]
        %v607 = vld [vmem:[#allocation2 + $0x20] sm:$0xff]
        %v608 = vld [vmem:[#allocation2 + $0x30] sm:$0xff]
        %v609 = vld [vmem:[#allocation2 + $0x38] sm:$0xff]
        %v610 = vld [vmem:[#allocation2 + $0x48] sm:$0xff]
        %v611 = vld [vmem:[#allocation2 + $0x50] sm:$0xff]
        %v612 = vld [vmem:[#allocation2 + $0x60] sm:$0xff]
        %v613 = vld [vmem:[#allocation2 + $0x68] sm:$0xff]
        %v614 = vld [vmem:[#allocation2 + $0x78] sm:$0xff]
        %v615 = vld [vmem:[#allocation2 + $0x80] sm:$0xff]
        %v616 = vld [vmem:[#allocation2 + $0x90] sm:$0xff]
        %v617 = vld [vmem:[#allocation2 + $0x98] sm:$0xff]
        %v618 = vld [vmem:[#allocation2 + $0xa8] sm:$0xff]
        %v619 = vld [vmem:[#allocation2 + $0xb0] sm:$0xff]
        %v620 = vld [vmem:[#allocation2 + $0xc0] sm:$0xff]
        %v621 = vld [vmem:[#allocation2 + $0xc8] sm:$0xff]
        %v622 = vld [vmem:[#allocation2 + $0xd8] sm:$0xff]
        %v623 = vld [vmem:[#allocation2 + $0xe0] sm:$0xff]
        %v624 = vld [vmem:[#allocation2 + $0xf0] sm:$0xff]
        %v625 = vld [vmem:[#allocation2 + $0xf8] sm:$0xff]
        %v626 = vld [vmem:[#allocation2 + $0x108] sm:$0xff]
        %v627 = vld [vmem:[#allocation2 + $0x110] sm:$0xff]
        %v628 = vld [vmem:[#allocation2 + $0x120] sm:$0xff]
        %v629 = vld [vmem:[#allocation2 + $0x128] sm:$0xff]
        %v630 = vld [vmem:[#allocation2 + $0x138] sm:$0xff]
        %v631 = vld [vmem:[#allocation2 + $0x140] sm:$0xff]
        %v632 = vld [vmem:[#allocation2 + $0x150] sm:$0xff]
        %v633 = vld [vmem:[#allocation2 + $0x158] sm:$0xff]
        %v634 = vld [vmem:[#allocation2 + $0x168] sm:$0xff]
        %v635 = vld [vmem:[#allocation2 + $0x170] sm:$0xff]
        %v636 = vpack.c.bf16 %v604, %v604
        %v637 = vpack.c.bf16 %v605, %v605
        %v638 = vpack.c.bf16 %v606, %v606
        %v639 = vpack.c.bf16 %v607, %v607
        %v640 = vpack.c.bf16 %v608, %v608
        %v641 = vpack.c.bf16 %v609, %v609
        %v642 = vpack.c.bf16 %v610, %v610
        %v643 = vpack.c.bf16 %v611, %v611
        %v644 = vpack.c.bf16 %v612, %v612
        %v645 = vpack.c.bf16 %v613, %v613
        %v646 = vpack.c.bf16 %v614, %v614
        %v647 = vpack.c.bf16 %v615, %v615
        %v648 = vpack.c.bf16 %v616, %v616
        %v649 = vpack.c.bf16 %v617, %v617
        %v650 = vpack.c.bf16 %v618, %v618
        %v651 = vpack.c.bf16 %v619, %v619
        %v652 = vpack.c.bf16 %v620, %v620
        %v653 = vpack.c.bf16 %v621, %v621
        %v654 = vpack.c.bf16 %v622, %v622
        %v655 = vpack.c.bf16 %v623, %v623
        %v656 = vpack.c.bf16 %v624, %v624
        %v657 = vpack.c.bf16 %v625, %v625
        %v658 = vpack.c.bf16 %v626, %v626
        %v659 = vpack.c.bf16 %v627, %v627
        %v660 = vpack.c.bf16 %v628, %v628
        %v661 = vpack.c.bf16 %v629, %v629
        %v662 = vpack.c.bf16 %v630, %v630
        %v663 = vpack.c.bf16 %v631, %v631
        %v664 = vpack.c.bf16 %v632, %v632
        %v665 = vpack.c.bf16 %v633, %v633
        %v666 = vpack.c.bf16 %v634, %v634
        %v667 = vpack.c.bf16 %v635, %v635
        %vm668 = vcmask 27648
        %669 = vst.msk [vmem:[#allocation3] sm:$0xf] %vm668, %v636
        %670 = vst.msk [vmem:[#allocation3 + $0x4] sm:$0xf] %vm668, %v637
        %671 = vst.msk [vmem:[#allocation3 + $0x8] sm:$0xf] %vm668, %v638
        %672 = vst.msk [vmem:[#allocation3 + $0xc] sm:$0xf] %vm668, %v639
        %673 = vst.msk [vmem:[#allocation3 + $0x10] sm:$0xf] %vm668, %v640
        %674 = vst.msk [vmem:[#allocation3 + $0x14] sm:$0xf] %vm668, %v641
        %675 = vst.msk [vmem:[#allocation3 + $0x18] sm:$0xf] %vm668, %v642
        %676 = vst.msk [vmem:[#allocation3 + $0x1c] sm:$0xf] %vm668, %v643
        %677 = vst.msk [vmem:[#allocation3 + $0x20] sm:$0xf] %vm668, %v644
        %678 = vst.msk [vmem:[#allocation3 + $0x24] sm:$0xf] %vm668, %v645
        %679 = vst.msk [vmem:[#allocation3 + $0x28] sm:$0xf] %vm668, %v646
        %680 = vst.msk [vmem:[#allocation3 + $0x2c] sm:$0xf] %vm668, %v647
        %681 = vst.msk [vmem:[#allocation3 + $0x30] sm:$0xf] %vm668, %v648
        %682 = vst.msk [vmem:[#allocation3 + $0x34] sm:$0xf] %vm668, %v649
        %683 = vst.msk [vmem:[#allocation3 + $0x38] sm:$0xf] %vm668, %v650
        %684 = vst.msk [vmem:[#allocation3 + $0x3c] sm:$0xf] %vm668, %v651
        %685 = vst.msk [vmem:[#allocation3 + $0x40] sm:$0xf] %vm668, %v652
        %686 = vst.msk [vmem:[#allocation3 + $0x44] sm:$0xf] %vm668, %v653
        %687 = vst.msk [vmem:[#allocation3 + $0x48] sm:$0xf] %vm668, %v654
        %688 = vst.msk [vmem:[#allocation3 + $0x4c] sm:$0xf] %vm668, %v655
        %689 = vst.msk [vmem:[#allocation3 + $0x50] sm:$0xf] %vm668, %v656
        %690 = vst.msk [vmem:[#allocation3 + $0x54] sm:$0xf] %vm668, %v657
        %691 = vst.msk [vmem:[#allocation3 + $0x58] sm:$0xf] %vm668, %v658
        %692 = vst.msk [vmem:[#allocation3 + $0x5c] sm:$0xf] %vm668, %v659
        %693 = vst.msk [vmem:[#allocation3 + $0x60] sm:$0xf] %vm668, %v660
        %694 = vst.msk [vmem:[#allocation3 + $0x64] sm:$0xf] %vm668, %v661
        %695 = vst.msk [vmem:[#allocation3 + $0x68] sm:$0xf] %vm668, %v662
        %696 = vst.msk [vmem:[#allocation3 + $0x6c] sm:$0xf] %vm668, %v663
        %697 = vst.msk [vmem:[#allocation3 + $0x70] sm:$0xf] %vm668, %v664
        %698 = vst.msk [vmem:[#allocation3 + $0x74] sm:$0xf] %vm668, %v665
        %699 = vst.msk [vmem:[#allocation3 + $0x78] sm:$0xf] %vm668, %v666
        %700 = vst.msk [vmem:[#allocation3 + $0x7c] sm:$0xf] %vm668, %v667
        %v701 = vld [vmem:[#allocation2 + $0x1] sm:$0xff]
        %v702 = vld [vmem:[#allocation2 + $0x9] sm:$0xff]
        %v703 = vld [vmem:[#allocation2 + $0x19] sm:$0xff]
        %v704 = vld [vmem:[#allocation2 + $0x21] sm:$0xff]
        %v705 = vld [vmem:[#allocation2 + $0x31] sm:$0xff]
        %v706 = vld [vmem:[#allocation2 + $0x39] sm:$0xff]
        %v707 = vld [vmem:[#allocation2 + $0x49] sm:$0xff]
        %v708 = vld [vmem:[#allocation2 + $0x51] sm:$0xff]
        %v709 = vld [vmem:[#allocation2 + $0x61] sm:$0xff]
        %v710 = vld [vmem:[#allocation2 + $0x69] sm:$0xff]
        %v711 = vld [vmem:[#allocation2 + $0x79] sm:$0xff]
        %v712 = vld [vmem:[#allocation2 + $0x81] sm:$0xff]
        %v713 = vld [vmem:[#allocation2 + $0x91] sm:$0xff]
        %v714 = vld [vmem:[#allocation2 + $0x99] sm:$0xff]
        %v715 = vld [vmem:[#allocation2 + $0xa9] sm:$0xff]
        %v716 = vld [vmem:[#allocation2 + $0xb1] sm:$0xff]
        %v717 = vld [vmem:[#allocation2 + $0xc1] sm:$0xff]
        %v718 = vld [vmem:[#allocation2 + $0xc9] sm:$0xff]
        %v719 = vld [vmem:[#allocation2 + $0xd9] sm:$0xff]
        %v720 = vld [vmem:[#allocation2 + $0xe1] sm:$0xff]
        %v721 = vld [vmem:[#allocation2 + $0xf1] sm:$0xff]
        %v722 = vld [vmem:[#allocation2 + $0xf9] sm:$0xff]
        %v723 = vld [vmem:[#allocation2 + $0x109] sm:$0xff]
        %v724 = vld [vmem:[#allocation2 + $0x111] sm:$0xff]
        %v725 = vld [vmem:[#allocation2 + $0x121] sm:$0xff]
        %v726 = vld [vmem:[#allocation2 + $0x129] sm:$0xff]
        %v727 = vld [vmem:[#allocation2 + $0x139] sm:$0xff]
        %v728 = vld [vmem:[#allocation2 + $0x141] sm:$0xff]
        %v729 = vld [vmem:[#allocation2 + $0x151] sm:$0xff]
        %v730 = vld [vmem:[#allocation2 + $0x159] sm:$0xff]
        %v731 = vld [vmem:[#allocation2 + $0x169] sm:$0xff]
        %v732 = vld [vmem:[#allocation2 + $0x171] sm:$0xff]
        %v733 = vpack.c.bf16 %v701, %v701
        %v734 = vpack.c.bf16 %v702, %v702
        %v735 = vpack.c.bf16 %v703, %v703
        %v736 = vpack.c.bf16 %v704, %v704
        %v737 = vpack.c.bf16 %v705, %v705
        %v738 = vpack.c.bf16 %v706, %v706
        %v739 = vpack.c.bf16 %v707, %v707
        %v740 = vpack.c.bf16 %v708, %v708
        %v741 = vpack.c.bf16 %v709, %v709
        %v742 = vpack.c.bf16 %v710, %v710
        %v743 = vpack.c.bf16 %v711, %v711
        %v744 = vpack.c.bf16 %v712, %v712
        %v745 = vpack.c.bf16 %v713, %v713
        %v746 = vpack.c.bf16 %v714, %v714
        %v747 = vpack.c.bf16 %v715, %v715
        %v748 = vpack.c.bf16 %v716, %v716
        %v749 = vpack.c.bf16 %v717, %v717
        %v750 = vpack.c.bf16 %v718, %v718
        %v751 = vpack.c.bf16 %v719, %v719
        %v752 = vpack.c.bf16 %v720, %v720
        %v753 = vpack.c.bf16 %v721, %v721
        %v754 = vpack.c.bf16 %v722, %v722
        %v755 = vpack.c.bf16 %v723, %v723
        %v756 = vpack.c.bf16 %v724, %v724
        %v757 = vpack.c.bf16 %v725, %v725
        %v758 = vpack.c.bf16 %v726, %v726
        %v759 = vpack.c.bf16 %v727, %v727
        %v760 = vpack.c.bf16 %v728, %v728
        %v761 = vpack.c.bf16 %v729, %v729
        %v762 = vpack.c.bf16 %v730, %v730
        %v763 = vpack.c.bf16 %v731, %v731
        %v764 = vpack.c.bf16 %v732, %v732
        %797 = vrot.lane.b32.xlu0 %v733, 4
        %v798 = vpop.permute.xlu0 %797
        %799 = vrot.lane.b32.xlu0 %v734, 4
        %v800 = vpop.permute.xlu0 %799
        %801 = vrot.lane.b32.xlu0 %v735, 4
        %v802 = vpop.permute.xlu0 %801
        %803 = vrot.lane.b32.xlu0 %v736, 4
        %v804 = vpop.permute.xlu0 %803
        %805 = vrot.lane.b32.xlu0 %v737, 4
        %v806 = vpop.permute.xlu0 %805
        %807 = vrot.lane.b32.xlu0 %v738, 4
        %v808 = vpop.permute.xlu0 %807
        %809 = vrot.lane.b32.xlu0 %v739, 4
        %v810 = vpop.permute.xlu0 %809
        %811 = vrot.lane.b32.xlu0 %v740, 4
        %v812 = vpop.permute.xlu0 %811
        %813 = vrot.lane.b32.xlu0 %v741, 4
        %v814 = vpop.permute.xlu0 %813
        %815 = vrot.lane.b32.xlu0 %v742, 4
        %v816 = vpop.permute.xlu0 %815
        %817 = vrot.lane.b32.xlu0 %v743, 4
        %v818 = vpop.permute.xlu0 %817
        %819 = vrot.lane.b32.xlu0 %v744, 4
        %v820 = vpop.permute.xlu0 %819
        %821 = vrot.lane.b32.xlu0 %v745, 4
        %v822 = vpop.permute.xlu0 %821
        %823 = vrot.lane.b32.xlu0 %v746, 4
        %v824 = vpop.permute.xlu0 %823
        %825 = vrot.lane.b32.xlu0 %v747, 4
        %v826 = vpop.permute.xlu0 %825
        %827 = vrot.lane.b32.xlu0 %v748, 4
        %v828 = vpop.permute.xlu0 %827
        %829 = vrot.lane.b32.xlu0 %v749, 4
        %v830 = vpop.permute.xlu0 %829
        %831 = vrot.lane.b32.xlu0 %v750, 4
        %v832 = vpop.permute.xlu0 %831
        %833 = vrot.lane.b32.xlu0 %v751, 4
        %v834 = vpop.permute.xlu0 %833
        %835 = vrot.lane.b32.xlu0 %v752, 4
        %v836 = vpop.permute.xlu0 %835
        %837 = vrot.lane.b32.xlu0 %v753, 4
        %v838 = vpop.permute.xlu0 %837
        %839 = vrot.lane.b32.xlu0 %v754, 4
        %v840 = vpop.permute.xlu0 %839
        %841 = vrot.lane.b32.xlu0 %v755, 4
        %v842 = vpop.permute.xlu0 %841
        %843 = vrot.lane.b32.xlu0 %v756, 4
        %v844 = vpop.permute.xlu0 %843
        %845 = vrot.lane.b32.xlu0 %v757, 4
        %v846 = vpop.permute.xlu0 %845
        %847 = vrot.lane.b32.xlu0 %v758, 4
        %v848 = vpop.permute.xlu0 %847
        %849 = vrot.lane.b32.xlu0 %v759, 4
        %v850 = vpop.permute.xlu0 %849
        %851 = vrot.lane.b32.xlu0 %v760, 4
        %v852 = vpop.permute.xlu0 %851
        %853 = vrot.lane.b32.xlu0 %v761, 4
        %v854 = vpop.permute.xlu0 %853
        %855 = vrot.lane.b32.xlu0 %v762, 4
        %v856 = vpop.permute.xlu0 %855
        %857 = vrot.lane.b32.xlu0 %v763, 4
        %v858 = vpop.permute.xlu0 %857
        %859 = vrot.lane.b32.xlu0 %v764, 4
        %v860 = vpop.permute.xlu0 %859
        %vm893 = vcmask 60448
        %894 = vst.msk [vmem:[#allocation3] sm:$0xf] %vm893, %v798
        %895 = vst.msk [vmem:[#allocation3 + $0x4] sm:$0xf] %vm893, %v800
        %896 = vst.msk [vmem:[#allocation3 + $0x8] sm:$0xf] %vm893, %v802
        %897 = vst.msk [vmem:[#allocation3 + $0xc] sm:$0xf] %vm893, %v804
        %898 = vst.msk [vmem:[#allocation3 + $0x10] sm:$0xf] %vm893, %v806
        %899 = vst.msk [vmem:[#allocation3 + $0x14] sm:$0xf] %vm893, %v808
        %900 = vst.msk [vmem:[#allocation3 + $0x18] sm:$0xf] %vm893, %v810
        %901 = vst.msk [vmem:[#allocation3 + $0x1c] sm:$0xf] %vm893, %v812
        %902 = vst.msk [vmem:[#allocation3 + $0x20] sm:$0xf] %vm893, %v814
        %903 = vst.msk [vmem:[#allocation3 + $0x24] sm:$0xf] %vm893, %v816
        %904 = vst.msk [vmem:[#allocation3 + $0x28] sm:$0xf] %vm893, %v818
        %905 = vst.msk [vmem:[#allocation3 + $0x2c] sm:$0xf] %vm893, %v820
        %906 = vst.msk [vmem:[#allocation3 + $0x30] sm:$0xf] %vm893, %v822
        %907 = vst.msk [vmem:[#allocation3 + $0x34] sm:$0xf] %vm893, %v824
        %908 = vst.msk [vmem:[#allocation3 + $0x38] sm:$0xf] %vm893, %v826
        %909 = vst.msk [vmem:[#allocation3 + $0x3c] sm:$0xf] %vm893, %v828
        %910 = vst.msk [vmem:[#allocation3 + $0x40] sm:$0xf] %vm893, %v830
        %911 = vst.msk [vmem:[#allocation3 + $0x44] sm:$0xf] %vm893, %v832
        %912 = vst.msk [vmem:[#allocation3 + $0x48] sm:$0xf] %vm893, %v834
        %913 = vst.msk [vmem:[#allocation3 + $0x4c] sm:$0xf] %vm893, %v836
        %914 = vst.msk [vmem:[#allocation3 + $0x50] sm:$0xf] %vm893, %v838
        %915 = vst.msk [vmem:[#allocation3 + $0x54] sm:$0xf] %vm893, %v840
        %916 = vst.msk [vmem:[#allocation3 + $0x58] sm:$0xf] %vm893, %v842
        %917 = vst.msk [vmem:[#allocation3 + $0x5c] sm:$0xf] %vm893, %v844
        %918 = vst.msk [vmem:[#allocation3 + $0x60] sm:$0xf] %vm893, %v846
        %919 = vst.msk [vmem:[#allocation3 + $0x64] sm:$0xf] %vm893, %v848
        %920 = vst.msk [vmem:[#allocation3 + $0x68] sm:$0xf] %vm893, %v850
        %921 = vst.msk [vmem:[#allocation3 + $0x6c] sm:$0xf] %vm893, %v852
        %922 = vst.msk [vmem:[#allocation3 + $0x70] sm:$0xf] %vm893, %v854
        %923 = vst.msk [vmem:[#allocation3 + $0x74] sm:$0xf] %vm893, %v856
        %924 = vst.msk [vmem:[#allocation3 + $0x78] sm:$0xf] %vm893, %v858
        %925 = vst.msk [vmem:[#allocation3 + $0x7c] sm:$0xf] %vm893, %v860
        %v926 = vld [vmem:[#allocation2 + $0x2] sm:$0xff]
        %v927 = vld [vmem:[#allocation2 + $0xa] sm:$0xff]
        %v928 = vld [vmem:[#allocation2 + $0x1a] sm:$0xff]
        %v929 = vld [vmem:[#allocation2 + $0x22] sm:$0xff]
        %v930 = vld [vmem:[#allocation2 + $0x32] sm:$0xff]
        %v931 = vld [vmem:[#allocation2 + $0x3a] sm:$0xff]
        %v932 = vld [vmem:[#allocation2 + $0x4a] sm:$0xff]
        %v933 = vld [vmem:[#allocation2 + $0x52] sm:$0xff]
        %v934 = vld [vmem:[#allocation2 + $0x62] sm:$0xff]
        %v935 = vld [vmem:[#allocation2 + $0x6a] sm:$0xff]
        %v936 = vld [vmem:[#allocation2 + $0x7a] sm:$0xff]
        %v937 = vld [vmem:[#allocation2 + $0x82] sm:$0xff]
        %v938 = vld [vmem:[#allocation2 + $0x92] sm:$0xff]
        %v939 = vld [vmem:[#allocation2 + $0x9a] sm:$0xff]
        %v940 = vld [vmem:[#allocation2 + $0xaa] sm:$0xff]
        %v941 = vld [vmem:[#allocation2 + $0xb2] sm:$0xff]
        %v942 = vld [vmem:[#allocation2 + $0xc2] sm:$0xff]
        %v943 = vld [vmem:[#allocation2 + $0xca] sm:$0xff]
        %v944 = vld [vmem:[#allocation2 + $0xda] sm:$0xff]
        %v945 = vld [vmem:[#allocation2 + $0xe2] sm:$0xff]
        %v946 = vld [vmem:[#allocation2 + $0xf2] sm:$0xff]
        %v947 = vld [vmem:[#allocation2 + $0xfa] sm:$0xff]
        %v948 = vld [vmem:[#allocation2 + $0x10a] sm:$0xff]
        %v949 = vld [vmem:[#allocation2 + $0x112] sm:$0xff]
        %v950 = vld [vmem:[#allocation2 + $0x122] sm:$0xff]
        %v951 = vld [vmem:[#allocation2 + $0x12a] sm:$0xff]
        %v952 = vld [vmem:[#allocation2 + $0x13a] sm:$0xff]
        %v953 = vld [vmem:[#allocation2 + $0x142] sm:$0xff]
        %v954 = vld [vmem:[#allocation2 + $0x152] sm:$0xff]
        %v955 = vld [vmem:[#allocation2 + $0x15a] sm:$0xff]
        %v956 = vld [vmem:[#allocation2 + $0x16a] sm:$0xff]
        %v957 = vld [vmem:[#allocation2 + $0x172] sm:$0xff]
        %v958 = vpack.c.bf16 %v926, %v926
        %v959 = vpack.c.bf16 %v927, %v927
        %v960 = vpack.c.bf16 %v928, %v928
        %v961 = vpack.c.bf16 %v929, %v929
        %v962 = vpack.c.bf16 %v930, %v930
        %v963 = vpack.c.bf16 %v931, %v931
        %v964 = vpack.c.bf16 %v932, %v932
        %v965 = vpack.c.bf16 %v933, %v933
        %v966 = vpack.c.bf16 %v934, %v934
        %v967 = vpack.c.bf16 %v935, %v935
        %v968 = vpack.c.bf16 %v936, %v936
        %v969 = vpack.c.bf16 %v937, %v937
        %v970 = vpack.c.bf16 %v938, %v938
        %v971 = vpack.c.bf16 %v939, %v939
        %v972 = vpack.c.bf16 %v940, %v940
        %v973 = vpack.c.bf16 %v941, %v941
        %v974 = vpack.c.bf16 %v942, %v942
        %v975 = vpack.c.bf16 %v943, %v943
        %v976 = vpack.c.bf16 %v944, %v944
        %v977 = vpack.c.bf16 %v945, %v945
        %v978 = vpack.c.bf16 %v946, %v946
        %v979 = vpack.c.bf16 %v947, %v947
        %v980 = vpack.c.bf16 %v948, %v948
        %v981 = vpack.c.bf16 %v949, %v949
        %v982 = vpack.c.bf16 %v950, %v950
        %v983 = vpack.c.bf16 %v951, %v951
        %v984 = vpack.c.bf16 %v952, %v952
        %v985 = vpack.c.bf16 %v953, %v953
        %v986 = vpack.c.bf16 %v954, %v954
        %v987 = vpack.c.bf16 %v955, %v955
        %v988 = vpack.c.bf16 %v956, %v956
        %v989 = vpack.c.bf16 %v957, %v957
        %1022 = vrot.lane.b32.xlu0 %v958, 8
        %v1023 = vpop.permute.xlu0 %1022
        %1024 = vrot.lane.b32.xlu0 %v959, 8
        %v1025 = vpop.permute.xlu0 %1024
        %1026 = vrot.lane.b32.xlu0 %v960, 8
        %v1027 = vpop.permute.xlu0 %1026
        %1028 = vrot.lane.b32.xlu0 %v961, 8
        %v1029 = vpop.permute.xlu0 %1028
        %1030 = vrot.lane.b32.xlu0 %v962, 8
        %v1031 = vpop.permute.xlu0 %1030
        %1032 = vrot.lane.b32.xlu0 %v963, 8
        %v1033 = vpop.permute.xlu0 %1032
        %1034 = vrot.lane.b32.xlu0 %v964, 8
        %v1035 = vpop.permute.xlu0 %1034
        %1036 = vrot.lane.b32.xlu0 %v965, 8
        %v1037 = vpop.permute.xlu0 %1036
        %1038 = vrot.lane.b32.xlu0 %v966, 8
        %v1039 = vpop.permute.xlu0 %1038
        %1040 = vrot.lane.b32.xlu0 %v967, 8
        %v1041 = vpop.permute.xlu0 %1040
        %1042 = vrot.lane.b32.xlu0 %v968, 8
        %v1043 = vpop.permute.xlu0 %1042
        %1044 = vrot.lane.b32.xlu0 %v969, 8
        %v1045 = vpop.permute.xlu0 %1044
        %1046 = vrot.lane.b32.xlu0 %v970, 8
        %v1047 = vpop.permute.xlu0 %1046
        %1048 = vrot.lane.b32.xlu0 %v971, 8
        %v1049 = vpop.permute.xlu0 %1048
        %1050 = vrot.lane.b32.xlu0 %v972, 8
        %v1051 = vpop.permute.xlu0 %1050
        %1052 = vrot.lane.b32.xlu0 %v973, 8
        %v1053 = vpop.permute.xlu0 %1052
        %1054 = vrot.lane.b32.xlu0 %v974, 8
        %v1055 = vpop.permute.xlu0 %1054
        %1056 = vrot.lane.b32.xlu0 %v975, 8
        %v1057 = vpop.permute.xlu0 %1056
        %1058 = vrot.lane.b32.xlu0 %v976, 8
        %v1059 = vpop.permute.xlu0 %1058
        %1060 = vrot.lane.b32.xlu0 %v977, 8
        %v1061 = vpop.permute.xlu0 %1060
        %1062 = vrot.lane.b32.xlu0 %v978, 8
        %v1063 = vpop.permute.xlu0 %1062
        %1064 = vrot.lane.b32.xlu0 %v979, 8
        %v1065 = vpop.permute.xlu0 %1064
        %1066 = vrot.lane.b32.xlu0 %v980, 8
        %v1067 = vpop.permute.xlu0 %1066
        %1068 = vrot.lane.b32.xlu0 %v981, 8
        %v1069 = vpop.permute.xlu0 %1068
        %1070 = vrot.lane.b32.xlu0 %v982, 8
        %v1071 = vpop.permute.xlu0 %1070
        %1072 = vrot.lane.b32.xlu0 %v983, 8
        %v1073 = vpop.permute.xlu0 %1072
        %1074 = vrot.lane.b32.xlu0 %v984, 8
        %v1075 = vpop.permute.xlu0 %1074
        %1076 = vrot.lane.b32.xlu0 %v985, 8
        %v1077 = vpop.permute.xlu0 %1076
        %1078 = vrot.lane.b32.xlu0 %v986, 8
        %v1079 = vpop.permute.xlu0 %1078
        %1080 = vrot.lane.b32.xlu0 %v987, 8
        %v1081 = vpop.permute.xlu0 %1080
        %1082 = vrot.lane.b32.xlu0 %v988, 8
        %v1083 = vpop.permute.xlu0 %1082
        %1084 = vrot.lane.b32.xlu0 %v989, 8
        %v1085 = vpop.permute.xlu0 %1084
        %vm1118 = vcmask 93248
        %1119 = vst.msk [vmem:[#allocation3] sm:$0xf] %vm1118, %v1023
        %1120 = vst.msk [vmem:[#allocation3 + $0x4] sm:$0xf] %vm1118, %v1025
        %1121 = vst.msk [vmem:[#allocation3 + $0x8] sm:$0xf] %vm1118, %v1027
        %1122 = vst.msk [vmem:[#allocation3 + $0xc] sm:$0xf] %vm1118, %v1029
        %1123 = vst.msk [vmem:[#allocation3 + $0x10] sm:$0xf] %vm1118, %v1031
        %1124 = vst.msk [vmem:[#allocation3 + $0x14] sm:$0xf] %vm1118, %v1033
        %1125 = vst.msk [vmem:[#allocation3 + $0x18] sm:$0xf] %vm1118, %v1035
        %1126 = vst.msk [vmem:[#allocation3 + $0x1c] sm:$0xf] %vm1118, %v1037
        %1127 = vst.msk [vmem:[#allocation3 + $0x20] sm:$0xf] %vm1118, %v1039
        %1128 = vst.msk [vmem:[#allocation3 + $0x24] sm:$0xf] %vm1118, %v1041
        %1129 = vst.msk [vmem:[#allocation3 + $0x28] sm:$0xf] %vm1118, %v1043
        %1130 = vst.msk [vmem:[#allocation3 + $0x2c] sm:$0xf] %vm1118, %v1045
        %1131 = vst.msk [vmem:[#allocation3 + $0x30] sm:$0xf] %vm1118, %v1047
        %1132 = vst.msk [vmem:[#allocation3 + $0x34] sm:$0xf] %vm1118, %v1049
        %1133 = vst.msk [vmem:[#allocation3 + $0x38] sm:$0xf] %vm1118, %v1051
        %1134 = vst.msk [vmem:[#allocation3 + $0x3c] sm:$0xf] %vm1118, %v1053
        %1135 = vst.msk [vmem:[#allocation3 + $0x40] sm:$0xf] %vm1118, %v1055
        %1136 = vst.msk [vmem:[#allocation3 + $0x44] sm:$0xf] %vm1118, %v1057
        %1137 = vst.msk [vmem:[#allocation3 + $0x48] sm:$0xf] %vm1118, %v1059
        %1138 = vst.msk [vmem:[#allocation3 + $0x4c] sm:$0xf] %vm1118, %v1061
        %1139 = vst.msk [vmem:[#allocation3 + $0x50] sm:$0xf] %vm1118, %v1063
        %1140 = vst.msk [vmem:[#allocation3 + $0x54] sm:$0xf] %vm1118, %v1065
        %1141 = vst.msk [vmem:[#allocation3 + $0x58] sm:$0xf] %vm1118, %v1067
        %1142 = vst.msk [vmem:[#allocation3 + $0x5c] sm:$0xf] %vm1118, %v1069
        %1143 = vst.msk [vmem:[#allocation3 + $0x60] sm:$0xf] %vm1118, %v1071
        %1144 = vst.msk [vmem:[#allocation3 + $0x64] sm:$0xf] %vm1118, %v1073
        %1145 = vst.msk [vmem:[#allocation3 + $0x68] sm:$0xf] %vm1118, %v1075
        %1146 = vst.msk [vmem:[#allocation3 + $0x6c] sm:$0xf] %vm1118, %v1077
        %1147 = vst.msk [vmem:[#allocation3 + $0x70] sm:$0xf] %vm1118, %v1079
        %1148 = vst.msk [vmem:[#allocation3 + $0x74] sm:$0xf] %vm1118, %v1081
        %1149 = vst.msk [vmem:[#allocation3 + $0x78] sm:$0xf] %vm1118, %v1083
        %1150 = vst.msk [vmem:[#allocation3 + $0x7c] sm:$0xf] %vm1118, %v1085
        %v1151 = vld [vmem:[%s538] sm:$0xff]
        %v1152 = vld [vmem:[%s538 + $0x8] sm:$0xff]
        %v1153 = vld [vmem:[%s538 + $0x18] sm:$0xff]
        %v1154 = vld [vmem:[%s538 + $0x20] sm:$0xff]
        %v1155 = vld [vmem:[%s538 + $0x30] sm:$0xff]
        %v1156 = vld [vmem:[%s538 + $0x38] sm:$0xff]
        %v1157 = vld [vmem:[%s538 + $0x48] sm:$0xff]
        %v1158 = vld [vmem:[%s538 + $0x50] sm:$0xff]
        %v1159 = vld [vmem:[%s538 + $0x60] sm:$0xff]
        %v1160 = vld [vmem:[%s538 + $0x68] sm:$0xff]
        %v1161 = vld [vmem:[%s538 + $0x78] sm:$0xff]
        %v1162 = vld [vmem:[%s538 + $0x80] sm:$0xff]
        %v1163 = vld [vmem:[%s538 + $0x90] sm:$0xff]
        %v1164 = vld [vmem:[%s538 + $0x98] sm:$0xff]
        %v1165 = vld [vmem:[%s538 + $0xa8] sm:$0xff]
        %v1166 = vld [vmem:[%s538 + $0xb0] sm:$0xff]
        %v1167 = vld [vmem:[%s538 + $0xc0] sm:$0xff]
        %v1168 = vld [vmem:[%s538 + $0xc8] sm:$0xff]
        %v1169 = vld [vmem:[%s538 + $0xd8] sm:$0xff]
        %v1170 = vld [vmem:[%s538 + $0xe0] sm:$0xff]
        %v1171 = vld [vmem:[%s538 + $0xf0] sm:$0xff]
        %v1172 = vld [vmem:[%s538 + $0xf8] sm:$0xff]
        %v1173 = vld [vmem:[%s538 + $0x108] sm:$0xff]
        %v1174 = vld [vmem:[%s538 + $0x110] sm:$0xff]
        %v1175 = vld [vmem:[%s538 + $0x120] sm:$0xff]
        %v1176 = vld [vmem:[%s538 + $0x128] sm:$0xff]
        %v1177 = vld [vmem:[%s538 + $0x138] sm:$0xff]
        %v1178 = vld [vmem:[%s538 + $0x140] sm:$0xff]
        %v1179 = vld [vmem:[%s538 + $0x150] sm:$0xff]
        %v1180 = vld [vmem:[%s538 + $0x158] sm:$0xff]
        %v1181 = vld [vmem:[%s538 + $0x168] sm:$0xff]
        %v1182 = vld [vmem:[%s538 + $0x170] sm:$0xff]
        %v1183 = vpack.c.bf16 %v1151, %v1151
        %v1184 = vpack.c.bf16 %v1152, %v1152
        %v1185 = vpack.c.bf16 %v1153, %v1153
        %v1186 = vpack.c.bf16 %v1154, %v1154
        %v1187 = vpack.c.bf16 %v1155, %v1155
        %v1188 = vpack.c.bf16 %v1156, %v1156
        %v1189 = vpack.c.bf16 %v1157, %v1157
        %v1190 = vpack.c.bf16 %v1158, %v1158
        %v1191 = vpack.c.bf16 %v1159, %v1159
        %v1192 = vpack.c.bf16 %v1160, %v1160
        %v1193 = vpack.c.bf16 %v1161, %v1161
        %v1194 = vpack.c.bf16 %v1162, %v1162
        %v1195 = vpack.c.bf16 %v1163, %v1163
        %v1196 = vpack.c.bf16 %v1164, %v1164
        %v1197 = vpack.c.bf16 %v1165, %v1165
        %v1198 = vpack.c.bf16 %v1166, %v1166
        %v1199 = vpack.c.bf16 %v1167, %v1167
        %v1200 = vpack.c.bf16 %v1168, %v1168
        %v1201 = vpack.c.bf16 %v1169, %v1169
        %v1202 = vpack.c.bf16 %v1170, %v1170
        %v1203 = vpack.c.bf16 %v1171, %v1171
        %v1204 = vpack.c.bf16 %v1172, %v1172
        %v1205 = vpack.c.bf16 %v1173, %v1173
        %v1206 = vpack.c.bf16 %v1174, %v1174
        %v1207 = vpack.c.bf16 %v1175, %v1175
        %v1208 = vpack.c.bf16 %v1176, %v1176
        %v1209 = vpack.c.bf16 %v1177, %v1177
        %v1210 = vpack.c.bf16 %v1178, %v1178
        %v1211 = vpack.c.bf16 %v1179, %v1179
        %v1212 = vpack.c.bf16 %v1180, %v1180
        %v1213 = vpack.c.bf16 %v1181, %v1181
        %v1214 = vpack.c.bf16 %v1182, %v1182
        %1247 = vrot.lane.b32.xlu0 %v1183, 12
        %v1248 = vpop.permute.xlu0 %1247
        %1249 = vrot.lane.b32.xlu0 %v1184, 12
        %v1250 = vpop.permute.xlu0 %1249
        %1251 = vrot.lane.b32.xlu0 %v1185, 12
        %v1252 = vpop.permute.xlu0 %1251
        %1253 = vrot.lane.b32.xlu0 %v1186, 12
        %v1254 = vpop.permute.xlu0 %1253
        %1255 = vrot.lane.b32.xlu0 %v1187, 12
        %v1256 = vpop.permute.xlu0 %1255
        %1257 = vrot.lane.b32.xlu0 %v1188, 12
        %v1258 = vpop.permute.xlu0 %1257
        %1259 = vrot.lane.b32.xlu0 %v1189, 12
        %v1260 = vpop.permute.xlu0 %1259
        %1261 = vrot.lane.b32.xlu0 %v1190, 12
        %v1262 = vpop.permute.xlu0 %1261
        %1263 = vrot.lane.b32.xlu0 %v1191, 12
        %v1264 = vpop.permute.xlu0 %1263
        %1265 = vrot.lane.b32.xlu0 %v1192, 12
        %v1266 = vpop.permute.xlu0 %1265
        %1267 = vrot.lane.b32.xlu0 %v1193, 12
        %v1268 = vpop.permute.xlu0 %1267
        %1269 = vrot.lane.b32.xlu0 %v1194, 12
        %v1270 = vpop.permute.xlu0 %1269
        %1271 = vrot.lane.b32.xlu0 %v1195, 12
        %v1272 = vpop.permute.xlu0 %1271
        %1273 = vrot.lane.b32.xlu0 %v1196, 12
        %v1274 = vpop.permute.xlu0 %1273
        %1275 = vrot.lane.b32.xlu0 %v1197, 12
        %v1276 = vpop.permute.xlu0 %1275
        %1277 = vrot.lane.b32.xlu0 %v1198, 12
        %v1278 = vpop.permute.xlu0 %1277
        %1279 = vrot.lane.b32.xlu0 %v1199, 12
        %v1280 = vpop.permute.xlu0 %1279
        %1281 = vrot.lane.b32.xlu0 %v1200, 12
        %v1282 = vpop.permute.xlu0 %1281
        %1283 = vrot.lane.b32.xlu0 %v1201, 12
        %v1284 = vpop.permute.xlu0 %1283
        %1285 = vrot.lane.b32.xlu0 %v1202, 12
        %v1286 = vpop.permute.xlu0 %1285
        %1287 = vrot.lane.b32.xlu0 %v1203, 12
        %v1288 = vpop.permute.xlu0 %1287
        %1289 = vrot.lane.b32.xlu0 %v1204, 12
        %v1290 = vpop.permute.xlu0 %1289
        %1291 = vrot.lane.b32.xlu0 %v1205, 12
        %v1292 = vpop.permute.xlu0 %1291
        %1293 = vrot.lane.b32.xlu0 %v1206, 12
        %v1294 = vpop.permute.xlu0 %1293
        %1295 = vrot.lane.b32.xlu0 %v1207, 12
        %v1296 = vpop.permute.xlu0 %1295
        %1297 = vrot.lane.b32.xlu0 %v1208, 12
        %v1298 = vpop.permute.xlu0 %1297
        %1299 = vrot.lane.b32.xlu0 %v1209, 12
        %v1300 = vpop.permute.xlu0 %1299
        %1301 = vrot.lane.b32.xlu0 %v1210, 12
        %v1302 = vpop.permute.xlu0 %1301
        %1303 = vrot.lane.b32.xlu0 %v1211, 12
        %v1304 = vpop.permute.xlu0 %1303
        %1305 = vrot.lane.b32.xlu0 %v1212, 12
        %v1306 = vpop.permute.xlu0 %1305
        %1307 = vrot.lane.b32.xlu0 %v1213, 12
        %v1308 = vpop.permute.xlu0 %1307
        %1309 = vrot.lane.b32.xlu0 %v1214, 12
        %v1310 = vpop.permute.xlu0 %1309
        %vm1343 = vcmask 126048
        %1344 = vst.msk [vmem:[#allocation3] sm:$0xf] %vm1343, %v1248
        %1345 = vst.msk [vmem:[#allocation3 + $0x4] sm:$0xf] %vm1343, %v1250
        %1346 = vst.msk [vmem:[#allocation3 + $0x8] sm:$0xf] %vm1343, %v1252
        %1347 = vst.msk [vmem:[#allocation3 + $0xc] sm:$0xf] %vm1343, %v1254
        %1348 = vst.msk [vmem:[#allocation3 + $0x10] sm:$0xf] %vm1343, %v1256
        %1349 = vst.msk [vmem:[#allocation3 + $0x14] sm:$0xf] %vm1343, %v1258
        %1350 = vst.msk [vmem:[#allocation3 + $0x18] sm:$0xf] %vm1343, %v1260
        %1351 = vst.msk [vmem:[#allocation3 + $0x1c] sm:$0xf] %vm1343, %v1262
        %1352 = vst.msk [vmem:[#allocation3 + $0x20] sm:$0xf] %vm1343, %v1264
        %1353 = vst.msk [vmem:[#allocation3 + $0x24] sm:$0xf] %vm1343, %v1266
        %1354 = vst.msk [vmem:[#allocation3 + $0x28] sm:$0xf] %vm1343, %v1268
        %1355 = vst.msk [vmem:[#allocation3 + $0x2c] sm:$0xf] %vm1343, %v1270
        %1356 = vst.msk [vmem:[#allocation3 + $0x30] sm:$0xf] %vm1343, %v1272
        %1357 = vst.msk [vmem:[#allocation3 + $0x34] sm:$0xf] %vm1343, %v1274
        %1358 = vst.msk [vmem:[#allocation3 + $0x38] sm:$0xf] %vm1343, %v1276
        %1359 = vst.msk [vmem:[#allocation3 + $0x3c] sm:$0xf] %vm1343, %v1278
        %1360 = vst.msk [vmem:[#allocation3 + $0x40] sm:$0xf] %vm1343, %v1280
        %1361 = vst.msk [vmem:[#allocation3 + $0x44] sm:$0xf] %vm1343, %v1282
        %1362 = vst.msk [vmem:[#allocation3 + $0x48] sm:$0xf] %vm1343, %v1284
        %1363 = vst.msk [vmem:[#allocation3 + $0x4c] sm:$0xf] %vm1343, %v1286
        %1364 = vst.msk [vmem:[#allocation3 + $0x50] sm:$0xf] %vm1343, %v1288
        %1365 = vst.msk [vmem:[#allocation3 + $0x54] sm:$0xf] %vm1343, %v1290
        %1366 = vst.msk [vmem:[#allocation3 + $0x58] sm:$0xf] %vm1343, %v1292
        %1367 = vst.msk [vmem:[#allocation3 + $0x5c] sm:$0xf] %vm1343, %v1294
        %1368 = vst.msk [vmem:[#allocation3 + $0x60] sm:$0xf] %vm1343, %v1296
        %1369 = vst.msk [vmem:[#allocation3 + $0x64] sm:$0xf] %vm1343, %v1298
        %1370 = vst.msk [vmem:[#allocation3 + $0x68] sm:$0xf] %vm1343, %v1300
        %1371 = vst.msk [vmem:[#allocation3 + $0x6c] sm:$0xf] %vm1343, %v1302
        %1372 = vst.msk [vmem:[#allocation3 + $0x70] sm:$0xf] %vm1343, %v1304
        %1373 = vst.msk [vmem:[#allocation3 + $0x74] sm:$0xf] %vm1343, %v1306
        %1374 = vst.msk [vmem:[#allocation3 + $0x78] sm:$0xf] %vm1343, %v1308
        %1375 = vst.msk [vmem:[#allocation3 + $0x7c] sm:$0xf] %vm1343, %v1310
        %v1376 = vld [vmem:[%s538 + $0x1] sm:$0xff]
        %v1377 = vld [vmem:[%s538 + $0x9] sm:$0xff]
        %v1378 = vld [vmem:[%s538 + $0x19] sm:$0xff]
        %v1379 = vld [vmem:[%s538 + $0x21] sm:$0xff]
        %v1380 = vld [vmem:[%s538 + $0x31] sm:$0xff]
        %v1381 = vld [vmem:[%s538 + $0x39] sm:$0xff]
        %v1382 = vld [vmem:[%s538 + $0x49] sm:$0xff]
        %v1383 = vld [vmem:[%s538 + $0x51] sm:$0xff]
        %v1384 = vld [vmem:[%s538 + $0x61] sm:$0xff]
        %v1385 = vld [vmem:[%s538 + $0x69] sm:$0xff]
        %v1386 = vld [vmem:[%s538 + $0x79] sm:$0xff]
        %v1387 = vld [vmem:[%s538 + $0x81] sm:$0xff]
        %v1388 = vld [vmem:[%s538 + $0x91] sm:$0xff]
        %v1389 = vld [vmem:[%s538 + $0x99] sm:$0xff]
        %v1390 = vld [vmem:[%s538 + $0xa9] sm:$0xff]
        %v1391 = vld [vmem:[%s538 + $0xb1] sm:$0xff]
        %v1392 = vld [vmem:[%s538 + $0xc1] sm:$0xff]
        %v1393 = vld [vmem:[%s538 + $0xc9] sm:$0xff]
        %v1394 = vld [vmem:[%s538 + $0xd9] sm:$0xff]
        %v1395 = vld [vmem:[%s538 + $0xe1] sm:$0xff]
        %v1396 = vld [vmem:[%s538 + $0xf1] sm:$0xff]
        %v1397 = vld [vmem:[%s538 + $0xf9] sm:$0xff]
        %v1398 = vld [vmem:[%s538 + $0x109] sm:$0xff]
        %v1399 = vld [vmem:[%s538 + $0x111] sm:$0xff]
        %v1400 = vld [vmem:[%s538 + $0x121] sm:$0xff]
        %v1401 = vld [vmem:[%s538 + $0x129] sm:$0xff]
        %v1402 = vld [vmem:[%s538 + $0x139] sm:$0xff]
        %v1403 = vld [vmem:[%s538 + $0x141] sm:$0xff]
        %v1404 = vld [vmem:[%s538 + $0x151] sm:$0xff]
        %v1405 = vld [vmem:[%s538 + $0x159] sm:$0xff]
        %v1406 = vld [vmem:[%s538 + $0x169] sm:$0xff]
        %v1407 = vld [vmem:[%s538 + $0x171] sm:$0xff]
        %v1408 = vpack.c.bf16 %v1376, %v1376
        %v1409 = vpack.c.bf16 %v1377, %v1377
        %v1410 = vpack.c.bf16 %v1378, %v1378
        %v1411 = vpack.c.bf16 %v1379, %v1379
        %v1412 = vpack.c.bf16 %v1380, %v1380
        %v1413 = vpack.c.bf16 %v1381, %v1381
        %v1414 = vpack.c.bf16 %v1382, %v1382
        %v1415 = vpack.c.bf16 %v1383, %v1383
        %v1416 = vpack.c.bf16 %v1384, %v1384
        %v1417 = vpack.c.bf16 %v1385, %v1385
        %v1418 = vpack.c.bf16 %v1386, %v1386
        %v1419 = vpack.c.bf16 %v1387, %v1387
        %v1420 = vpack.c.bf16 %v1388, %v1388
        %v1421 = vpack.c.bf16 %v1389, %v1389
        %v1422 = vpack.c.bf16 %v1390, %v1390
        %v1423 = vpack.c.bf16 %v1391, %v1391
        %v1424 = vpack.c.bf16 %v1392, %v1392
        %v1425 = vpack.c.bf16 %v1393, %v1393
        %v1426 = vpack.c.bf16 %v1394, %v1394
        %v1427 = vpack.c.bf16 %v1395, %v1395
        %v1428 = vpack.c.bf16 %v1396, %v1396
        %v1429 = vpack.c.bf16 %v1397, %v1397
        %v1430 = vpack.c.bf16 %v1398, %v1398
        %v1431 = vpack.c.bf16 %v1399, %v1399
        %v1432 = vpack.c.bf16 %v1400, %v1400
        %v1433 = vpack.c.bf16 %v1401, %v1401
        %v1434 = vpack.c.bf16 %v1402, %v1402
        %v1435 = vpack.c.bf16 %v1403, %v1403
        %v1436 = vpack.c.bf16 %v1404, %v1404
        %v1437 = vpack.c.bf16 %v1405, %v1405
        %v1438 = vpack.c.bf16 %v1406, %v1406
        %v1439 = vpack.c.bf16 %v1407, %v1407
        %1472 = vrot.lane.b32.xlu0 %v1408, 16
        %v1473 = vpop.permute.xlu0 %1472
        %1474 = vrot.lane.b32.xlu0 %v1409, 16
        %v1475 = vpop.permute.xlu0 %1474
        %1476 = vrot.lane.b32.xlu0 %v1410, 16
        %v1477 = vpop.permute.xlu0 %1476
        %1478 = vrot.lane.b32.xlu0 %v1411, 16
        %v1479 = vpop.permute.xlu0 %1478
        %1480 = vrot.lane.b32.xlu0 %v1412, 16
        %v1481 = vpop.permute.xlu0 %1480
        %1482 = vrot.lane.b32.xlu0 %v1413, 16
        %v1483 = vpop.permute.xlu0 %1482
        %1484 = vrot.lane.b32.xlu0 %v1414, 16
        %v1485 = vpop.permute.xlu0 %1484
        %1486 = vrot.lane.b32.xlu0 %v1415, 16
        %v1487 = vpop.permute.xlu0 %1486
        %1488 = vrot.lane.b32.xlu0 %v1416, 16
        %v1489 = vpop.permute.xlu0 %1488
        %1490 = vrot.lane.b32.xlu0 %v1417, 16
        %v1491 = vpop.permute.xlu0 %1490
        %1492 = vrot.lane.b32.xlu0 %v1418, 16
        %v1493 = vpop.permute.xlu0 %1492
        %1494 = vrot.lane.b32.xlu0 %v1419, 16
        %v1495 = vpop.permute.xlu0 %1494
        %1496 = vrot.lane.b32.xlu0 %v1420, 16
        %v1497 = vpop.permute.xlu0 %1496
        %1498 = vrot.lane.b32.xlu0 %v1421, 16
        %v1499 = vpop.permute.xlu0 %1498
        %1500 = vrot.lane.b32.xlu0 %v1422, 16
        %v1501 = vpop.permute.xlu0 %1500
        %1502 = vrot.lane.b32.xlu0 %v1423, 16
        %v1503 = vpop.permute.xlu0 %1502
        %1504 = vrot.lane.b32.xlu0 %v1424, 16
        %v1505 = vpop.permute.xlu0 %1504
        %1506 = vrot.lane.b32.xlu0 %v1425, 16
        %v1507 = vpop.permute.xlu0 %1506
        %1508 = vrot.lane.b32.xlu0 %v1426, 16
        %v1509 = vpop.permute.xlu0 %1508
        %1510 = vrot.lane.b32.xlu0 %v1427, 16
        %v1511 = vpop.permute.xlu0 %1510
        %1512 = vrot.lane.b32.xlu0 %v1428, 16
        %v1513 = vpop.permute.xlu0 %1512
        %1514 = vrot.lane.b32.xlu0 %v1429, 16
        %v1515 = vpop.permute.xlu0 %1514
        %1516 = vrot.lane.b32.xlu0 %v1430, 16
        %v1517 = vpop.permute.xlu0 %1516
        %1518 = vrot.lane.b32.xlu0 %v1431, 16
        %v1519 = vpop.permute.xlu0 %1518
        %1520 = vrot.lane.b32.xlu0 %v1432, 16
        %v1521 = vpop.permute.xlu0 %1520
        %1522 = vrot.lane.b32.xlu0 %v1433, 16
        %v1523 = vpop.permute.xlu0 %1522
        %1524 = vrot.lane.b32.xlu0 %v1434, 16
        %v1525 = vpop.permute.xlu0 %1524
        %1526 = vrot.lane.b32.xlu0 %v1435, 16
        %v1527 = vpop.permute.xlu0 %1526
        %1528 = vrot.lane.b32.xlu0 %v1436, 16
        %v1529 = vpop.permute.xlu0 %1528
        %1530 = vrot.lane.b32.xlu0 %v1437, 16
        %v1531 = vpop.permute.xlu0 %1530
        %1532 = vrot.lane.b32.xlu0 %v1438, 16
        %v1533 = vpop.permute.xlu0 %1532
        %1534 = vrot.lane.b32.xlu0 %v1439, 16
        %v1535 = vpop.permute.xlu0 %1534
        %vm1568 = vcmask 158848
        %1569 = vst.msk [vmem:[#allocation3] sm:$0xf] %vm1568, %v1473
        %1570 = vst.msk [vmem:[#allocation3 + $0x4] sm:$0xf] %vm1568, %v1475
        %1571 = vst.msk [vmem:[#allocation3 + $0x8] sm:$0xf] %vm1568, %v1477
        %1572 = vst.msk [vmem:[#allocation3 + $0xc] sm:$0xf] %vm1568, %v1479
        %1573 = vst.msk [vmem:[#allocation3 + $0x10] sm:$0xf] %vm1568, %v1481
        %1574 = vst.msk [vmem:[#allocation3 + $0x14] sm:$0xf] %vm1568, %v1483
        %1575 = vst.msk [vmem:[#allocation3 + $0x18] sm:$0xf] %vm1568, %v1485
        %1576 = vst.msk [vmem:[#allocation3 + $0x1c] sm:$0xf] %vm1568, %v1487
        %1577 = vst.msk [vmem:[#allocation3 + $0x20] sm:$0xf] %vm1568, %v1489
        %1578 = vst.msk [vmem:[#allocation3 + $0x24] sm:$0xf] %vm1568, %v1491
        %1579 = vst.msk [vmem:[#allocation3 + $0x28] sm:$0xf] %vm1568, %v1493
        %1580 = vst.msk [vmem:[#allocation3 + $0x2c] sm:$0xf] %vm1568, %v1495
        %1581 = vst.msk [vmem:[#allocation3 + $0x30] sm:$0xf] %vm1568, %v1497
        %1582 = vst.msk [vmem:[#allocation3 + $0x34] sm:$0xf] %vm1568, %v1499
        %1583 = vst.msk [vmem:[#allocation3 + $0x38] sm:$0xf] %vm1568, %v1501
        %1584 = vst.msk [vmem:[#allocation3 + $0x3c] sm:$0xf] %vm1568, %v1503
        %1585 = vst.msk [vmem:[#allocation3 + $0x40] sm:$0xf] %vm1568, %v1505
        %1586 = vst.msk [vmem:[#allocation3 + $0x44] sm:$0xf] %vm1568, %v1507
        %1587 = vst.msk [vmem:[#allocation3 + $0x48] sm:$0xf] %vm1568, %v1509
        %1588 = vst.msk [vmem:[#allocation3 + $0x4c] sm:$0xf] %vm1568, %v1511
        %1589 = vst.msk [vmem:[#allocation3 + $0x50] sm:$0xf] %vm1568, %v1513
        %1590 = vst.msk [vmem:[#allocation3 + $0x54] sm:$0xf] %vm1568, %v1515
        %1591 = vst.msk [vmem:[#allocation3 + $0x58] sm:$0xf] %vm1568, %v1517
        %1592 = vst.msk [vmem:[#allocation3 + $0x5c] sm:$0xf] %vm1568, %v1519
        %1593 = vst.msk [vmem:[#allocation3 + $0x60] sm:$0xf] %vm1568, %v1521
        %1594 = vst.msk [vmem:[#allocation3 + $0x64] sm:$0xf] %vm1568, %v1523
        %1595 = vst.msk [vmem:[#allocation3 + $0x68] sm:$0xf] %vm1568, %v1525
        %1596 = vst.msk [vmem:[#allocation3 + $0x6c] sm:$0xf] %vm1568, %v1527
        %1597 = vst.msk [vmem:[#allocation3 + $0x70] sm:$0xf] %vm1568, %v1529
        %1598 = vst.msk [vmem:[#allocation3 + $0x74] sm:$0xf] %vm1568, %v1531
        %1599 = vst.msk [vmem:[#allocation3 + $0x78] sm:$0xf] %vm1568, %v1533
        %1600 = vst.msk [vmem:[#allocation3 + $0x7c] sm:$0xf] %vm1568, %v1535
        %v1601 = vld [vmem:[%s538 + $0x2] sm:$0xff]
        %v1602 = vld [vmem:[%s538 + $0xa] sm:$0xff]
        %v1603 = vld [vmem:[%s538 + $0x1a] sm:$0xff]
        %v1604 = vld [vmem:[%s538 + $0x22] sm:$0xff]
        %v1605 = vld [vmem:[%s538 + $0x32] sm:$0xff]
        %v1606 = vld [vmem:[%s538 + $0x3a] sm:$0xff]
        %v1607 = vld [vmem:[%s538 + $0x4a] sm:$0xff]
        %v1608 = vld [vmem:[%s538 + $0x52] sm:$0xff]
        %v1609 = vld [vmem:[%s538 + $0x62] sm:$0xff]
        %v1610 = vld [vmem:[%s538 + $0x6a] sm:$0xff]
        %v1611 = vld [vmem:[%s538 + $0x7a] sm:$0xff]
        %v1612 = vld [vmem:[%s538 + $0x82] sm:$0xff]
        %v1613 = vld [vmem:[%s538 + $0x92] sm:$0xff]
        %v1614 = vld [vmem:[%s538 + $0x9a] sm:$0xff]
        %v1615 = vld [vmem:[%s538 + $0xaa] sm:$0xff]
        %v1616 = vld [vmem:[%s538 + $0xb2] sm:$0xff]
        %v1617 = vld [vmem:[%s538 + $0xc2] sm:$0xff]
        %v1618 = vld [vmem:[%s538 + $0xca] sm:$0xff]
        %v1619 = vld [vmem:[%s538 + $0xda] sm:$0xff]
        %v1620 = vld [vmem:[%s538 + $0xe2] sm:$0xff]
        %v1621 = vld [vmem:[%s538 + $0xf2] sm:$0xff]
        %v1622 = vld [vmem:[%s538 + $0xfa] sm:$0xff]
        %v1623 = vld [vmem:[%s538 + $0x10a] sm:$0xff]
        %v1624 = vld [vmem:[%s538 + $0x112] sm:$0xff]
        %v1625 = vld [vmem:[%s538 + $0x122] sm:$0xff]
        %v1626 = vld [vmem:[%s538 + $0x12a] sm:$0xff]
        %v1627 = vld [vmem:[%s538 + $0x13a] sm:$0xff]
        %v1628 = vld [vmem:[%s538 + $0x142] sm:$0xff]
        %v1629 = vld [vmem:[%s538 + $0x152] sm:$0xff]
        %v1630 = vld [vmem:[%s538 + $0x15a] sm:$0xff]
        %v1631 = vld [vmem:[%s538 + $0x16a] sm:$0xff]
        %v1632 = vld [vmem:[%s538 + $0x172] sm:$0xff]
        %v1633 = vpack.c.bf16 %v1601, %v1601
        %v1634 = vpack.c.bf16 %v1602, %v1602
        %v1635 = vpack.c.bf16 %v1603, %v1603
        %v1636 = vpack.c.bf16 %v1604, %v1604
        %v1637 = vpack.c.bf16 %v1605, %v1605
        %v1638 = vpack.c.bf16 %v1606, %v1606
        %v1639 = vpack.c.bf16 %v1607, %v1607
        %v1640 = vpack.c.bf16 %v1608, %v1608
        %v1641 = vpack.c.bf16 %v1609, %v1609
        %v1642 = vpack.c.bf16 %v1610, %v1610
        %v1643 = vpack.c.bf16 %v1611, %v1611
        %v1644 = vpack.c.bf16 %v1612, %v1612
        %v1645 = vpack.c.bf16 %v1613, %v1613
        %v1646 = vpack.c.bf16 %v1614, %v1614
        %v1647 = vpack.c.bf16 %v1615, %v1615
        %v1648 = vpack.c.bf16 %v1616, %v1616
        %v1649 = vpack.c.bf16 %v1617, %v1617
        %v1650 = vpack.c.bf16 %v1618, %v1618
        %v1651 = vpack.c.bf16 %v1619, %v1619
        %v1652 = vpack.c.bf16 %v1620, %v1620
        %v1653 = vpack.c.bf16 %v1621, %v1621
        %v1654 = vpack.c.bf16 %v1622, %v1622
        %v1655 = vpack.c.bf16 %v1623, %v1623
        %v1656 = vpack.c.bf16 %v1624, %v1624
        %v1657 = vpack.c.bf16 %v1625, %v1625
        %v1658 = vpack.c.bf16 %v1626, %v1626
        %v1659 = vpack.c.bf16 %v1627, %v1627
        %v1660 = vpack.c.bf16 %v1628, %v1628
        %v1661 = vpack.c.bf16 %v1629, %v1629
        %v1662 = vpack.c.bf16 %v1630, %v1630
        %v1663 = vpack.c.bf16 %v1631, %v1631
        %v1664 = vpack.c.bf16 %v1632, %v1632
        %1697 = vrot.lane.b32.xlu0 %v1633, 20
        %v1698 = vpop.permute.xlu0 %1697
        %1699 = vrot.lane.b32.xlu0 %v1634, 20
        %v1700 = vpop.permute.xlu0 %1699
        %1701 = vrot.lane.b32.xlu0 %v1635, 20
        %v1702 = vpop.permute.xlu0 %1701
        %1703 = vrot.lane.b32.xlu0 %v1636, 20
        %v1704 = vpop.permute.xlu0 %1703
        %1705 = vrot.lane.b32.xlu0 %v1637, 20
        %v1706 = vpop.permute.xlu0 %1705
        %1707 = vrot.lane.b32.xlu0 %v1638, 20
        %v1708 = vpop.permute.xlu0 %1707
        %1709 = vrot.lane.b32.xlu0 %v1639, 20
        %v1710 = vpop.permute.xlu0 %1709
        %1711 = vrot.lane.b32.xlu0 %v1640, 20
        %v1712 = vpop.permute.xlu0 %1711
        %1713 = vrot.lane.b32.xlu0 %v1641, 20
        %v1714 = vpop.permute.xlu0 %1713
        %1715 = vrot.lane.b32.xlu0 %v1642, 20
        %v1716 = vpop.permute.xlu0 %1715
        %1717 = vrot.lane.b32.xlu0 %v1643, 20
        %v1718 = vpop.permute.xlu0 %1717
        %1719 = vrot.lane.b32.xlu0 %v1644, 20
        %v1720 = vpop.permute.xlu0 %1719
        %1721 = vrot.lane.b32.xlu0 %v1645, 20
        %v1722 = vpop.permute.xlu0 %1721
        %1723 = vrot.lane.b32.xlu0 %v1646, 20
        %v1724 = vpop.permute.xlu0 %1723
        %1725 = vrot.lane.b32.xlu0 %v1647, 20
        %v1726 = vpop.permute.xlu0 %1725
        %1727 = vrot.lane.b32.xlu0 %v1648, 20
        %v1728 = vpop.permute.xlu0 %1727
        %1729 = vrot.lane.b32.xlu0 %v1649, 20
        %v1730 = vpop.permute.xlu0 %1729
        %1731 = vrot.lane.b32.xlu0 %v1650, 20
        %v1732 = vpop.permute.xlu0 %1731
        %1733 = vrot.lane.b32.xlu0 %v1651, 20
        %v1734 = vpop.permute.xlu0 %1733
        %1735 = vrot.lane.b32.xlu0 %v1652, 20
        %v1736 = vpop.permute.xlu0 %1735
        %1737 = vrot.lane.b32.xlu0 %v1653, 20
        %v1738 = vpop.permute.xlu0 %1737
        %1739 = vrot.lane.b32.xlu0 %v1654, 20
        %v1740 = vpop.permute.xlu0 %1739
        %1741 = vrot.lane.b32.xlu0 %v1655, 20
        %v1742 = vpop.permute.xlu0 %1741
        %1743 = vrot.lane.b32.xlu0 %v1656, 20
        %v1744 = vpop.permute.xlu0 %1743
        %1745 = vrot.lane.b32.xlu0 %v1657, 20
        %v1746 = vpop.permute.xlu0 %1745
        %1747 = vrot.lane.b32.xlu0 %v1658, 20
        %v1748 = vpop.permute.xlu0 %1747
        %1749 = vrot.lane.b32.xlu0 %v1659, 20
        %v1750 = vpop.permute.xlu0 %1749
        %1751 = vrot.lane.b32.xlu0 %v1660, 20
        %v1752 = vpop.permute.xlu0 %1751
        %1753 = vrot.lane.b32.xlu0 %v1661, 20
        %v1754 = vpop.permute.xlu0 %1753
        %1755 = vrot.lane.b32.xlu0 %v1662, 20
        %v1756 = vpop.permute.xlu0 %1755
        %1757 = vrot.lane.b32.xlu0 %v1663, 20
        %v1758 = vpop.permute.xlu0 %1757
        %1759 = vrot.lane.b32.xlu0 %v1664, 20
        %v1760 = vpop.permute.xlu0 %1759
        %vm1793 = vcmask 191648
        %1794 = vst.msk [vmem:[#allocation3] sm:$0xf] %vm1793, %v1698
        %1795 = vst.msk [vmem:[#allocation3 + $0x4] sm:$0xf] %vm1793, %v1700
        %1796 = vst.msk [vmem:[#allocation3 + $0x8] sm:$0xf] %vm1793, %v1702
        %1797 = vst.msk [vmem:[#allocation3 + $0xc] sm:$0xf] %vm1793, %v1704
        %1798 = vst.msk [vmem:[#allocation3 + $0x10] sm:$0xf] %vm1793, %v1706
        %1799 = vst.msk [vmem:[#allocation3 + $0x14] sm:$0xf] %vm1793, %v1708
        %1800 = vst.msk [vmem:[#allocation3 + $0x18] sm:$0xf] %vm1793, %v1710
        %1801 = vst.msk [vmem:[#allocation3 + $0x1c] sm:$0xf] %vm1793, %v1712
        %1802 = vst.msk [vmem:[#allocation3 + $0x20] sm:$0xf] %vm1793, %v1714
        %1803 = vst.msk [vmem:[#allocation3 + $0x24] sm:$0xf] %vm1793, %v1716
        %1804 = vst.msk [vmem:[#allocation3 + $0x28] sm:$0xf] %vm1793, %v1718
        %1805 = vst.msk [vmem:[#allocation3 + $0x2c] sm:$0xf] %vm1793, %v1720
        %1806 = vst.msk [vmem:[#allocation3 + $0x30] sm:$0xf] %vm1793, %v1722
        %1807 = vst.msk [vmem:[#allocation3 + $0x34] sm:$0xf] %vm1793, %v1724
        %1808 = vst.msk [vmem:[#allocation3 + $0x38] sm:$0xf] %vm1793, %v1726
        %1809 = vst.msk [vmem:[#allocation3 + $0x3c] sm:$0xf] %vm1793, %v1728
        %1810 = vst.msk [vmem:[#allocation3 + $0x40] sm:$0xf] %vm1793, %v1730
        %1811 = vst.msk [vmem:[#allocation3 + $0x44] sm:$0xf] %vm1793, %v1732
        %1812 = vst.msk [vmem:[#allocation3 + $0x48] sm:$0xf] %vm1793, %v1734
        %1813 = vst.msk [vmem:[#allocation3 + $0x4c] sm:$0xf] %vm1793, %v1736
        %1814 = vst.msk [vmem:[#allocation3 + $0x50] sm:$0xf] %vm1793, %v1738
        %1815 = vst.msk [vmem:[#allocation3 + $0x54] sm:$0xf] %vm1793, %v1740
        %1816 = vst.msk [vmem:[#allocation3 + $0x58] sm:$0xf] %vm1793, %v1742
        %1817 = vst.msk [vmem:[#allocation3 + $0x5c] sm:$0xf] %vm1793, %v1744
        %1818 = vst.msk [vmem:[#allocation3 + $0x60] sm:$0xf] %vm1793, %v1746
        %1819 = vst.msk [vmem:[#allocation3 + $0x64] sm:$0xf] %vm1793, %v1748
        %1820 = vst.msk [vmem:[#allocation3 + $0x68] sm:$0xf] %vm1793, %v1750
        %1821 = vst.msk [vmem:[#allocation3 + $0x6c] sm:$0xf] %vm1793, %v1752
        %1822 = vst.msk [vmem:[#allocation3 + $0x70] sm:$0xf] %vm1793, %v1754
        %1823 = vst.msk [vmem:[#allocation3 + $0x74] sm:$0xf] %vm1793, %v1756
        %1824 = vst.msk [vmem:[#allocation3 + $0x78] sm:$0xf] %vm1793, %v1758
        %1825 = vst.msk [vmem:[#allocation3 + $0x7c] sm:$0xf] %vm1793, %v1760
        %s1826 = scalar_lea.vmem [#allocation2], 48
        %v1827 = vld [vmem:[%s1826] sm:$0xff]
        %v1828 = vld [vmem:[%s1826 + $0x8] sm:$0xff]
        %v1829 = vld [vmem:[%s1826 + $0x18] sm:$0xff]
        %v1830 = vld [vmem:[%s1826 + $0x20] sm:$0xff]
        %v1831 = vld [vmem:[%s1826 + $0x30] sm:$0xff]
        %v1832 = vld [vmem:[%s1826 + $0x38] sm:$0xff]
        %v1833 = vld [vmem:[%s1826 + $0x48] sm:$0xff]
        %v1834 = vld [vmem:[%s1826 + $0x50] sm:$0xff]
        %v1835 = vld [vmem:[%s1826 + $0x60] sm:$0xff]
        %v1836 = vld [vmem:[%s1826 + $0x68] sm:$0xff]
        %v1837 = vld [vmem:[%s1826 + $0x78] sm:$0xff]
        %v1838 = vld [vmem:[%s1826 + $0x80] sm:$0xff]
        %v1839 = vld [vmem:[%s1826 + $0x90] sm:$0xff]
        %v1840 = vld [vmem:[%s1826 + $0x98] sm:$0xff]
        %v1841 = vld [vmem:[%s1826 + $0xa8] sm:$0xff]
        %v1842 = vld [vmem:[%s1826 + $0xb0] sm:$0xff]
        %v1843 = vld [vmem:[%s1826 + $0xc0] sm:$0xff]
        %v1844 = vld [vmem:[%s1826 + $0xc8] sm:$0xff]
        %v1845 = vld [vmem:[%s1826 + $0xd8] sm:$0xff]
        %v1846 = vld [vmem:[%s1826 + $0xe0] sm:$0xff]
        %v1847 = vld [vmem:[%s1826 + $0xf0] sm:$0xff]
        %v1848 = vld [vmem:[%s1826 + $0xf8] sm:$0xff]
        %v1849 = vld [vmem:[%s1826 + $0x108] sm:$0xff]
        %v1850 = vld [vmem:[%s1826 + $0x110] sm:$0xff]
        %v1851 = vld [vmem:[%s1826 + $0x120] sm:$0xff]
        %v1852 = vld [vmem:[%s1826 + $0x128] sm:$0xff]
        %v1853 = vld [vmem:[%s1826 + $0x138] sm:$0xff]
        %v1854 = vld [vmem:[%s1826 + $0x140] sm:$0xff]
        %v1855 = vld [vmem:[%s1826 + $0x150] sm:$0xff]
        %v1856 = vld [vmem:[%s1826 + $0x158] sm:$0xff]
        %v1857 = vld [vmem:[%s1826 + $0x168] sm:$0xff]
        %v1858 = vld [vmem:[%s1826 + $0x170] sm:$0xff]
        %v1859 = vpack.c.bf16 %v1827, %v1827
        %v1860 = vpack.c.bf16 %v1828, %v1828
        %v1861 = vpack.c.bf16 %v1829, %v1829
        %v1862 = vpack.c.bf16 %v1830, %v1830
        %v1863 = vpack.c.bf16 %v1831, %v1831
        %v1864 = vpack.c.bf16 %v1832, %v1832
        %v1865 = vpack.c.bf16 %v1833, %v1833
        %v1866 = vpack.c.bf16 %v1834, %v1834
        %v1867 = vpack.c.bf16 %v1835, %v1835
        %v1868 = vpack.c.bf16 %v1836, %v1836
        %v1869 = vpack.c.bf16 %v1837, %v1837
        %v1870 = vpack.c.bf16 %v1838, %v1838
        %v1871 = vpack.c.bf16 %v1839, %v1839
        %v1872 = vpack.c.bf16 %v1840, %v1840
        %v1873 = vpack.c.bf16 %v1841, %v1841
        %v1874 = vpack.c.bf16 %v1842, %v1842
        %v1875 = vpack.c.bf16 %v1843, %v1843
        %v1876 = vpack.c.bf16 %v1844, %v1844
        %v1877 = vpack.c.bf16 %v1845, %v1845
        %v1878 = vpack.c.bf16 %v1846, %v1846
        %v1879 = vpack.c.bf16 %v1847, %v1847
        %v1880 = vpack.c.bf16 %v1848, %v1848
        %v1881 = vpack.c.bf16 %v1849, %v1849
        %v1882 = vpack.c.bf16 %v1850, %v1850
        %v1883 = vpack.c.bf16 %v1851, %v1851
        %v1884 = vpack.c.bf16 %v1852, %v1852
        %v1885 = vpack.c.bf16 %v1853, %v1853
        %v1886 = vpack.c.bf16 %v1854, %v1854
        %v1887 = vpack.c.bf16 %v1855, %v1855
        %v1888 = vpack.c.bf16 %v1856, %v1856
        %v1889 = vpack.c.bf16 %v1857, %v1857
        %v1890 = vpack.c.bf16 %v1858, %v1858
        %1923 = vrot.lane.b32.xlu0 %v1859, 24
        %v1924 = vpop.permute.xlu0 %1923
        %1925 = vrot.lane.b32.xlu0 %v1860, 24
        %v1926 = vpop.permute.xlu0 %1925
        %1927 = vrot.lane.b32.xlu0 %v1861, 24
        %v1928 = vpop.permute.xlu0 %1927
        %1929 = vrot.lane.b32.xlu0 %v1862, 24
        %v1930 = vpop.permute.xlu0 %1929
        %1931 = vrot.lane.b32.xlu0 %v1863, 24
        %v1932 = vpop.permute.xlu0 %1931
        %1933 = vrot.lane.b32.xlu0 %v1864, 24
        %v1934 = vpop.permute.xlu0 %1933
        %1935 = vrot.lane.b32.xlu0 %v1865, 24
        %v1936 = vpop.permute.xlu0 %1935
        %1937 = vrot.lane.b32.xlu0 %v1866, 24
        %v1938 = vpop.permute.xlu0 %1937
        %1939 = vrot.lane.b32.xlu0 %v1867, 24
        %v1940 = vpop.permute.xlu0 %1939
        %1941 = vrot.lane.b32.xlu0 %v1868, 24
        %v1942 = vpop.permute.xlu0 %1941
        %1943 = vrot.lane.b32.xlu0 %v1869, 24
        %v1944 = vpop.permute.xlu0 %1943
        %1945 = vrot.lane.b32.xlu0 %v1870, 24
        %v1946 = vpop.permute.xlu0 %1945
        %1947 = vrot.lane.b32.xlu0 %v1871, 24
        %v1948 = vpop.permute.xlu0 %1947
        %1949 = vrot.lane.b32.xlu0 %v1872, 24
        %v1950 = vpop.permute.xlu0 %1949
        %1951 = vrot.lane.b32.xlu0 %v1873, 24
        %v1952 = vpop.permute.xlu0 %1951
        %1953 = vrot.lane.b32.xlu0 %v1874, 24
        %v1954 = vpop.permute.xlu0 %1953
        %1955 = vrot.lane.b32.xlu0 %v1875, 24
        %v1956 = vpop.permute.xlu0 %1955
        %1957 = vrot.lane.b32.xlu0 %v1876, 24
        %v1958 = vpop.permute.xlu0 %1957
        %1959 = vrot.lane.b32.xlu0 %v1877, 24
        %v1960 = vpop.permute.xlu0 %1959
        %1961 = vrot.lane.b32.xlu0 %v1878, 24
        %v1962 = vpop.permute.xlu0 %1961
        %1963 = vrot.lane.b32.xlu0 %v1879, 24
        %v1964 = vpop.permute.xlu0 %1963
        %1965 = vrot.lane.b32.xlu0 %v1880, 24
        %v1966 = vpop.permute.xlu0 %1965
        %1967 = vrot.lane.b32.xlu0 %v1881, 24
        %v1968 = vpop.permute.xlu0 %1967
        %1969 = vrot.lane.b32.xlu0 %v1882, 24
        %v1970 = vpop.permute.xlu0 %1969
        %1971 = vrot.lane.b32.xlu0 %v1883, 24
        %v1972 = vpop.permute.xlu0 %1971
        %1973 = vrot.lane.b32.xlu0 %v1884, 24
        %v1974 = vpop.permute.xlu0 %1973
        %1975 = vrot.lane.b32.xlu0 %v1885, 24
        %v1976 = vpop.permute.xlu0 %1975
        %1977 = vrot.lane.b32.xlu0 %v1886, 24
        %v1978 = vpop.permute.xlu0 %1977
        %1979 = vrot.lane.b32.xlu0 %v1887, 24
        %v1980 = vpop.permute.xlu0 %1979
        %1981 = vrot.lane.b32.xlu0 %v1888, 24
        %v1982 = vpop.permute.xlu0 %1981
        %1983 = vrot.lane.b32.xlu0 %v1889, 24
        %v1984 = vpop.permute.xlu0 %1983
        %1985 = vrot.lane.b32.xlu0 %v1890, 24
        %v1986 = vpop.permute.xlu0 %1985
        %vm2019 = vcmask 224448
        %2020 = vst.msk [vmem:[#allocation3] sm:$0xf] %vm2019, %v1924
        %2021 = vst.msk [vmem:[#allocation3 + $0x4] sm:$0xf] %vm2019, %v1926
        %2022 = vst.msk [vmem:[#allocation3 + $0x8] sm:$0xf] %vm2019, %v1928
        %2023 = vst.msk [vmem:[#allocation3 + $0xc] sm:$0xf] %vm2019, %v1930
        %2024 = vst.msk [vmem:[#allocation3 + $0x10] sm:$0xf] %vm2019, %v1932
        %2025 = vst.msk [vmem:[#allocation3 + $0x14] sm:$0xf] %vm2019, %v1934
        %2026 = vst.msk [vmem:[#allocation3 + $0x18] sm:$0xf] %vm2019, %v1936
        %2027 = vst.msk [vmem:[#allocation3 + $0x1c] sm:$0xf] %vm2019, %v1938
        %2028 = vst.msk [vmem:[#allocation3 + $0x20] sm:$0xf] %vm2019, %v1940
        %2029 = vst.msk [vmem:[#allocation3 + $0x24] sm:$0xf] %vm2019, %v1942
        %2030 = vst.msk [vmem:[#allocation3 + $0x28] sm:$0xf] %vm2019, %v1944
        %2031 = vst.msk [vmem:[#allocation3 + $0x2c] sm:$0xf] %vm2019, %v1946
        %2032 = vst.msk [vmem:[#allocation3 + $0x30] sm:$0xf] %vm2019, %v1948
        %2033 = vst.msk [vmem:[#allocation3 + $0x34] sm:$0xf] %vm2019, %v1950
        %2034 = vst.msk [vmem:[#allocation3 + $0x38] sm:$0xf] %vm2019, %v1952
        %2035 = vst.msk [vmem:[#allocation3 + $0x3c] sm:$0xf] %vm2019, %v1954
        %2036 = vst.msk [vmem:[#allocation3 + $0x40] sm:$0xf] %vm2019, %v1956
        %2037 = vst.msk [vmem:[#allocation3 + $0x44] sm:$0xf] %vm2019, %v1958
        %2038 = vst.msk [vmem:[#allocation3 + $0x48] sm:$0xf] %vm2019, %v1960
        %2039 = vst.msk [vmem:[#allocation3 + $0x4c] sm:$0xf] %vm2019, %v1962
        %2040 = vst.msk [vmem:[#allocation3 + $0x50] sm:$0xf] %vm2019, %v1964
        %2041 = vst.msk [vmem:[#allocation3 + $0x54] sm:$0xf] %vm2019, %v1966
        %2042 = vst.msk [vmem:[#allocation3 + $0x58] sm:$0xf] %vm2019, %v1968
        %2043 = vst.msk [vmem:[#allocation3 + $0x5c] sm:$0xf] %vm2019, %v1970
        %2044 = vst.msk [vmem:[#allocation3 + $0x60] sm:$0xf] %vm2019, %v1972
        %2045 = vst.msk [vmem:[#allocation3 + $0x64] sm:$0xf] %vm2019, %v1974
        %2046 = vst.msk [vmem:[#allocation3 + $0x68] sm:$0xf] %vm2019, %v1976
        %2047 = vst.msk [vmem:[#allocation3 + $0x6c] sm:$0xf] %vm2019, %v1978
        %2048 = vst.msk [vmem:[#allocation3 + $0x70] sm:$0xf] %vm2019, %v1980
        %2049 = vst.msk [vmem:[#allocation3 + $0x74] sm:$0xf] %vm2019, %v1982
        %2050 = vst.msk [vmem:[#allocation3 + $0x78] sm:$0xf] %vm2019, %v1984
        %2051 = vst.msk [vmem:[#allocation3 + $0x7c] sm:$0xf] %vm2019, %v1986
        %v2052 = vld [vmem:[%s1826 + $0x1] sm:$0xff]
        %v2053 = vld [vmem:[%s1826 + $0x9] sm:$0xff]
        %v2054 = vld [vmem:[%s1826 + $0x19] sm:$0xff]
        %v2055 = vld [vmem:[%s1826 + $0x21] sm:$0xff]
        %v2056 = vld [vmem:[%s1826 + $0x31] sm:$0xff]
        %v2057 = vld [vmem:[%s1826 + $0x39] sm:$0xff]
        %v2058 = vld [vmem:[%s1826 + $0x49] sm:$0xff]
        %v2059 = vld [vmem:[%s1826 + $0x51] sm:$0xff]
        %v2060 = vld [vmem:[%s1826 + $0x61] sm:$0xff]
        %v2061 = vld [vmem:[%s1826 + $0x69] sm:$0xff]
        %v2062 = vld [vmem:[%s1826 + $0x79] sm:$0xff]
        %v2063 = vld [vmem:[%s1826 + $0x81] sm:$0xff]
        %v2064 = vld [vmem:[%s1826 + $0x91] sm:$0xff]
        %v2065 = vld [vmem:[%s1826 + $0x99] sm:$0xff]
        %v2066 = vld [vmem:[%s1826 + $0xa9] sm:$0xff]
        %v2067 = vld [vmem:[%s1826 + $0xb1] sm:$0xff]
        %v2068 = vld [vmem:[%s1826 + $0xc1] sm:$0xff]
        %v2069 = vld [vmem:[%s1826 + $0xc9] sm:$0xff]
        %v2070 = vld [vmem:[%s1826 + $0xd9] sm:$0xff]
        %v2071 = vld [vmem:[%s1826 + $0xe1] sm:$0xff]
        %v2072 = vld [vmem:[%s1826 + $0xf1] sm:$0xff]
        %v2073 = vld [vmem:[%s1826 + $0xf9] sm:$0xff]
        %v2074 = vld [vmem:[%s1826 + $0x109] sm:$0xff]
        %v2075 = vld [vmem:[%s1826 + $0x111] sm:$0xff]
        %v2076 = vld [vmem:[%s1826 + $0x121] sm:$0xff]
        %v2077 = vld [vmem:[%s1826 + $0x129] sm:$0xff]
        %v2078 = vld [vmem:[%s1826 + $0x139] sm:$0xff]
        %v2079 = vld [vmem:[%s1826 + $0x141] sm:$0xff]
        %v2080 = vld [vmem:[%s1826 + $0x151] sm:$0xff]
        %v2081 = vld [vmem:[%s1826 + $0x159] sm:$0xff]
        %v2082 = vld [vmem:[%s1826 + $0x169] sm:$0xff]
        %v2083 = vld [vmem:[%s1826 + $0x171] sm:$0xff]
        %v2084 = vpack.c.bf16 %v2052, %v2052
        %v2085 = vpack.c.bf16 %v2053, %v2053
        %v2086 = vpack.c.bf16 %v2054, %v2054
        %v2087 = vpack.c.bf16 %v2055, %v2055
        %v2088 = vpack.c.bf16 %v2056, %v2056
        %v2089 = vpack.c.bf16 %v2057, %v2057
        %v2090 = vpack.c.bf16 %v2058, %v2058
        %v2091 = vpack.c.bf16 %v2059, %v2059
        %v2092 = vpack.c.bf16 %v2060, %v2060
        %v2093 = vpack.c.bf16 %v2061, %v2061
        %v2094 = vpack.c.bf16 %v2062, %v2062
        %v2095 = vpack.c.bf16 %v2063, %v2063
        %v2096 = vpack.c.bf16 %v2064, %v2064
        %v2097 = vpack.c.bf16 %v2065, %v2065
        %v2098 = vpack.c.bf16 %v2066, %v2066
        %v2099 = vpack.c.bf16 %v2067, %v2067
        %v2100 = vpack.c.bf16 %v2068, %v2068
        %v2101 = vpack.c.bf16 %v2069, %v2069
        %v2102 = vpack.c.bf16 %v2070, %v2070
        %v2103 = vpack.c.bf16 %v2071, %v2071
        %v2104 = vpack.c.bf16 %v2072, %v2072
        %v2105 = vpack.c.bf16 %v2073, %v2073
        %v2106 = vpack.c.bf16 %v2074, %v2074
        %v2107 = vpack.c.bf16 %v2075, %v2075
        %v2108 = vpack.c.bf16 %v2076, %v2076
        %v2109 = vpack.c.bf16 %v2077, %v2077
        %v2110 = vpack.c.bf16 %v2078, %v2078
        %v2111 = vpack.c.bf16 %v2079, %v2079
        %v2112 = vpack.c.bf16 %v2080, %v2080
        %v2113 = vpack.c.bf16 %v2081, %v2081
        %v2114 = vpack.c.bf16 %v2082, %v2082
        %v2115 = vpack.c.bf16 %v2083, %v2083
        %2148 = vrot.lane.b32.xlu0 %v2084, 28
        %v2149 = vpop.permute.xlu0 %2148
        %2150 = vrot.lane.b32.xlu0 %v2085, 28
        %v2151 = vpop.permute.xlu0 %2150
        %2152 = vrot.lane.b32.xlu0 %v2086, 28
        %v2153 = vpop.permute.xlu0 %2152
        %2154 = vrot.lane.b32.xlu0 %v2087, 28
        %v2155 = vpop.permute.xlu0 %2154
        %2156 = vrot.lane.b32.xlu0 %v2088, 28
        %v2157 = vpop.permute.xlu0 %2156
        %2158 = vrot.lane.b32.xlu0 %v2089, 28
        %v2159 = vpop.permute.xlu0 %2158
        %2160 = vrot.lane.b32.xlu0 %v2090, 28
        %v2161 = vpop.permute.xlu0 %2160
        %2162 = vrot.lane.b32.xlu0 %v2091, 28
        %v2163 = vpop.permute.xlu0 %2162
        %2164 = vrot.lane.b32.xlu0 %v2092, 28
        %v2165 = vpop.permute.xlu0 %2164
        %2166 = vrot.lane.b32.xlu0 %v2093, 28
        %v2167 = vpop.permute.xlu0 %2166
        %2168 = vrot.lane.b32.xlu0 %v2094, 28
        %v2169 = vpop.permute.xlu0 %2168
        %2170 = vrot.lane.b32.xlu0 %v2095, 28
        %v2171 = vpop.permute.xlu0 %2170
        %2172 = vrot.lane.b32.xlu0 %v2096, 28
        %v2173 = vpop.permute.xlu0 %2172
        %2174 = vrot.lane.b32.xlu0 %v2097, 28
        %v2175 = vpop.permute.xlu0 %2174
        %2176 = vrot.lane.b32.xlu0 %v2098, 28
        %v2177 = vpop.permute.xlu0 %2176
        %2178 = vrot.lane.b32.xlu0 %v2099, 28
        %v2179 = vpop.permute.xlu0 %2178
        %2180 = vrot.lane.b32.xlu0 %v2100, 28
        %v2181 = vpop.permute.xlu0 %2180
        %2182 = vrot.lane.b32.xlu0 %v2101, 28
        %v2183 = vpop.permute.xlu0 %2182
        %2184 = vrot.lane.b32.xlu0 %v2102, 28
        %v2185 = vpop.permute.xlu0 %2184
        %2186 = vrot.lane.b32.xlu0 %v2103, 28
        %v2187 = vpop.permute.xlu0 %2186
        %2188 = vrot.lane.b32.xlu0 %v2104, 28
        %v2189 = vpop.permute.xlu0 %2188
        %2190 = vrot.lane.b32.xlu0 %v2105, 28
        %v2191 = vpop.permute.xlu0 %2190
        %2192 = vrot.lane.b32.xlu0 %v2106, 28
        %v2193 = vpop.permute.xlu0 %2192
        %2194 = vrot.lane.b32.xlu0 %v2107, 28
        %v2195 = vpop.permute.xlu0 %2194
        %2196 = vrot.lane.b32.xlu0 %v2108, 28
        %v2197 = vpop.permute.xlu0 %2196
        %2198 = vrot.lane.b32.xlu0 %v2109, 28
        %v2199 = vpop.permute.xlu0 %2198
        %2200 = vrot.lane.b32.xlu0 %v2110, 28
        %v2201 = vpop.permute.xlu0 %2200
        %2202 = vrot.lane.b32.xlu0 %v2111, 28
        %v2203 = vpop.permute.xlu0 %2202
        %2204 = vrot.lane.b32.xlu0 %v2112, 28
        %v2205 = vpop.permute.xlu0 %2204
        %2206 = vrot.lane.b32.xlu0 %v2113, 28
        %v2207 = vpop.permute.xlu0 %2206
        %2208 = vrot.lane.b32.xlu0 %v2114, 28
        %v2209 = vpop.permute.xlu0 %2208
        %2210 = vrot.lane.b32.xlu0 %v2115, 28
        %v2211 = vpop.permute.xlu0 %2210
        %vm2244 = vcmask 257248
        %2245 = vst.msk [vmem:[#allocation3] sm:$0xf] %vm2244, %v2149
        %2246 = vst.msk [vmem:[#allocation3 + $0x4] sm:$0xf] %vm2244, %v2151
        %2247 = vst.msk [vmem:[#allocation3 + $0x8] sm:$0xf] %vm2244, %v2153
        %2248 = vst.msk [vmem:[#allocation3 + $0xc] sm:$0xf] %vm2244, %v2155
        %2249 = vst.msk [vmem:[#allocation3 + $0x10] sm:$0xf] %vm2244, %v2157
        %2250 = vst.msk [vmem:[#allocation3 + $0x14] sm:$0xf] %vm2244, %v2159
        %2251 = vst.msk [vmem:[#allocation3 + $0x18] sm:$0xf] %vm2244, %v2161
        %2252 = vst.msk [vmem:[#allocation3 + $0x1c] sm:$0xf] %vm2244, %v2163
        %2253 = vst.msk [vmem:[#allocation3 + $0x20] sm:$0xf] %vm2244, %v2165
        %2254 = vst.msk [vmem:[#allocation3 + $0x24] sm:$0xf] %vm2244, %v2167
        %2255 = vst.msk [vmem:[#allocation3 + $0x28] sm:$0xf] %vm2244, %v2169
        %2256 = vst.msk [vmem:[#allocation3 + $0x2c] sm:$0xf] %vm2244, %v2171
        %2257 = vst.msk [vmem:[#allocation3 + $0x30] sm:$0xf] %vm2244, %v2173
        %2258 = vst.msk [vmem:[#allocation3 + $0x34] sm:$0xf] %vm2244, %v2175
        %2259 = vst.msk [vmem:[#allocation3 + $0x38] sm:$0xf] %vm2244, %v2177
        %2260 = vst.msk [vmem:[#allocation3 + $0x3c] sm:$0xf] %vm2244, %v2179
        %2261 = vst.msk [vmem:[#allocation3 + $0x40] sm:$0xf] %vm2244, %v2181
        %2262 = vst.msk [vmem:[#allocation3 + $0x44] sm:$0xf] %vm2244, %v2183
        %2263 = vst.msk [vmem:[#allocation3 + $0x48] sm:$0xf] %vm2244, %v2185
        %2264 = vst.msk [vmem:[#allocation3 + $0x4c] sm:$0xf] %vm2244, %v2187
        %2265 = vst.msk [vmem:[#allocation3 + $0x50] sm:$0xf] %vm2244, %v2189
        %2266 = vst.msk [vmem:[#allocation3 + $0x54] sm:$0xf] %vm2244, %v2191
        %2267 = vst.msk [vmem:[#allocation3 + $0x58] sm:$0xf] %vm2244, %v2193
        %2268 = vst.msk [vmem:[#allocation3 + $0x5c] sm:$0xf] %vm2244, %v2195
        %2269 = vst.msk [vmem:[#allocation3 + $0x60] sm:$0xf] %vm2244, %v2197
        %2270 = vst.msk [vmem:[#allocation3 + $0x64] sm:$0xf] %vm2244, %v2199
        %2271 = vst.msk [vmem:[#allocation3 + $0x68] sm:$0xf] %vm2244, %v2201
        %2272 = vst.msk [vmem:[#allocation3 + $0x6c] sm:$0xf] %vm2244, %v2203
        %2273 = vst.msk [vmem:[#allocation3 + $0x70] sm:$0xf] %vm2244, %v2205
        %2274 = vst.msk [vmem:[#allocation3 + $0x74] sm:$0xf] %vm2244, %v2207
        %2275 = vst.msk [vmem:[#allocation3 + $0x78] sm:$0xf] %vm2244, %v2209
        %2276 = vst.msk [vmem:[#allocation3 + $0x7c] sm:$0xf] %vm2244, %v2211
        %v2277 = vld [vmem:[%s1826 + $0x2] sm:$0xff]
        %v2278 = vld [vmem:[%s1826 + $0xa] sm:$0xff]
        %v2279 = vld [vmem:[%s1826 + $0x1a] sm:$0xff]
        %v2280 = vld [vmem:[%s1826 + $0x22] sm:$0xff]
        %v2281 = vld [vmem:[%s1826 + $0x32] sm:$0xff]
        %v2282 = vld [vmem:[%s1826 + $0x3a] sm:$0xff]
        %v2283 = vld [vmem:[%s1826 + $0x4a] sm:$0xff]
        %v2284 = vld [vmem:[%s1826 + $0x52] sm:$0xff]
        %v2285 = vld [vmem:[%s1826 + $0x62] sm:$0xff]
        %v2286 = vld [vmem:[%s1826 + $0x6a] sm:$0xff]
        %v2287 = vld [vmem:[%s1826 + $0x7a] sm:$0xff]
        %v2288 = vld [vmem:[%s1826 + $0x82] sm:$0xff]
        %v2289 = vld [vmem:[%s1826 + $0x92] sm:$0xff]
        %v2290 = vld [vmem:[%s1826 + $0x9a] sm:$0xff]
        %v2291 = vld [vmem:[%s1826 + $0xaa] sm:$0xff]
        %v2292 = vld [vmem:[%s1826 + $0xb2] sm:$0xff]
        %v2293 = vld [vmem:[%s1826 + $0xc2] sm:$0xff]
        %v2294 = vld [vmem:[%s1826 + $0xca] sm:$0xff]
        %v2295 = vld [vmem:[%s1826 + $0xda] sm:$0xff]
        %v2296 = vld [vmem:[%s1826 + $0xe2] sm:$0xff]
        %v2297 = vld [vmem:[%s1826 + $0xf2] sm:$0xff]
        %v2298 = vld [vmem:[%s1826 + $0xfa] sm:$0xff]
        %v2299 = vld [vmem:[%s1826 + $0x10a] sm:$0xff]
        %v2300 = vld [vmem:[%s1826 + $0x112] sm:$0xff]
        %v2301 = vld [vmem:[%s1826 + $0x122] sm:$0xff]
        %v2302 = vld [vmem:[%s1826 + $0x12a] sm:$0xff]
        %v2303 = vld [vmem:[%s1826 + $0x13a] sm:$0xff]
        %v2304 = vld [vmem:[%s1826 + $0x142] sm:$0xff]
        %v2305 = vld [vmem:[%s1826 + $0x152] sm:$0xff]
        %v2306 = vld [vmem:[%s1826 + $0x15a] sm:$0xff]
        %v2307 = vld [vmem:[%s1826 + $0x16a] sm:$0xff]
        %v2308 = vld [vmem:[%s1826 + $0x172] sm:$0xff]
        %v2309 = vpack.c.bf16 %v2277, %v2277
        %v2310 = vpack.c.bf16 %v2278, %v2278
        %v2311 = vpack.c.bf16 %v2279, %v2279
        %v2312 = vpack.c.bf16 %v2280, %v2280
        %v2313 = vpack.c.bf16 %v2281, %v2281
        %v2314 = vpack.c.bf16 %v2282, %v2282
        %v2315 = vpack.c.bf16 %v2283, %v2283
        %v2316 = vpack.c.bf16 %v2284, %v2284
        %v2317 = vpack.c.bf16 %v2285, %v2285
        %v2318 = vpack.c.bf16 %v2286, %v2286
        %v2319 = vpack.c.bf16 %v2287, %v2287
        %v2320 = vpack.c.bf16 %v2288, %v2288
        %v2321 = vpack.c.bf16 %v2289, %v2289
        %v2322 = vpack.c.bf16 %v2290, %v2290
        %v2323 = vpack.c.bf16 %v2291, %v2291
        %v2324 = vpack.c.bf16 %v2292, %v2292
        %v2325 = vpack.c.bf16 %v2293, %v2293
        %v2326 = vpack.c.bf16 %v2294, %v2294
        %v2327 = vpack.c.bf16 %v2295, %v2295
        %v2328 = vpack.c.bf16 %v2296, %v2296
        %v2329 = vpack.c.bf16 %v2297, %v2297
        %v2330 = vpack.c.bf16 %v2298, %v2298
        %v2331 = vpack.c.bf16 %v2299, %v2299
        %v2332 = vpack.c.bf16 %v2300, %v2300
        %v2333 = vpack.c.bf16 %v2301, %v2301
        %v2334 = vpack.c.bf16 %v2302, %v2302
        %v2335 = vpack.c.bf16 %v2303, %v2303
        %v2336 = vpack.c.bf16 %v2304, %v2304
        %v2337 = vpack.c.bf16 %v2305, %v2305
        %v2338 = vpack.c.bf16 %v2306, %v2306
        %v2339 = vpack.c.bf16 %v2307, %v2307
        %v2340 = vpack.c.bf16 %v2308, %v2308
        %2373 = vrot.lane.b32.xlu0 %v2309, 32
        %v2374 = vpop.permute.xlu0 %2373
        %2375 = vrot.lane.b32.xlu0 %v2310, 32
        %v2376 = vpop.permute.xlu0 %2375
        %2377 = vrot.lane.b32.xlu0 %v2311, 32
        %v2378 = vpop.permute.xlu0 %2377
        %2379 = vrot.lane.b32.xlu0 %v2312, 32
        %v2380 = vpop.permute.xlu0 %2379
        %2381 = vrot.lane.b32.xlu0 %v2313, 32
        %v2382 = vpop.permute.xlu0 %2381
        %2383 = vrot.lane.b32.xlu0 %v2314, 32
        %v2384 = vpop.permute.xlu0 %2383
        %2385 = vrot.lane.b32.xlu0 %v2315, 32
        %v2386 = vpop.permute.xlu0 %2385
        %2387 = vrot.lane.b32.xlu0 %v2316, 32
        %v2388 = vpop.permute.xlu0 %2387
        %2389 = vrot.lane.b32.xlu0 %v2317, 32
        %v2390 = vpop.permute.xlu0 %2389
        %2391 = vrot.lane.b32.xlu0 %v2318, 32
        %v2392 = vpop.permute.xlu0 %2391
        %2393 = vrot.lane.b32.xlu0 %v2319, 32
        %v2394 = vpop.permute.xlu0 %2393
        %2395 = vrot.lane.b32.xlu0 %v2320, 32
        %v2396 = vpop.permute.xlu0 %2395
        %2397 = vrot.lane.b32.xlu0 %v2321, 32
        %v2398 = vpop.permute.xlu0 %2397
        %2399 = vrot.lane.b32.xlu0 %v2322, 32
        %v2400 = vpop.permute.xlu0 %2399
        %2401 = vrot.lane.b32.xlu0 %v2323, 32
        %v2402 = vpop.permute.xlu0 %2401
        %2403 = vrot.lane.b32.xlu0 %v2324, 32
        %v2404 = vpop.permute.xlu0 %2403
        %2405 = vrot.lane.b32.xlu0 %v2325, 32
        %v2406 = vpop.permute.xlu0 %2405
        %2407 = vrot.lane.b32.xlu0 %v2326, 32
        %v2408 = vpop.permute.xlu0 %2407
        %2409 = vrot.lane.b32.xlu0 %v2327, 32
        %v2410 = vpop.permute.xlu0 %2409
        %2411 = vrot.lane.b32.xlu0 %v2328, 32
        %v2412 = vpop.permute.xlu0 %2411
        %2413 = vrot.lane.b32.xlu0 %v2329, 32
        %v2414 = vpop.permute.xlu0 %2413
        %2415 = vrot.lane.b32.xlu0 %v2330, 32
        %v2416 = vpop.permute.xlu0 %2415
        %2417 = vrot.lane.b32.xlu0 %v2331, 32
        %v2418 = vpop.permute.xlu0 %2417
        %2419 = vrot.lane.b32.xlu0 %v2332, 32
        %v2420 = vpop.permute.xlu0 %2419
        %2421 = vrot.lane.b32.xlu0 %v2333, 32
        %v2422 = vpop.permute.xlu0 %2421
        %2423 = vrot.lane.b32.xlu0 %v2334, 32
        %v2424 = vpop.permute.xlu0 %2423
        %2425 = vrot.lane.b32.xlu0 %v2335, 32
        %v2426 = vpop.permute.xlu0 %2425
        %2427 = vrot.lane.b32.xlu0 %v2336, 32
        %v2428 = vpop.permute.xlu0 %2427
        %2429 = vrot.lane.b32.xlu0 %v2337, 32
        %v2430 = vpop.permute.xlu0 %2429
        %2431 = vrot.lane.b32.xlu0 %v2338, 32
        %v2432 = vpop.permute.xlu0 %2431
        %2433 = vrot.lane.b32.xlu0 %v2339, 32
        %v2434 = vpop.permute.xlu0 %2433
        %2435 = vrot.lane.b32.xlu0 %v2340, 32
        %v2436 = vpop.permute.xlu0 %2435
        %vm2469 = vcmask 290048
        %2470 = vst.msk [vmem:[#allocation3] sm:$0xf] %vm2469, %v2374
        %2471 = vst.msk [vmem:[#allocation3 + $0x4] sm:$0xf] %vm2469, %v2376
        %2472 = vst.msk [vmem:[#allocation3 + $0x8] sm:$0xf] %vm2469, %v2378
        %2473 = vst.msk [vmem:[#allocation3 + $0xc] sm:$0xf] %vm2469, %v2380
        %2474 = vst.msk [vmem:[#allocation3 + $0x10] sm:$0xf] %vm2469, %v2382
        %2475 = vst.msk [vmem:[#allocation3 + $0x14] sm:$0xf] %vm2469, %v2384
        %2476 = vst.msk [vmem:[#allocation3 + $0x18] sm:$0xf] %vm2469, %v2386
        %2477 = vst.msk [vmem:[#allocation3 + $0x1c] sm:$0xf] %vm2469, %v2388
        %2478 = vst.msk [vmem:[#allocation3 + $0x20] sm:$0xf] %vm2469, %v2390
        %2479 = vst.msk [vmem:[#allocation3 + $0x24] sm:$0xf] %vm2469, %v2392
        %2480 = vst.msk [vmem:[#allocation3 + $0x28] sm:$0xf] %vm2469, %v2394
        %2481 = vst.msk [vmem:[#allocation3 + $0x2c] sm:$0xf] %vm2469, %v2396
        %2482 = vst.msk [vmem:[#allocation3 + $0x30] sm:$0xf] %vm2469, %v2398
        %2483 = vst.msk [vmem:[#allocation3 + $0x34] sm:$0xf] %vm2469, %v2400
        %2484 = vst.msk [vmem:[#allocation3 + $0x38] sm:$0xf] %vm2469, %v2402
        %2485 = vst.msk [vmem:[#allocation3 + $0x3c] sm:$0xf] %vm2469, %v2404
        %2486 = vst.msk [vmem:[#allocation3 + $0x40] sm:$0xf] %vm2469, %v2406
        %2487 = vst.msk [vmem:[#allocation3 + $0x44] sm:$0xf] %vm2469, %v2408
        %2488 = vst.msk [vmem:[#allocation3 + $0x48] sm:$0xf] %vm2469, %v2410
        %2489 = vst.msk [vmem:[#allocation3 + $0x4c] sm:$0xf] %vm2469, %v2412
        %2490 = vst.msk [vmem:[#allocation3 + $0x50] sm:$0xf] %vm2469, %v2414
        %2491 = vst.msk [vmem:[#allocation3 + $0x54] sm:$0xf] %vm2469, %v2416
        %2492 = vst.msk [vmem:[#allocation3 + $0x58] sm:$0xf] %vm2469, %v2418
        %2493 = vst.msk [vmem:[#allocation3 + $0x5c] sm:$0xf] %vm2469, %v2420
        %2494 = vst.msk [vmem:[#allocation3 + $0x60] sm:$0xf] %vm2469, %v2422
        %2495 = vst.msk [vmem:[#allocation3 + $0x64] sm:$0xf] %vm2469, %v2424
        %2496 = vst.msk [vmem:[#allocation3 + $0x68] sm:$0xf] %vm2469, %v2426
        %2497 = vst.msk [vmem:[#allocation3 + $0x6c] sm:$0xf] %vm2469, %v2428
        %2498 = vst.msk [vmem:[#allocation3 + $0x70] sm:$0xf] %vm2469, %v2430
        %2499 = vst.msk [vmem:[#allocation3 + $0x74] sm:$0xf] %vm2469, %v2432
        %2500 = vst.msk [vmem:[#allocation3 + $0x78] sm:$0xf] %vm2469, %v2434
        %2501 = vst.msk [vmem:[#allocation3 + $0x7c] sm:$0xf] %vm2469, %v2436
        %v2502 = vld [vmem:[#allocation3] sm:$0xf]
        %v2503 = vld [vmem:[#allocation3 + $0x4] sm:$0xf]
        %v2504 = vld [vmem:[#allocation3 + $0x8] sm:$0xf]
        %v2505 = vld [vmem:[#allocation3 + $0xc] sm:$0xf]
        %v2506 = vld [vmem:[#allocation3 + $0x10] sm:$0xf]
        %v2507 = vld [vmem:[#allocation3 + $0x14] sm:$0xf]
        %v2508 = vld [vmem:[#allocation3 + $0x18] sm:$0xf]
        %v2509 = vld [vmem:[#allocation3 + $0x1c] sm:$0xf]
        %v2510 = vld [vmem:[#allocation3 + $0x20] sm:$0xf]
        %v2511 = vld [vmem:[#allocation3 + $0x24] sm:$0xf]
        %v2512 = vld [vmem:[#allocation3 + $0x28] sm:$0xf]
        %v2513 = vld [vmem:[#allocation3 + $0x2c] sm:$0xf]
        %v2514 = vld [vmem:[#allocation3 + $0x30] sm:$0xf]
        %v2515 = vld [vmem:[#allocation3 + $0x34] sm:$0xf]
        %v2516 = vld [vmem:[#allocation3 + $0x38] sm:$0xf]
        %v2517 = vld [vmem:[#allocation3 + $0x3c] sm:$0xf]
        %v2518 = vld [vmem:[#allocation3 + $0x40] sm:$0xf]
        %v2519 = vld [vmem:[#allocation3 + $0x44] sm:$0xf]
        %v2520 = vld [vmem:[#allocation3 + $0x48] sm:$0xf]
        %v2521 = vld [vmem:[#allocation3 + $0x4c] sm:$0xf]
        %v2522 = vld [vmem:[#allocation3 + $0x50] sm:$0xf]
        %v2523 = vld [vmem:[#allocation3 + $0x54] sm:$0xf]
        %v2524 = vld [vmem:[#allocation3 + $0x58] sm:$0xf]
        %v2525 = vld [vmem:[#allocation3 + $0x5c] sm:$0xf]
        %v2526 = vld [vmem:[#allocation3 + $0x60] sm:$0xf]
        %v2527 = vld [vmem:[#allocation3 + $0x64] sm:$0xf]
        %v2528 = vld [vmem:[#allocation3 + $0x68] sm:$0xf]
        %v2529 = vld [vmem:[#allocation3 + $0x6c] sm:$0xf]
        %v2530 = vld [vmem:[#allocation3 + $0x70] sm:$0xf]
        %v2531 = vld [vmem:[#allocation3 + $0x74] sm:$0xf]
        %v2532 = vld [vmem:[#allocation3 + $0x78] sm:$0xf]
        %v2533 = vld [vmem:[#allocation3 + $0x7c] sm:$0xf]
        %v2534 = vld [vmem:[%s3] sm:$0xf]
        %v2535 = vld [vmem:[%s3 + $0x4] sm:$0xf]
        %v2536 = vld [vmem:[%s3 + $0x8] sm:$0xf]
        %v2537 = vld [vmem:[%s3 + $0xc] sm:$0xf]
        %v2538 = vld [vmem:[%s3 + $0x10] sm:$0x3]
        %v2539 = vld [vmem:[%s4] sm:$0x1]
        %v2541 = vperm.slane %v2539, 0
        %v2575 = vunpack.c.l.b16 %v2502
        %v2576 = vunpack.c.l.b16 %v2503
        %v2577 = vunpack.c.l.b16 %v2504
        %v2578 = vunpack.c.l.b16 %v2505
        %v2579 = vunpack.c.l.b16 %v2506
        %v2580 = vunpack.c.l.b16 %v2507
        %v2581 = vunpack.c.l.b16 %v2508
        %v2582 = vunpack.c.l.b16 %v2509
        %v2583 = vunpack.c.l.b16 %v2510
        %v2584 = vunpack.c.l.b16 %v2511
        %v2585 = vunpack.c.l.b16 %v2512
        %v2586 = vunpack.c.l.b16 %v2513
        %v2587 = vunpack.c.l.b16 %v2514
        %v2588 = vunpack.c.l.b16 %v2515
        %v2589 = vunpack.c.l.b16 %v2516
        %v2590 = vunpack.c.l.b16 %v2517
        %v2591 = vunpack.c.l.b16 %v2518
        %v2592 = vunpack.c.l.b16 %v2519
        %v2593 = vunpack.c.l.b16 %v2520
        %v2594 = vunpack.c.l.b16 %v2521
        %v2595 = vunpack.c.l.b16 %v2522
        %v2596 = vunpack.c.l.b16 %v2523
        %v2597 = vunpack.c.l.b16 %v2524
        %v2598 = vunpack.c.l.b16 %v2525
        %v2599 = vunpack.c.l.b16 %v2526
        %v2600 = vunpack.c.l.b16 %v2527
        %v2601 = vunpack.c.l.b16 %v2528
        %v2602 = vunpack.c.l.b16 %v2529
        %v2603 = vunpack.c.l.b16 %v2530
        %v2604 = vunpack.c.l.b16 %v2531
        %v2605 = vunpack.c.l.b16 %v2532
        %v2606 = vunpack.c.l.b16 %v2533
        %v2607 = vpack.c.b16 %v2576, %v2575
        %v2608 = vpack.c.b16 %v2578, %v2577
        %v2609 = vpack.c.b16 %v2580, %v2579
        %v2610 = vpack.c.b16 %v2582, %v2581
        %v2611 = vpack.c.b16 %v2584, %v2583
        %v2612 = vpack.c.b16 %v2586, %v2585
        %v2613 = vpack.c.b16 %v2588, %v2587
        %v2614 = vpack.c.b16 %v2590, %v2589
        %v2615 = vpack.c.b16 %v2592, %v2591
        %v2616 = vpack.c.b16 %v2594, %v2593
        %v2617 = vpack.c.b16 %v2596, %v2595
        %v2618 = vpack.c.b16 %v2598, %v2597
        %v2619 = vpack.c.b16 %v2600, %v2599
        %v2620 = vpack.c.b16 %v2602, %v2601
        %v2621 = vpack.c.b16 %v2604, %v2603
        %v2622 = vpack.c.b16 %v2606, %v2605
        %v2628 = vunpack.c.l.b16 %v2534
        %v2629 = vunpack.c.l.b16 %v2535
        %v2630 = vunpack.c.l.b16 %v2536
        %v2631 = vunpack.c.l.b16 %v2537
        %v2632 = vunpack.c.l.b16 %v2538
        %v2633 = vpack.c.b16 %v2629, %v2628
        %v2634 = vpack.c.b16 %v2631, %v2630
        %v2635 = vpack.c.b16 %v2632, %v2632
        %vm2638 = vcmask 293888
        %v2640 = vsel %vm2638, %v2607, 0
        %v2643 = vsel %vm2638, %v2608, 0
        %v2646 = vsel %vm2638, %v2609, 0
        %v2649 = vsel %vm2638, %v2610, 0
        %v2652 = vsel %vm2638, %v2611, 0
        %v2655 = vsel %vm2638, %v2612, 0
        %v2658 = vsel %vm2638, %v2613, 0
        %v2661 = vsel %vm2638, %v2614, 0
        %v2664 = vsel %vm2638, %v2615, 0
        %v2667 = vsel %vm2638, %v2616, 0
        %v2670 = vsel %vm2638, %v2617, 0
        %v2673 = vsel %vm2638, %v2618, 0
        %v2676 = vsel %vm2638, %v2619, 0
        %v2679 = vsel %vm2638, %v2620, 0
        %v2682 = vsel %vm2638, %v2621, 0
        %v2685 = vsel %vm2638, %v2622, 0
        %vm2687 = vcmask 1041408
        %v2689 = vsel %vm2687, %v2635, 0
        %2691 = vmatpush.bf16.msra.mxu0 0
        %2692 = vmatpush.bf16.msra.mxu0 0
        %2693 = vmatpush.bf16.msra.mxu0 0
        %2694 = vmatpush.bf16.msra.mxu0 0
        %2695 = vmatpush.bf16.msra.mxu0 0
        %2696 = vmatpush.bf16.msra.mxu0 %v2689
        %2697 = vmatpush.bf16.msra.mxu0 %v2634
        %2698 = vmatpush.bf16.msra.mxu0 %v2633
        %2699 = vmatmul.bf16.gmra.mxu0 %v2640
        %v2700 = vpop.f32.mrf.mxu0
        %v2701 = vadd.f32 %v2541, %v2700
        %v2702 = vpop.f32.mrf.mxu0
        %v2703 = vadd.f32 %v2541, %v2702
        %2704 = vmatmul.bf16.gmra.mxu0 %v2643
        %v2705 = vpop.f32.mrf.mxu0
        %v2706 = vadd.f32 %v2541, %v2705
        %v2707 = vpop.f32.mrf.mxu0
        %v2708 = vadd.f32 %v2541, %v2707
        %2709 = vmatmul.bf16.gmra.mxu0 %v2646
        %v2710 = vpop.f32.mrf.mxu0
        %v2711 = vadd.f32 %v2541, %v2710
        %v2712 = vpop.f32.mrf.mxu0
        %v2713 = vadd.f32 %v2541, %v2712
        %2714 = vmatmul.bf16.gmra.mxu0 %v2649
        %v2715 = vpop.f32.mrf.mxu0
        %v2716 = vadd.f32 %v2541, %v2715
        %v2717 = vpop.f32.mrf.mxu0
        %v2718 = vadd.f32 %v2541, %v2717
        %2719 = vmatmul.bf16.gmra.mxu0 %v2652
        %v2720 = vpop.f32.mrf.mxu0
        %v2721 = vadd.f32 %v2541, %v2720
        %v2722 = vpop.f32.mrf.mxu0
        %v2723 = vadd.f32 %v2541, %v2722
        %2724 = vmatmul.bf16.gmra.mxu0 %v2655
        %v2725 = vpop.f32.mrf.mxu0
        %v2726 = vadd.f32 %v2541, %v2725
        %v2727 = vpop.f32.mrf.mxu0
        %v2728 = vadd.f32 %v2541, %v2727
        %2729 = vmatmul.bf16.gmra.mxu0 %v2658
        %v2730 = vpop.f32.mrf.mxu0
        %v2731 = vadd.f32 %v2541, %v2730
        %v2732 = vpop.f32.mrf.mxu0
        %v2733 = vadd.f32 %v2541, %v2732
        %2734 = vmatmul.bf16.gmra.mxu0 %v2661
        %v2735 = vpop.f32.mrf.mxu0
        %v2736 = vadd.f32 %v2541, %v2735
        %v2737 = vpop.f32.mrf.mxu0
        %v2738 = vadd.f32 %v2541, %v2737
        %2739 = vmatmul.bf16.gmra.mxu0 %v2664
        %v2740 = vpop.f32.mrf.mxu0
        %v2741 = vadd.f32 %v2541, %v2740
        %v2742 = vpop.f32.mrf.mxu0
        %v2743 = vadd.f32 %v2541, %v2742
        %2744 = vmatmul.bf16.gmra.mxu0 %v2667
        %v2745 = vpop.f32.mrf.mxu0
        %v2746 = vadd.f32 %v2541, %v2745
        %v2747 = vpop.f32.mrf.mxu0
        %v2748 = vadd.f32 %v2541, %v2747
        %2749 = vmatmul.bf16.gmra.mxu0 %v2670
        %v2750 = vpop.f32.mrf.mxu0
        %v2751 = vadd.f32 %v2541, %v2750
        %v2752 = vpop.f32.mrf.mxu0
        %v2753 = vadd.f32 %v2541, %v2752
        %2754 = vmatmul.bf16.gmra.mxu0 %v2673
        %v2755 = vpop.f32.mrf.mxu0
        %v2756 = vadd.f32 %v2541, %v2755
        %v2757 = vpop.f32.mrf.mxu0
        %v2758 = vadd.f32 %v2541, %v2757
        %2759 = vmatmul.bf16.gmra.mxu0 %v2676
        %v2760 = vpop.f32.mrf.mxu0
        %v2761 = vadd.f32 %v2541, %v2760
        %v2762 = vpop.f32.mrf.mxu0
        %v2763 = vadd.f32 %v2541, %v2762
        %2764 = vmatmul.bf16.gmra.mxu0 %v2679
        %v2765 = vpop.f32.mrf.mxu0
        %v2766 = vadd.f32 %v2541, %v2765
        %v2767 = vpop.f32.mrf.mxu0
        %v2768 = vadd.f32 %v2541, %v2767
        %2769 = vmatmul.bf16.gmra.mxu0 %v2682
        %v2770 = vpop.f32.mrf.mxu0
        %v2771 = vadd.f32 %v2541, %v2770
        %v2772 = vpop.f32.mrf.mxu0
        %v2773 = vadd.f32 %v2541, %v2772
        %2774 = vmatmul.bf16.gmra.mxu0 %v2685
        %v2775 = vpop.f32.mrf.mxu0
        %v2776 = vadd.f32 %v2541, %v2775
        %v2777 = vpop.f32.mrf.mxu0
        %v2778 = vadd.f32 %v2541, %v2777
        %2779 = vdwg.mxu0
        %v2780 = vmax.f32 %v2701, 0.0
        %v2781 = vmax.f32 %v2703, 0.0
        %v2782 = vmax.f32 %v2706, 0.0
        %v2783 = vmax.f32 %v2708, 0.0
        %v2784 = vmax.f32 %v2711, 0.0
        %v2785 = vmax.f32 %v2713, 0.0
        %v2786 = vmax.f32 %v2716, 0.0
        %v2787 = vmax.f32 %v2718, 0.0
        %v2788 = vmax.f32 %v2721, 0.0
        %v2789 = vmax.f32 %v2723, 0.0
        %v2790 = vmax.f32 %v2726, 0.0
        %v2791 = vmax.f32 %v2728, 0.0
        %v2792 = vmax.f32 %v2731, 0.0
        %v2793 = vmax.f32 %v2733, 0.0
        %v2794 = vmax.f32 %v2736, 0.0
        %v2795 = vmax.f32 %v2738, 0.0
        %v2796 = vmax.f32 %v2741, 0.0
        %v2797 = vmax.f32 %v2743, 0.0
        %v2798 = vmax.f32 %v2746, 0.0
        %v2799 = vmax.f32 %v2748, 0.0
        %v2800 = vmax.f32 %v2751, 0.0
        %v2801 = vmax.f32 %v2753, 0.0
        %v2802 = vmax.f32 %v2756, 0.0
        %v2803 = vmax.f32 %v2758, 0.0
        %v2804 = vmax.f32 %v2761, 0.0
        %v2805 = vmax.f32 %v2763, 0.0
        %v2806 = vmax.f32 %v2766, 0.0
        %v2807 = vmax.f32 %v2768, 0.0
        %v2808 = vmax.f32 %v2771, 0.0
        %v2809 = vmax.f32 %v2773, 0.0
        %v2810 = vmax.f32 %v2776, 0.0
        %v2811 = vmax.f32 %v2778, 0.0
        %v2812 = vpack.c.bf16 %v2781, %v2780
        %v2813 = vpack.c.bf16 %v2783, %v2782
        %v2814 = vpack.c.bf16 %v2785, %v2784
        %v2815 = vpack.c.bf16 %v2787, %v2786
        %v2816 = vpack.c.bf16 %v2789, %v2788
        %v2817 = vpack.c.bf16 %v2791, %v2790
        %v2818 = vpack.c.bf16 %v2793, %v2792
        %v2819 = vpack.c.bf16 %v2795, %v2794
        %v2820 = vpack.c.bf16 %v2797, %v2796
        %v2821 = vpack.c.bf16 %v2799, %v2798
        %v2822 = vpack.c.bf16 %v2801, %v2800
        %v2823 = vpack.c.bf16 %v2803, %v2802
        %v2824 = vpack.c.bf16 %v2805, %v2804
        %v2825 = vpack.c.bf16 %v2807, %v2806
        %v2826 = vpack.c.bf16 %v2809, %v2808
        %v2827 = vpack.c.bf16 %v2811, %v2810
        %v2828 = vld [vmem:[%s5] sm:$0x3]
        %v2829 = vld [vmem:[%s6] sm:$0x1]
        %v2831 = vperm.slane %v2829, 0
        %v2834 = vsel %vm530, %v2812, 0
        %v2837 = vsel %vm530, %v2813, 0
        %v2840 = vsel %vm530, %v2814, 0
        %v2843 = vsel %vm530, %v2815, 0
        %v2846 = vsel %vm530, %v2816, 0
        %v2849 = vsel %vm530, %v2817, 0
        %v2852 = vsel %vm530, %v2818, 0
        %v2855 = vsel %vm530, %v2819, 0
        %v2858 = vsel %vm530, %v2820, 0
        %v2861 = vsel %vm530, %v2821, 0
        %v2864 = vsel %vm530, %v2822, 0
        %v2867 = vsel %vm530, %v2823, 0
        %v2870 = vsel %vm530, %v2824, 0
        %v2873 = vsel %vm530, %v2825, 0
        %v2876 = vsel %vm530, %v2826, 0
        %v2879 = vsel %vm530, %v2827, 0
        %v2882 = vsel %vm2687, %v2828, 0
        %2884 = vmatpush.bf16.msra.mxu0 0
        %2885 = vmatpush.bf16.msra.mxu0 0
        %2886 = vmatpush.bf16.msra.mxu0 0
        %2887 = vmatpush.bf16.msra.mxu0 0
        %2888 = vmatpush.bf16.msra.mxu0 0
        %2889 = vmatpush.bf16.msra.mxu0 0
        %2890 = vmatpush.bf16.msra.mxu0 0
        %2891 = vmatpush.bf16.msra.mxu0 %v2882
        %2892 = vmatmul.bf16.gmra.mxu0 %v2834
        %v2893 = vpop.f32.mrf.mxu0
        %v2894 = vadd.f32 %v2831, %v2893
        %v2895 = vpop.f32.mrf.mxu0
        %v2896 = vadd.f32 %v2831, %v2895
        %2897 = vmatmul.bf16.gmra.mxu0 %v2837
        %v2898 = vpop.f32.mrf.mxu0
        %v2899 = vadd.f32 %v2831, %v2898
        %v2900 = vpop.f32.mrf.mxu0
        %v2901 = vadd.f32 %v2831, %v2900
        %2902 = vmatmul.bf16.gmra.mxu0 %v2840
        %v2903 = vpop.f32.mrf.mxu0
        %v2904 = vadd.f32 %v2831, %v2903
        %v2905 = vpop.f32.mrf.mxu0
        %v2906 = vadd.f32 %v2831, %v2905
        %2907 = vmatmul.bf16.gmra.mxu0 %v2843
        %v2908 = vpop.f32.mrf.mxu0
        %v2909 = vadd.f32 %v2831, %v2908
        %v2910 = vpop.f32.mrf.mxu0
        %v2911 = vadd.f32 %v2831, %v2910
        %2912 = vmatmul.bf16.gmra.mxu0 %v2846
        %v2913 = vpop.f32.mrf.mxu0
        %v2914 = vadd.f32 %v2831, %v2913
        %v2915 = vpop.f32.mrf.mxu0
        %v2916 = vadd.f32 %v2831, %v2915
        %2917 = vmatmul.bf16.gmra.mxu0 %v2849
        %v2918 = vpop.f32.mrf.mxu0
        %v2919 = vadd.f32 %v2831, %v2918
        %v2920 = vpop.f32.mrf.mxu0
        %v2921 = vadd.f32 %v2831, %v2920
        %2922 = vmatmul.bf16.gmra.mxu0 %v2852
        %v2923 = vpop.f32.mrf.mxu0
        %v2924 = vadd.f32 %v2831, %v2923
        %v2925 = vpop.f32.mrf.mxu0
        %v2926 = vadd.f32 %v2831, %v2925
        %2927 = vmatmul.bf16.gmra.mxu0 %v2855
        %v2928 = vpop.f32.mrf.mxu0
        %v2929 = vadd.f32 %v2831, %v2928
        %v2930 = vpop.f32.mrf.mxu0
        %v2931 = vadd.f32 %v2831, %v2930
        %2932 = vmatmul.bf16.gmra.mxu0 %v2858
        %v2933 = vpop.f32.mrf.mxu0
        %v2934 = vadd.f32 %v2831, %v2933
        %v2935 = vpop.f32.mrf.mxu0
        %v2936 = vadd.f32 %v2831, %v2935
        %2937 = vmatmul.bf16.gmra.mxu0 %v2861
        %v2938 = vpop.f32.mrf.mxu0
        %v2939 = vadd.f32 %v2831, %v2938
        %v2940 = vpop.f32.mrf.mxu0
        %v2941 = vadd.f32 %v2831, %v2940
        %2942 = vmatmul.bf16.gmra.mxu0 %v2864
        %v2943 = vpop.f32.mrf.mxu0
        %v2944 = vadd.f32 %v2831, %v2943
        %v2945 = vpop.f32.mrf.mxu0
        %v2946 = vadd.f32 %v2831, %v2945
        %2947 = vmatmul.bf16.gmra.mxu0 %v2867
        %v2948 = vpop.f32.mrf.mxu0
        %v2949 = vadd.f32 %v2831, %v2948
        %v2950 = vpop.f32.mrf.mxu0
        %v2951 = vadd.f32 %v2831, %v2950
        %2952 = vmatmul.bf16.gmra.mxu0 %v2870
        %v2953 = vpop.f32.mrf.mxu0
        %v2954 = vadd.f32 %v2831, %v2953
        %v2955 = vpop.f32.mrf.mxu0
        %v2956 = vadd.f32 %v2831, %v2955
        %2957 = vmatmul.bf16.gmra.mxu0 %v2873
        %v2958 = vpop.f32.mrf.mxu0
        %v2959 = vadd.f32 %v2831, %v2958
        %v2960 = vpop.f32.mrf.mxu0
        %v2961 = vadd.f32 %v2831, %v2960
        %2962 = vmatmul.bf16.gmra.mxu0 %v2876
        %v2963 = vpop.f32.mrf.mxu0
        %v2964 = vadd.f32 %v2831, %v2963
        %v2965 = vpop.f32.mrf.mxu0
        %v2966 = vadd.f32 %v2831, %v2965
        %2967 = vmatmul.bf16.gmra.mxu0 %v2879
        %v2968 = vpop.f32.mrf.mxu0
        %v2969 = vadd.f32 %v2831, %v2968
        %v2970 = vpop.f32.mrf.mxu0
        %v2971 = vadd.f32 %v2831, %v2970
        %2972 = vdwg.mxu0
        %v2973 = vld [vmem:[%s267] sm:$0xff]
        %v2974 = vld [vmem:[%s267 + $0x8] sm:$0xff]
        %v2975 = vld [vmem:[%s267 + $0x10] sm:$0xff]
        %v2976 = vld [vmem:[%s267 + $0x18] sm:$0xff]
        %v2977 = vld [vmem:[%s267 + $0x20] sm:$0xff]
        %v2978 = vld [vmem:[%s267 + $0x28] sm:$0xff]
        %v2979 = vld [vmem:[%s267 + $0x30] sm:$0xff]
        %v2980 = vld [vmem:[%s267 + $0x38] sm:$0xff]
        %v2981 = vld [vmem:[%s267 + $0x40] sm:$0xff]
        %v2982 = vld [vmem:[%s267 + $0x48] sm:$0xff]
        %v2983 = vld [vmem:[%s267 + $0x50] sm:$0xff]
        %v2984 = vld [vmem:[%s267 + $0x58] sm:$0xff]
        %v2985 = vld [vmem:[%s267 + $0x60] sm:$0xff]
        %v2986 = vld [vmem:[%s267 + $0x68] sm:$0xff]
        %v2987 = vld [vmem:[%s267 + $0x70] sm:$0xff]
        %v2988 = vld [vmem:[%s267 + $0x78] sm:$0xff]
        %v2989 = vld [vmem:[%s267 + $0x80] sm:$0xff]
        %v2990 = vld [vmem:[%s267 + $0x88] sm:$0xff]
        %v2991 = vld [vmem:[%s267 + $0x90] sm:$0xff]
        %v2992 = vld [vmem:[%s267 + $0x98] sm:$0xff]
        %v2993 = vld [vmem:[%s267 + $0xa0] sm:$0xff]
        %v2994 = vld [vmem:[%s267 + $0xa8] sm:$0xff]
        %v2995 = vld [vmem:[%s267 + $0xb0] sm:$0xff]
        %v2996 = vld [vmem:[%s267 + $0xb8] sm:$0xff]
        %v2997 = vld [vmem:[%s267 + $0xc0] sm:$0xff]
        %v2998 = vld [vmem:[%s267 + $0xc8] sm:$0xff]
        %v2999 = vld [vmem:[%s267 + $0xd0] sm:$0xff]
        %v3000 = vld [vmem:[%s267 + $0xd8] sm:$0xff]
        %v3001 = vld [vmem:[%s267 + $0xe0] sm:$0xff]
        %v3002 = vld [vmem:[%s267 + $0xe8] sm:$0xff]
        %v3003 = vld [vmem:[%s267 + $0xf0] sm:$0xff]
        %v3004 = vld [vmem:[%s267 + $0xf8] sm:$0xff]
        %v3005 = vadd.f32 %v2894, %v2973
        %v3006 = vadd.f32 %v2896, %v2974
        %v3007 = vadd.f32 %v2899, %v2975
        %v3008 = vadd.f32 %v2901, %v2976
        %v3009 = vadd.f32 %v2904, %v2977
        %v3010 = vadd.f32 %v2906, %v2978
        %v3011 = vadd.f32 %v2909, %v2979
        %v3012 = vadd.f32 %v2911, %v2980
        %v3013 = vadd.f32 %v2914, %v2981
        %v3014 = vadd.f32 %v2916, %v2982
        %v3015 = vadd.f32 %v2919, %v2983
        %v3016 = vadd.f32 %v2921, %v2984
        %v3017 = vadd.f32 %v2924, %v2985
        %v3018 = vadd.f32 %v2926, %v2986
        %v3019 = vadd.f32 %v2929, %v2987
        %v3020 = vadd.f32 %v2931, %v2988
        %v3021 = vadd.f32 %v2934, %v2989
        %v3022 = vadd.f32 %v2936, %v2990
        %v3023 = vadd.f32 %v2939, %v2991
        %v3024 = vadd.f32 %v2941, %v2992
        %v3025 = vadd.f32 %v2944, %v2993
        %v3026 = vadd.f32 %v2946, %v2994
        %v3027 = vadd.f32 %v2949, %v2995
        %v3028 = vadd.f32 %v2951, %v2996
        %v3029 = vadd.f32 %v2954, %v2997
        %v3030 = vadd.f32 %v2956, %v2998
        %v3031 = vadd.f32 %v2959, %v2999
        %v3032 = vadd.f32 %v2961, %v3000
        %v3033 = vadd.f32 %v2964, %v3001
        %v3034 = vadd.f32 %v2966, %v3002
        %v3035 = vadd.f32 %v2969, %v3003
        %v3036 = vadd.f32 %v2971, %v3004
        %v3037 = vmax.f32 %v3005, 0.0
        %v3038 = vmax.f32 %v3006, 0.0
        %v3039 = vmax.f32 %v3007, 0.0
        %v3040 = vmax.f32 %v3008, 0.0
        %v3041 = vmax.f32 %v3009, 0.0
        %v3042 = vmax.f32 %v3010, 0.0
        %v3043 = vmax.f32 %v3011, 0.0
        %v3044 = vmax.f32 %v3012, 0.0
        %v3045 = vmax.f32 %v3013, 0.0
        %v3046 = vmax.f32 %v3014, 0.0
        %v3047 = vmax.f32 %v3015, 0.0
        %v3048 = vmax.f32 %v3016, 0.0
        %v3049 = vmax.f32 %v3017, 0.0
        %v3050 = vmax.f32 %v3018, 0.0
        %v3051 = vmax.f32 %v3019, 0.0
        %v3052 = vmax.f32 %v3020, 0.0
        %v3053 = vmax.f32 %v3021, 0.0
        %v3054 = vmax.f32 %v3022, 0.0
        %v3055 = vmax.f32 %v3023, 0.0
        %v3056 = vmax.f32 %v3024, 0.0
        %v3057 = vmax.f32 %v3025, 0.0
        %v3058 = vmax.f32 %v3026, 0.0
        %v3059 = vmax.f32 %v3027, 0.0
        %v3060 = vmax.f32 %v3028, 0.0
        %v3061 = vmax.f32 %v3029, 0.0
        %v3062 = vmax.f32 %v3030, 0.0
        %v3063 = vmax.f32 %v3031, 0.0
        %v3064 = vmax.f32 %v3032, 0.0
        %v3065 = vmax.f32 %v3033, 0.0
        %v3066 = vmax.f32 %v3034, 0.0
        %v3067 = vmax.f32 %v3035, 0.0
        %v3068 = vmax.f32 %v3036, 0.0
        %3069 = vst.msk [vmem:[%s298] sm:$0xff] %vm360, %v3037
        %3070 = vst.msk [vmem:[%s298 + $0x8] sm:$0xff] %vm360, %v3038
        %3071 = vst.msk [vmem:[%s298 + $0x10] sm:$0xff] %vm360, %v3039
        %3072 = vst.msk [vmem:[%s298 + $0x18] sm:$0xff] %vm360, %v3040
        %3073 = vst.msk [vmem:[%s298 + $0x20] sm:$0xff] %vm360, %v3041
        %3074 = vst.msk [vmem:[%s298 + $0x28] sm:$0xff] %vm360, %v3042
        %3075 = vst.msk [vmem:[%s298 + $0x30] sm:$0xff] %vm360, %v3043
        %3076 = vst.msk [vmem:[%s298 + $0x38] sm:$0xff] %vm360, %v3044
        %3077 = vst.msk [vmem:[%s298 + $0x40] sm:$0xff] %vm360, %v3045
        %3078 = vst.msk [vmem:[%s298 + $0x48] sm:$0xff] %vm360, %v3046
        %3079 = vst.msk [vmem:[%s298 + $0x50] sm:$0xff] %vm360, %v3047
        %3080 = vst.msk [vmem:[%s298 + $0x58] sm:$0xff] %vm360, %v3048
        %3081 = vst.msk [vmem:[%s298 + $0x60] sm:$0xff] %vm360, %v3049
        %3082 = vst.msk [vmem:[%s298 + $0x68] sm:$0xff] %vm360, %v3050
        %3083 = vst.msk [vmem:[%s298 + $0x70] sm:$0xff] %vm360, %v3051
        %3084 = vst.msk [vmem:[%s298 + $0x78] sm:$0xff] %vm360, %v3052
        %3085 = vst.msk [vmem:[%s298 + $0x80] sm:$0xff] %vm360, %v3053
        %3086 = vst.msk [vmem:[%s298 + $0x88] sm:$0xff] %vm360, %v3054
        %3087 = vst.msk [vmem:[%s298 + $0x90] sm:$0xff] %vm360, %v3055
        %3088 = vst.msk [vmem:[%s298 + $0x98] sm:$0xff] %vm360, %v3056
        %3089 = vst.msk [vmem:[%s298 + $0xa0] sm:$0xff] %vm360, %v3057
        %3090 = vst.msk [vmem:[%s298 + $0xa8] sm:$0xff] %vm360, %v3058
        %3091 = vst.msk [vmem:[%s298 + $0xb0] sm:$0xff] %vm360, %v3059
        %3092 = vst.msk [vmem:[%s298 + $0xb8] sm:$0xff] %vm360, %v3060
        %3093 = vst.msk [vmem:[%s298 + $0xc0] sm:$0xff] %vm360, %v3061
        %3094 = vst.msk [vmem:[%s298 + $0xc8] sm:$0xff] %vm360, %v3062
        %3095 = vst.msk [vmem:[%s298 + $0xd0] sm:$0xff] %vm360, %v3063
        %3096 = vst.msk [vmem:[%s298 + $0xd8] sm:$0xff] %vm360, %v3064
        %3097 = vst.msk [vmem:[%s298 + $0xe0] sm:$0xff] %vm360, %v3065
        %3098 = vst.msk [vmem:[%s298 + $0xe8] sm:$0xff] %vm360, %v3066
        %3099 = vst.msk [vmem:[%s298 + $0xf0] sm:$0xff] %vm360, %v3067
        %3100 = vst.msk [vmem:[%s298 + $0xf8] sm:$0xff] %vm360, %v3068
        %s3101 = sand.u32 %s184, 1
        %s3102 = scalar_lea.sflag [#allocation6], %s3101
        %s3103 = sand.u32 %s184, 1
        %s3104 = smul.addr %s3103, 256
        %s3105 = scalar_lea.vmem [#allocation7], %s3104
        // Predicated region
        $region53: #{tpu_custom_call.1} parent=47 // pred_check
          %p3106 = pneg %p194
        $region54: #{tpu_custom_call.1} parent=47 // pred_check_branch
          %3108 = sbr.rel (%p3106) target = $region56
        $region55: #{tpu_custom_call.1} parent=47 // pred_region
          %3110 = vsyncadd %s3102, 0
          %s3111 = smul.addr %s24, 32
          %s3112 = smul.addr %s3111, 8
          %s3113 = scalar_lea.hbm %s7, %s3112
          %s3114 = sshll.u32 %s3105, 4
          %s3115 = int_to_ptr.vmem [resolvable:$true] %s3114
          %s3116 = sshll.u32 %s3113, 4
          %s3117 = int_to_ptr.hbm [resolvable:$true] %s3116
          %3122 = dma.vmem_to_hbm [thread:$0]  %s3115, 4096, %s3117, %s3102, 128, 128, 8
        $region56: #{tpu_custom_call.1} parent=47 // pred_fallthru
          _
      $region48: #{tpu_custom_call.1} parent=5 // pred_fallthru
        _
      %p3123 = scmp.le.s32.totalorder 2, %s19
      // Predicated region
      $region57: #{tpu_custom_call.1} parent=5 // pred_check
        %p3124 = pneg %p3123
      $region58: #{tpu_custom_call.1} parent=5 // pred_check_branch
        %3126 = sbr.rel (%p3124) target = $region60
      $region59: #{tpu_custom_call.1} parent=5 // pred_region
        %s3127 = ssub.s32 %s19, 2
        // Predicated region
        $region61: #{tpu_custom_call.1} parent=59 // pred_check
          %p3128 = pneg %p200
        $region62: #{tpu_custom_call.1} parent=59 // pred_check_branch
          %3130 = sbr.rel (%p3128) target = $region64
        $region63: #{tpu_custom_call.1} parent=59 // pred_region
          %s3131 = sand.u32 %s185, 1
          %s3132 = scalar_lea.sflag [#allocation6], %s3131
          %s3133 = sand.u32 %s185, 1
          %s3134 = smul.addr %s3133, 256
          %s3135 = scalar_lea.vmem [#allocation7], %s3134
          %3137 = dma.done %s3132, 4096
        $region64: #{tpu_custom_call.1} parent=59 // pred_fallthru
          _
      $region60: #{tpu_custom_call.1} parent=5 // pred_fallthru
        _
    $region6: #{tpu_custom_call.1} parent=1 // loop_footer
      %s23 = sadd.s32 1, %s19
    $region7: #{tpu_custom_call.1} parent=1 // loop_footer_branch
      %18 = sbr.rel target = $region3
    $region8: #{tpu_custom_call.1} parent=1 // loop_exit
      _
    %3138 = vsyncpa [#allocation5], 1
    %s3139 = scalar_lea.sflag [#allocation5], 1
    %3140 = vsyncpa %s3139, 1
    %3141 = vsyncpa [#allocation6], 1
    %s3142 = scalar_lea.sflag [#allocation6], 1
    %3143 = vsyncpa %s3142, 1

</llo_original>
